<compile_context>
chip_gen: v7x
topology: tpu7x:2x2x1
jax: 0.10.0
libtpu: 0.0.40
codegen_flags: <defaults>
</compile_context>

<pallas_src>
import jax
import jax.numpy as jnp
from jax.experimental import pallas as pl
from jax.experimental.pallas import tpu as pltpu

EPS = 1e-5


def pack_params(params):
    """Flatten all parameters into one tiny 1-D f32 array (lives in SMEM)."""
    return jnp.concatenate([
        params["w1"].reshape(-1).astype(jnp.float32),
        params["b1"].astype(jnp.float32),
        params["gamma"].astype(jnp.float32),
        params["beta"].astype(jnp.float32),
        params["w2"].reshape(-1).astype(jnp.float32),
        params["b2"].astype(jnp.float32),
    ])


def _make_kernel(n, in_f, n_h, out_f):
    # Static offsets into the flat SMEM parameter vector.
    w1_off = 0
    b1_off = w1_off + n_h * in_f
    g_off = b1_off + n_h
    be_off = g_off + n_h
    w2_off = be_off + n_h
    b2_off = w2_off + out_f * n_h
    inv_n = 1.0 / float(n)

    def kernel(p_ref, x_ref, o_ref):
        # x_ref: (n, in_f) f32 in VMEM, batch on sublanes.  Feature widths are
        # tiny, so each hidden/output column is an (n, 1) VPU vector and all
        # weights come in as scalar broadcasts straight from SMEM.
        p_cols = []
        for h in range(n_h):
            # linear1 row h:  z = sum_j w1[h, j] * x[:, j] + b1[h]
            z = p_ref[w1_off + h * in_f] * x_ref[:, 0:1]
            for j in range(1, in_f):
                z = z + p_ref[w1_off + h * in_f + j] * x_ref[:, j:j + 1]
            z = z + p_ref[b1_off + h]                              # (n, 1)
            # Training-mode BatchNorm1d: global batch mean + biased variance,
            # centered two-pass formula for numerical robustness.
            mu = jnp.sum(z, axis=0, keepdims=True) * inv_n         # (1, 1)
            zc = z - mu
            var = jnp.sum(zc * zc, axis=0, keepdims=True) * inv_n  # biased
            a = (p_ref[g_off + h] * (zc * jax.lax.rsqrt(var + EPS))
                 + p_ref[be_off + h])
            p_cols.append(jax.nn.sigmoid(a))                       # exp -> EUP
        # linear2 (tiny: unrolled scalar*vector MACs)
        for o in range(out_f):
            acc = p_ref[w2_off + o * n_h] * p_cols[0]
            for h in range(1, n_h):
                acc = acc + p_ref[w2_off + o * n_h + h] * p_cols[h]
            o_ref[:, o:o + 1] = acc + p_ref[b2_off + o]

    return kernel


def sigmoid_class1_norm1_forward(x, params):
    """x: (N, in_features) f32  ->  (N, out_features) f32."""
    n, in_f = x.shape
    n_h = params["w1"].shape[0]
    out_f = params["w2"].shape[0]
    p_flat = pack_params(params)

    kernel = _make_kernel(n, in_f, n_h, out_f)
    # Whole batch as one block: working set is a few hundred KiB, far under
    # any generation's VMEM, so a single grid step is optimal (overhead-bound
    # workload).  TODO(synk): for very large N, add a batch grid with a
    # resident z1 VMEM scratch + 2-phase stats, keeping the single launch.
    return pl.pallas_call(
        kernel,
        out_shape=jax.ShapeDtypeStruct((n, out_f), jnp.float32),
        in_specs=[pl.BlockSpec(memory_space=pltpu.MemorySpace.SMEM),
                  pl.BlockSpec(memory_space=pltpu.MemorySpace.VMEM)],
        out_specs=pl.BlockSpec(memory_space=pltpu.MemorySpace.VMEM),
    )(p_flat, x)


def init_params(key, in_features=2, n_hidden=4, out_features=1):
    """PyTorch-style layouts: Linear weight (out, in), default uniform init."""
    k1, k2, k3, k4 = jax.random.split(key, 4)
    bound1 = 1.0 / (in_features ** 0.5)
    bound2 = 1.0 / (n_hidden ** 0.5)
    return {
        "w1": jax.random.uniform(k1, (n_hidden, in_features), jnp.float32, -bound1, bound1),
        "b1": jax.random.uniform(k2, (n_hidden,), jnp.float32, -bound1, bound1),
        "gamma": jnp.ones((n_hidden,), jnp.float32),
        "beta": jnp.zeros((n_hidden,), jnp.float32),
        "w2": jax.random.uniform(k3, (out_features, n_hidden), jnp.float32, -bound2, bound2),
        "b2": jax.random.uniform(k4, (out_features,), jnp.float32, -bound2, bound2),
    }


def _reference_forward(x, params):
    """Pure-JAX reference of the module forward (training-mode BatchNorm1d)."""
    z1 = x @ params["w1"].T + params["b1"]
    mu = jnp.mean(z1, axis=0)
    var = jnp.mean((z1 - mu) ** 2, axis=0)                  # biased variance
    p1 = jax.nn.sigmoid(params["gamma"] * (z1 - mu) / jnp.sqrt(var + EPS)
                        + params["beta"])
    return p1 @ params["w2"].T + params["b2"]


if __name__ == "__main__":
    key = jax.random.PRNGKey(0)
    k_x, k_p = jax.random.split(key)

    batch, in_features, n_hidden, out_features = 256, 2, 4, 1
    x = jax.random.normal(k_x, (batch, in_features), jnp.float32)
    params = init_params(k_p, in_features, n_hidden, out_features)

    fwd = jax.jit(sigmoid_class1_norm1_forward)
    out = jax.block_until_ready(fwd(x, params))

    ref = _reference_forward(x, params)
    assert out.shape == (batch, out_features)
    assert jnp.allclose(out, ref, atol=2e-5, rtol=2e-5), \
        float(jnp.max(jnp.abs(out - ref)))

    print("KERNEL_OK")
</pallas_src>

<mosaic_0001>
module attributes {stable_mosaic.version = 11 : i64} {
  func.func @kernel(%arg0: memref<25xf32, #tpu.memory_space<smem>>, %arg1: memref<256x2xf32, #tpu.memory_space<vmem>>, %arg2: memref<256x1xf32, #tpu.memory_space<vmem>>) attributes {dimension_semantics = [], scalar_prefetch = 0 : i64, scratch_operands = 0 : i64, tpu.core_type = #tpu.core_type<tc>} {
    %c0 = arith.constant 0 : index
    %0 = memref.load %arg0[%c0] : memref<25xf32, #tpu.memory_space<smem>>
    %c0_0 = arith.constant 0 : index
    %c0_1 = arith.constant 0 : index
    %1 = vector.load %arg1[%c0_0, %c0_1] : memref<256x2xf32, #tpu.memory_space<vmem>>, vector<256x1xf32>
    %2 = vector.broadcast %0 : f32 to vector<256x1xf32>
    %3 = arith.mulf %2, %1 : vector<256x1xf32>
    %c1 = arith.constant 1 : index
    %4 = memref.load %arg0[%c1] : memref<25xf32, #tpu.memory_space<smem>>
    %c0_2 = arith.constant 0 : index
    %c1_3 = arith.constant 1 : index
    %5 = vector.load %arg1[%c0_2, %c1_3] : memref<256x2xf32, #tpu.memory_space<vmem>>, vector<256x1xf32>
    %6 = vector.broadcast %4 : f32 to vector<256x1xf32>
    %7 = arith.mulf %6, %5 : vector<256x1xf32>
    %8 = arith.addf %3, %7 : vector<256x1xf32>
    %c8 = arith.constant 8 : index
    %9 = memref.load %arg0[%c8] : memref<25xf32, #tpu.memory_space<smem>>
    %10 = vector.broadcast %9 : f32 to vector<256x1xf32>
    %11 = arith.addf %8, %10 : vector<256x1xf32>
    %cst = arith.constant dense<0.000000e+00> : vector<1xf32>
    %12 = vector.multi_reduction <add>, %11, %cst [0] : vector<256x1xf32> to vector<1xf32>
    %13 = vector.shape_cast %12 : vector<1xf32> to vector<1x1xf32>
    %cst_4 = arith.constant 3.906250e-03 : f32
    %14 = vector.broadcast %cst_4 : f32 to vector<1x1xf32>
    %15 = arith.mulf %13, %14 : vector<1x1xf32>
    %16 = vector.broadcast %15 : vector<1x1xf32> to vector<256x1xf32>
    %17 = arith.subf %11, %16 : vector<256x1xf32>
    %18 = arith.mulf %17, %17 : vector<256x1xf32>
    %cst_5 = arith.constant dense<0.000000e+00> : vector<1xf32>
    %19 = vector.multi_reduction <add>, %18, %cst_5 [0] : vector<256x1xf32> to vector<1xf32>
    %20 = vector.shape_cast %19 : vector<1xf32> to vector<1x1xf32>
    %cst_6 = arith.constant 3.906250e-03 : f32
    %21 = vector.broadcast %cst_6 : f32 to vector<1x1xf32>
    %22 = arith.mulf %20, %21 : vector<1x1xf32>
    %c12 = arith.constant 12 : index
    %23 = memref.load %arg0[%c12] : memref<25xf32, #tpu.memory_space<smem>>
    %cst_7 = arith.constant 9.99999974E-6 : f32
    %24 = vector.broadcast %cst_7 : f32 to vector<1x1xf32>
    %25 = arith.addf %22, %24 : vector<1x1xf32>
    %26 = math.rsqrt %25 : vector<1x1xf32>
    %27 = vector.broadcast %26 : vector<1x1xf32> to vector<256x1xf32>
    %28 = arith.mulf %17, %27 : vector<256x1xf32>
    %29 = vector.broadcast %23 : f32 to vector<256x1xf32>
    %30 = arith.mulf %29, %28 : vector<256x1xf32>
    %c16 = arith.constant 16 : index
    %31 = memref.load %arg0[%c16] : memref<25xf32, #tpu.memory_space<smem>>
    %32 = vector.broadcast %31 : f32 to vector<256x1xf32>
    %33 = arith.addf %30, %32 : vector<256x1xf32>
    %34 = arith.negf %33 : vector<256x1xf32>
    %35 = math.exp %34 : vector<256x1xf32>
    %cst_8 = arith.constant 1.000000e+00 : f32
    %36 = vector.broadcast %cst_8 : f32 to vector<256x1xf32>
    %37 = arith.addf %36, %35 : vector<256x1xf32>
    %38 = arith.divf %36, %37 : vector<256x1xf32>
    %c2 = arith.constant 2 : index
    %39 = memref.load %arg0[%c2] : memref<25xf32, #tpu.memory_space<smem>>
    %c0_9 = arith.constant 0 : index
    %c0_10 = arith.constant 0 : index
    %40 = vector.load %arg1[%c0_9, %c0_10] : memref<256x2xf32, #tpu.memory_space<vmem>>, vector<256x1xf32>
    %41 = vector.broadcast %39 : f32 to vector<256x1xf32>
    %42 = arith.mulf %41, %40 : vector<256x1xf32>
    %c3 = arith.constant 3 : index
    %43 = memref.load %arg0[%c3] : memref<25xf32, #tpu.memory_space<smem>>
    %c0_11 = arith.constant 0 : index
    %c1_12 = arith.constant 1 : index
    %44 = vector.load %arg1[%c0_11, %c1_12] : memref<256x2xf32, #tpu.memory_space<vmem>>, vector<256x1xf32>
    %45 = vector.broadcast %43 : f32 to vector<256x1xf32>
    %46 = arith.mulf %45, %44 : vector<256x1xf32>
    %47 = arith.addf %42, %46 : vector<256x1xf32>
    %c9 = arith.constant 9 : index
    %48 = memref.load %arg0[%c9] : memref<25xf32, #tpu.memory_space<smem>>
    %49 = vector.broadcast %48 : f32 to vector<256x1xf32>
    %50 = arith.addf %47, %49 : vector<256x1xf32>
    %cst_13 = arith.constant dense<0.000000e+00> : vector<1xf32>
    %51 = vector.multi_reduction <add>, %50, %cst_13 [0] : vector<256x1xf32> to vector<1xf32>
    %52 = vector.shape_cast %51 : vector<1xf32> to vector<1x1xf32>
    %cst_14 = arith.constant 3.906250e-03 : f32
    %53 = vector.broadcast %cst_14 : f32 to vector<1x1xf32>
    %54 = arith.mulf %52, %53 : vector<1x1xf32>
    %55 = vector.broadcast %54 : vector<1x1xf32> to vector<256x1xf32>
    %56 = arith.subf %50, %55 : vector<256x1xf32>
    %57 = arith.mulf %56, %56 : vector<256x1xf32>
    %cst_15 = arith.constant dense<0.000000e+00> : vector<1xf32>
    %58 = vector.multi_reduction <add>, %57, %cst_15 [0] : vector<256x1xf32> to vector<1xf32>
    %59 = vector.shape_cast %58 : vector<1xf32> to vector<1x1xf32>
    %cst_16 = arith.constant 3.906250e-03 : f32
    %60 = vector.broadcast %cst_16 : f32 to vector<1x1xf32>
    %61 = arith.mulf %59, %60 : vector<1x1xf32>
    %c13 = arith.constant 13 : index
    %62 = memref.load %arg0[%c13] : memref<25xf32, #tpu.memory_space<smem>>
    %cst_17 = arith.constant 9.99999974E-6 : f32
    %63 = vector.broadcast %cst_17 : f32 to vector<1x1xf32>
    %64 = arith.addf %61, %63 : vector<1x1xf32>
    %65 = math.rsqrt %64 : vector<1x1xf32>
    %66 = vector.broadcast %65 : vector<1x1xf32> to vector<256x1xf32>
    %67 = arith.mulf %56, %66 : vector<256x1xf32>
    %68 = vector.broadcast %62 : f32 to vector<256x1xf32>
    %69 = arith.mulf %68, %67 : vector<256x1xf32>
    %c17 = arith.constant 17 : index
    %70 = memref.load %arg0[%c17] : memref<25xf32, #tpu.memory_space<smem>>
    %71 = vector.broadcast %70 : f32 to vector<256x1xf32>
    %72 = arith.addf %69, %71 : vector<256x1xf32>
    %73 = arith.negf %72 : vector<256x1xf32>
    %74 = math.exp %73 : vector<256x1xf32>
    %cst_18 = arith.constant 1.000000e+00 : f32
    %75 = vector.broadcast %cst_18 : f32 to vector<256x1xf32>
    %76 = arith.addf %75, %74 : vector<256x1xf32>
    %77 = arith.divf %75, %76 : vector<256x1xf32>
    %c4 = arith.constant 4 : index
    %78 = memref.load %arg0[%c4] : memref<25xf32, #tpu.memory_space<smem>>
    %c0_19 = arith.constant 0 : index
    %c0_20 = arith.constant 0 : index
    %79 = vector.load %arg1[%c0_19, %c0_20] : memref<256x2xf32, #tpu.memory_space<vmem>>, vector<256x1xf32>
    %80 = vector.broadcast %78 : f32 to vector<256x1xf32>
    %81 = arith.mulf %80, %79 : vector<256x1xf32>
    %c5 = arith.constant 5 : index
    %82 = memref.load %arg0[%c5] : memref<25xf32, #tpu.memory_space<smem>>
    %c0_21 = arith.constant 0 : index
    %c1_22 = arith.constant 1 : index
    %83 = vector.load %arg1[%c0_21, %c1_22] : memref<256x2xf32, #tpu.memory_space<vmem>>, vector<256x1xf32>
    %84 = vector.broadcast %82 : f32 to vector<256x1xf32>
    %85 = arith.mulf %84, %83 : vector<256x1xf32>
    %86 = arith.addf %81, %85 : vector<256x1xf32>
    %c10 = arith.constant 10 : index
    %87 = memref.load %arg0[%c10] : memref<25xf32, #tpu.memory_space<smem>>
    %88 = vector.broadcast %87 : f32 to vector<256x1xf32>
    %89 = arith.addf %86, %88 : vector<256x1xf32>
    %cst_23 = arith.constant dense<0.000000e+00> : vector<1xf32>
    %90 = vector.multi_reduction <add>, %89, %cst_23 [0] : vector<256x1xf32> to vector<1xf32>
    %91 = vector.shape_cast %90 : vector<1xf32> to vector<1x1xf32>
    %cst_24 = arith.constant 3.906250e-03 : f32
    %92 = vector.broadcast %cst_24 : f32 to vector<1x1xf32>
    %93 = arith.mulf %91, %92 : vector<1x1xf32>
    %94 = vector.broadcast %93 : vector<1x1xf32> to vector<256x1xf32>
    %95 = arith.subf %89, %94 : vector<256x1xf32>
    %96 = arith.mulf %95, %95 : vector<256x1xf32>
    %cst_25 = arith.constant dense<0.000000e+00> : vector<1xf32>
    %97 = vector.multi_reduction <add>, %96, %cst_25 [0] : vector<256x1xf32> to vector<1xf32>
    %98 = vector.shape_cast %97 : vector<1xf32> to vector<1x1xf32>
    %cst_26 = arith.constant 3.906250e-03 : f32
    %99 = vector.broadcast %cst_26 : f32 to vector<1x1xf32>
    %100 = arith.mulf %98, %99 : vector<1x1xf32>
    %c14 = arith.constant 14 : index
    %101 = memref.load %arg0[%c14] : memref<25xf32, #tpu.memory_space<smem>>
    %cst_27 = arith.constant 9.99999974E-6 : f32
    %102 = vector.broadcast %cst_27 : f32 to vector<1x1xf32>
    %103 = arith.addf %100, %102 : vector<1x1xf32>
    %104 = math.rsqrt %103 : vector<1x1xf32>
    %105 = vector.broadcast %104 : vector<1x1xf32> to vector<256x1xf32>
    %106 = arith.mulf %95, %105 : vector<256x1xf32>
    %107 = vector.broadcast %101 : f32 to vector<256x1xf32>
    %108 = arith.mulf %107, %106 : vector<256x1xf32>
    %c18 = arith.constant 18 : index
    %109 = memref.load %arg0[%c18] : memref<25xf32, #tpu.memory_space<smem>>
    %110 = vector.broadcast %109 : f32 to vector<256x1xf32>
    %111 = arith.addf %108, %110 : vector<256x1xf32>
    %112 = arith.negf %111 : vector<256x1xf32>
    %113 = math.exp %112 : vector<256x1xf32>
    %cst_28 = arith.constant 1.000000e+00 : f32
    %114 = vector.broadcast %cst_28 : f32 to vector<256x1xf32>
    %115 = arith.addf %114, %113 : vector<256x1xf32>
    %116 = arith.divf %114, %115 : vector<256x1xf32>
    %c6 = arith.constant 6 : index
    %117 = memref.load %arg0[%c6] : memref<25xf32, #tpu.memory_space<smem>>
    %c0_29 = arith.constant 0 : index
    %c0_30 = arith.constant 0 : index
    %118 = vector.load %arg1[%c0_29, %c0_30] : memref<256x2xf32, #tpu.memory_space<vmem>>, vector<256x1xf32>
    %119 = vector.broadcast %117 : f32 to vector<256x1xf32>
    %120 = arith.mulf %119, %118 : vector<256x1xf32>
    %c7 = arith.constant 7 : index
    %121 = memref.load %arg0[%c7] : memref<25xf32, #tpu.memory_space<smem>>
    %c0_31 = arith.constant 0 : index
    %c1_32 = arith.constant 1 : index
    %122 = vector.load %arg1[%c0_31, %c1_32] : memref<256x2xf32, #tpu.memory_space<vmem>>, vector<256x1xf32>
    %123 = vector.broadcast %121 : f32 to vector<256x1xf32>
    %124 = arith.mulf %123, %122 : vector<256x1xf32>
    %125 = arith.addf %120, %124 : vector<256x1xf32>
    %c11 = arith.constant 11 : index
    %126 = memref.load %arg0[%c11] : memref<25xf32, #tpu.memory_space<smem>>
    %127 = vector.broadcast %126 : f32 to vector<256x1xf32>
    %128 = arith.addf %125, %127 : vector<256x1xf32>
    %cst_33 = arith.constant dense<0.000000e+00> : vector<1xf32>
    %129 = vector.multi_reduction <add>, %128, %cst_33 [0] : vector<256x1xf32> to vector<1xf32>
    %130 = vector.shape_cast %129 : vector<1xf32> to vector<1x1xf32>
    %cst_34 = arith.constant 3.906250e-03 : f32
    %131 = vector.broadcast %cst_34 : f32 to vector<1x1xf32>
    %132 = arith.mulf %130, %131 : vector<1x1xf32>
    %133 = vector.broadcast %132 : vector<1x1xf32> to vector<256x1xf32>
    %134 = arith.subf %128, %133 : vector<256x1xf32>
    %135 = arith.mulf %134, %134 : vector<256x1xf32>
    %cst_35 = arith.constant dense<0.000000e+00> : vector<1xf32>
    %136 = vector.multi_reduction <add>, %135, %cst_35 [0] : vector<256x1xf32> to vector<1xf32>
    %137 = vector.shape_cast %136 : vector<1xf32> to vector<1x1xf32>
    %cst_36 = arith.constant 3.906250e-03 : f32
    %138 = vector.broadcast %cst_36 : f32 to vector<1x1xf32>
    %139 = arith.mulf %137, %138 : vector<1x1xf32>
    %c15 = arith.constant 15 : index
    %140 = memref.load %arg0[%c15] : memref<25xf32, #tpu.memory_space<smem>>
    %cst_37 = arith.constant 9.99999974E-6 : f32
    %141 = vector.broadcast %cst_37 : f32 to vector<1x1xf32>
    %142 = arith.addf %139, %141 : vector<1x1xf32>
    %143 = math.rsqrt %142 : vector<1x1xf32>
    %144 = vector.broadcast %143 : vector<1x1xf32> to vector<256x1xf32>
    %145 = arith.mulf %134, %144 : vector<256x1xf32>
    %146 = vector.broadcast %140 : f32 to vector<256x1xf32>
    %147 = arith.mulf %146, %145 : vector<256x1xf32>
    %c19 = arith.constant 19 : index
    %148 = memref.load %arg0[%c19] : memref<25xf32, #tpu.memory_space<smem>>
    %149 = vector.broadcast %148 : f32 to vector<256x1xf32>
    %150 = arith.addf %147, %149 : vector<256x1xf32>
    %151 = arith.negf %150 : vector<256x1xf32>
    %152 = math.exp %151 : vector<256x1xf32>
    %cst_38 = arith.constant 1.000000e+00 : f32
    %153 = vector.broadcast %cst_38 : f32 to vector<256x1xf32>
    %154 = arith.addf %153, %152 : vector<256x1xf32>
    %155 = arith.divf %153, %154 : vector<256x1xf32>
    %c20 = arith.constant 20 : index
    %156 = memref.load %arg0[%c20] : memref<25xf32, #tpu.memory_space<smem>>
    %157 = vector.broadcast %156 : f32 to vector<256x1xf32>
    %158 = arith.mulf %157, %38 : vector<256x1xf32>
    %c21 = arith.constant 21 : index
    %159 = memref.load %arg0[%c21] : memref<25xf32, #tpu.memory_space<smem>>
    %160 = vector.broadcast %159 : f32 to vector<256x1xf32>
    %161 = arith.mulf %160, %77 : vector<256x1xf32>
    %162 = arith.addf %158, %161 : vector<256x1xf32>
    %c22 = arith.constant 22 : index
    %163 = memref.load %arg0[%c22] : memref<25xf32, #tpu.memory_space<smem>>
    %164 = vector.broadcast %163 : f32 to vector<256x1xf32>
    %165 = arith.mulf %164, %116 : vector<256x1xf32>
    %166 = arith.addf %162, %165 : vector<256x1xf32>
    %c23 = arith.constant 23 : index
    %167 = memref.load %arg0[%c23] : memref<25xf32, #tpu.memory_space<smem>>
    %168 = vector.broadcast %167 : f32 to vector<256x1xf32>
    %169 = arith.mulf %168, %155 : vector<256x1xf32>
    %170 = arith.addf %166, %169 : vector<256x1xf32>
    %c24 = arith.constant 24 : index
    %171 = memref.load %arg0[%c24] : memref<25xf32, #tpu.memory_space<smem>>
    %172 = vector.broadcast %171 : f32 to vector<256x1xf32>
    %173 = arith.addf %170, %172 : vector<256x1xf32>
    %c0_39 = arith.constant 0 : index
    %c0_40 = arith.constant 0 : index
    %174 = vector.load %arg2[%c0_39, %c0_40] : memref<256x1xf32, #tpu.memory_space<vmem>>, vector<256x1xf32>
    tpu.vector_store %arg2[%c0_39, %c0_40], %173 {strides = array<i32>} : memref<256x1xf32, #tpu.memory_space<vmem>>, vector<256x1xf32>,
    return
  }
}

</mosaic_0001>

<llo_original>
// kernel: sigmoid_class1_norm1_forward.1
$region0: #{sigmoid_class1_norm1_forward.1}
  #allocation0 [shape = 'u32[]', space=smem, size = 0x4, offset = 0x4, fixed_abs, tag = 'smem constant byte address 0x4 - core index']
  #allocation1 [shape = 'u32[144,128]{1,0:T(1,128)}', space=vmem, size = 0x12000, scoped, tag = 'internal scratch']
  %s0 = inlined_call_operand.vmem [shape: f32[25], index: 0, kind: input, shape index: {}]
  %s1 = inlined_call_operand.vmem [shape: f32[256,2], index: 1, kind: input, shape index: {}]
  %s2 = inlined_call_operand.vmem [shape: f32[256,1], index: 2, kind: output, shape index: {}]
  %s3 = sld [smem:[#allocation0]]
  $region22: #{sigmoid_class1_norm1_forward.1} parent=0
    _
  %s5 = ssub.s32 1, %s3
  %s6 = scalar_select 0, %s5, %s3
  $region1: #{sigmoid_class1_norm1_forward.1} parent=0
    #allocation2 [shape = 'u8[512]{0}', space=smem, size = 0x200, scoped, tag = 'input window, operand 0, single buffered']
    #allocation3 [shape = 's32[1]{0}', space=sflag, size = 0x4, scoped, tag = 'scoped memory for sigmoid_class1_norm1_forward.1']
    %7 = vsyncpa [#allocation3], 0
    // Predicated region
    $region2: #{sigmoid_class1_norm1_forward.1} parent=1 // pred_check
      _
    $region3: #{sigmoid_class1_norm1_forward.1} parent=1 // pred_check_branch
      %9 = sbr.rel (0) target = $region5
    $region4: #{sigmoid_class1_norm1_forward.1} parent=1 // pred_region
      %s11 = ssub.s32 16, 16
      %12 = vsyncadd [#allocation3], %s11
      %s14 = sshll.u32 %s0, 4
      %s15 = int_to_ptr.vmem [resolvable:$true] %s14
      %17 = dma.vmem_to_smem %s15, 16, [#allocation2], [#allocation3]
    $region5: #{sigmoid_class1_norm1_forward.1} parent=1 // pred_fallthru
      _
    // Predicated region
    $region6: #{sigmoid_class1_norm1_forward.1} parent=1 // pred_check
      _
    $region7: #{sigmoid_class1_norm1_forward.1} parent=1 // pred_check_branch
      %19 = sbr.rel (0) target = $region9
    $region8: #{sigmoid_class1_norm1_forward.1} parent=1 // pred_region
      _
    $region9: #{sigmoid_class1_norm1_forward.1} parent=1 // pred_fallthru
      _
    // Predicated region
    $region10: #{sigmoid_class1_norm1_forward.1} parent=1 // pred_check
      _
    $region11: #{sigmoid_class1_norm1_forward.1} parent=1 // pred_check_branch
      %21 = sbr.rel (0) target = $region13
    $region12: #{sigmoid_class1_norm1_forward.1} parent=1 // pred_region
      %22 = dma.done [#allocation3], 16
    $region13: #{sigmoid_class1_norm1_forward.1} parent=1 // pred_fallthru
      _
    %23 = sfence
    %s24 = sld [smem:[#allocation2]]
    %v25 = vld [vmem:[%s1] sm:$0xff]
    %v26 = vld [vmem:[%s1 + $0x8] sm:$0xff]
    %v27 = vld [vmem:[%s1 + $0x10] sm:$0xff]
    %v28 = vld [vmem:[%s1 + $0x18] sm:$0xff]
    %v29 = vld [vmem:[%s1 + $0x20] sm:$0xff]
    %v30 = vld [vmem:[%s1 + $0x28] sm:$0xff]
    %v31 = vld [vmem:[%s1 + $0x30] sm:$0xff]
    %v32 = vld [vmem:[%s1 + $0x38] sm:$0xff]
    %v33 = vld [vmem:[%s1 + $0x40] sm:$0xff]
    %v34 = vld [vmem:[%s1 + $0x48] sm:$0xff]
    %v35 = vld [vmem:[%s1 + $0x50] sm:$0xff]
    %v36 = vld [vmem:[%s1 + $0x58] sm:$0xff]
    %v37 = vld [vmem:[%s1 + $0x60] sm:$0xff]
    %v38 = vld [vmem:[%s1 + $0x68] sm:$0xff]
    %v39 = vld [vmem:[%s1 + $0x70] sm:$0xff]
    %v40 = vld [vmem:[%s1 + $0x78] sm:$0xff]
    %v41 = vld [vmem:[%s1 + $0x80] sm:$0xff]
    %v42 = vld [vmem:[%s1 + $0x88] sm:$0xff]
    %v43 = vld [vmem:[%s1 + $0x90] sm:$0xff]
    %v44 = vld [vmem:[%s1 + $0x98] sm:$0xff]
    %v45 = vld [vmem:[%s1 + $0xa0] sm:$0xff]
    %v46 = vld [vmem:[%s1 + $0xa8] sm:$0xff]
    %v47 = vld [vmem:[%s1 + $0xb0] sm:$0xff]
    %v48 = vld [vmem:[%s1 + $0xb8] sm:$0xff]
    %v49 = vld [vmem:[%s1 + $0xc0] sm:$0xff]
    %v50 = vld [vmem:[%s1 + $0xc8] sm:$0xff]
    %v51 = vld [vmem:[%s1 + $0xd0] sm:$0xff]
    %v52 = vld [vmem:[%s1 + $0xd8] sm:$0xff]
    %v53 = vld [vmem:[%s1 + $0xe0] sm:$0xff]
    %v54 = vld [vmem:[%s1 + $0xe8] sm:$0xff]
    %v55 = vld [vmem:[%s1 + $0xf0] sm:$0xff]
    %v56 = vld [vmem:[%s1 + $0xf8] sm:$0xff]
    %v57 = vstv %s24
    %v58 = vmul.f32 %v57, %v25
    %v59 = vmul.f32 %v57, %v26
    %v60 = vmul.f32 %v57, %v27
    %v61 = vmul.f32 %v57, %v28
    %v62 = vmul.f32 %v57, %v29
    %v63 = vmul.f32 %v57, %v30
    %v64 = vmul.f32 %v57, %v31
    %v65 = vmul.f32 %v57, %v32
    %v66 = vmul.f32 %v57, %v33
    %v67 = vmul.f32 %v57, %v34
    %v68 = vmul.f32 %v57, %v35
    %v69 = vmul.f32 %v57, %v36
    %v70 = vmul.f32 %v57, %v37
    %v71 = vmul.f32 %v57, %v38
    %v72 = vmul.f32 %v57, %v39
    %v73 = vmul.f32 %v57, %v40
    %v74 = vmul.f32 %v57, %v41
    %v75 = vmul.f32 %v57, %v42
    %v76 = vmul.f32 %v57, %v43
    %v77 = vmul.f32 %v57, %v44
    %v78 = vmul.f32 %v57, %v45
    %v79 = vmul.f32 %v57, %v46
    %v80 = vmul.f32 %v57, %v47
    %v81 = vmul.f32 %v57, %v48
    %v82 = vmul.f32 %v57, %v49
    %v83 = vmul.f32 %v57, %v50
    %v84 = vmul.f32 %v57, %v51
    %v85 = vmul.f32 %v57, %v52
    %v86 = vmul.f32 %v57, %v53
    %v87 = vmul.f32 %v57, %v54
    %v88 = vmul.f32 %v57, %v55
    %v89 = vmul.f32 %v57, %v56
    %s90 = sld [smem:[#allocation2 + $0x1]]
    %v91 = vstv %s90
    %v92 = vmul.f32 %v91, %v25
    %v93 = vmul.f32 %v91, %v26
    %v94 = vmul.f32 %v91, %v27
    %v95 = vmul.f32 %v91, %v28
    %v96 = vmul.f32 %v91, %v29
    %v97 = vmul.f32 %v91, %v30
    %v98 = vmul.f32 %v91, %v31
    %v99 = vmul.f32 %v91, %v32
    %v100 = vmul.f32 %v91, %v33
    %v101 = vmul.f32 %v91, %v34
    %v102 = vmul.f32 %v91, %v35
    %v103 = vmul.f32 %v91, %v36
    %v104 = vmul.f32 %v91, %v37
    %v105 = vmul.f32 %v91, %v38
    %v106 = vmul.f32 %v91, %v39
    %v107 = vmul.f32 %v91, %v40
    %v108 = vmul.f32 %v91, %v41
    %v109 = vmul.f32 %v91, %v42
    %v110 = vmul.f32 %v91, %v43
    %v111 = vmul.f32 %v91, %v44
    %v112 = vmul.f32 %v91, %v45
    %v113 = vmul.f32 %v91, %v46
    %v114 = vmul.f32 %v91, %v47
    %v115 = vmul.f32 %v91, %v48
    %v116 = vmul.f32 %v91, %v49
    %v117 = vmul.f32 %v91, %v50
    %v118 = vmul.f32 %v91, %v51
    %v119 = vmul.f32 %v91, %v52
    %v120 = vmul.f32 %v91, %v53
    %v121 = vmul.f32 %v91, %v54
    %v122 = vmul.f32 %v91, %v55
    %v123 = vmul.f32 %v91, %v56
    %156 = vrot.lane.b32.xlu0 %v92, 127
    %v157 = vpop.permute.xlu0 %156
    %158 = vrot.lane.b32.xlu0 %v93, 127
    %v159 = vpop.permute.xlu0 %158
    %160 = vrot.lane.b32.xlu0 %v94, 127
    %v161 = vpop.permute.xlu0 %160
    %162 = vrot.lane.b32.xlu0 %v95, 127
    %v163 = vpop.permute.xlu0 %162
    %164 = vrot.lane.b32.xlu0 %v96, 127
    %v165 = vpop.permute.xlu0 %164
    %166 = vrot.lane.b32.xlu0 %v97, 127
    %v167 = vpop.permute.xlu0 %166
    %168 = vrot.lane.b32.xlu0 %v98, 127
    %v169 = vpop.permute.xlu0 %168
    %170 = vrot.lane.b32.xlu0 %v99, 127
    %v171 = vpop.permute.xlu0 %170
    %172 = vrot.lane.b32.xlu0 %v100, 127
    %v173 = vpop.permute.xlu0 %172
    %174 = vrot.lane.b32.xlu0 %v101, 127
    %v175 = vpop.permute.xlu0 %174
    %176 = vrot.lane.b32.xlu0 %v102, 127
    %v177 = vpop.permute.xlu0 %176
    %178 = vrot.lane.b32.xlu0 %v103, 127
    %v179 = vpop.permute.xlu0 %178
    %180 = vrot.lane.b32.xlu0 %v104, 127
    %v181 = vpop.permute.xlu0 %180
    %182 = vrot.lane.b32.xlu0 %v105, 127
    %v183 = vpop.permute.xlu0 %182
    %184 = vrot.lane.b32.xlu0 %v106, 127
    %v185 = vpop.permute.xlu0 %184
    %186 = vrot.lane.b32.xlu0 %v107, 127
    %v187 = vpop.permute.xlu0 %186
    %188 = vrot.lane.b32.xlu0 %v108, 127
    %v189 = vpop.permute.xlu0 %188
    %190 = vrot.lane.b32.xlu0 %v109, 127
    %v191 = vpop.permute.xlu0 %190
    %192 = vrot.lane.b32.xlu0 %v110, 127
    %v193 = vpop.permute.xlu0 %192
    %194 = vrot.lane.b32.xlu0 %v111, 127
    %v195 = vpop.permute.xlu0 %194
    %196 = vrot.lane.b32.xlu0 %v112, 127
    %v197 = vpop.permute.xlu0 %196
    %198 = vrot.lane.b32.xlu0 %v113, 127
    %v199 = vpop.permute.xlu0 %198
    %200 = vrot.lane.b32.xlu0 %v114, 127
    %v201 = vpop.permute.xlu0 %200
    %202 = vrot.lane.b32.xlu0 %v115, 127
    %v203 = vpop.permute.xlu0 %202
    %204 = vrot.lane.b32.xlu0 %v116, 127
    %v205 = vpop.permute.xlu0 %204
    %206 = vrot.lane.b32.xlu0 %v117, 127
    %v207 = vpop.permute.xlu0 %206
    %208 = vrot.lane.b32.xlu0 %v118, 127
    %v209 = vpop.permute.xlu0 %208
    %210 = vrot.lane.b32.xlu0 %v119, 127
    %v211 = vpop.permute.xlu0 %210
    %212 = vrot.lane.b32.xlu0 %v120, 127
    %v213 = vpop.permute.xlu0 %212
    %214 = vrot.lane.b32.xlu0 %v121, 127
    %v215 = vpop.permute.xlu0 %214
    %216 = vrot.lane.b32.xlu0 %v122, 127
    %v217 = vpop.permute.xlu0 %216
    %218 = vrot.lane.b32.xlu0 %v123, 127
    %v219 = vpop.permute.xlu0 %218
    %v252 = vadd.f32 %v58, %v157
    %v253 = vadd.f32 %v59, %v159
    %v254 = vadd.f32 %v60, %v161
    %v255 = vadd.f32 %v61, %v163
    %v256 = vadd.f32 %v62, %v165
    %v257 = vadd.f32 %v63, %v167
    %v258 = vadd.f32 %v64, %v169
    %v259 = vadd.f32 %v65, %v171
    %v260 = vadd.f32 %v66, %v173
    %v261 = vadd.f32 %v67, %v175
    %v262 = vadd.f32 %v68, %v177
    %v263 = vadd.f32 %v69, %v179
    %v264 = vadd.f32 %v70, %v181
    %v265 = vadd.f32 %v71, %v183
    %v266 = vadd.f32 %v72, %v185
    %v267 = vadd.f32 %v73, %v187
    %v268 = vadd.f32 %v74, %v189
    %v269 = vadd.f32 %v75, %v191
    %v270 = vadd.f32 %v76, %v193
    %v271 = vadd.f32 %v77, %v195
    %v272 = vadd.f32 %v78, %v197
    %v273 = vadd.f32 %v79, %v199
    %v274 = vadd.f32 %v80, %v201
    %v275 = vadd.f32 %v81, %v203
    %v276 = vadd.f32 %v82, %v205
    %v277 = vadd.f32 %v83, %v207
    %v278 = vadd.f32 %v84, %v209
    %v279 = vadd.f32 %v85, %v211
    %v280 = vadd.f32 %v86, %v213
    %v281 = vadd.f32 %v87, %v215
    %v282 = vadd.f32 %v88, %v217
    %v283 = vadd.f32 %v89, %v219
    %s284 = sld [smem:[#allocation2 + $0x8]]
    %v285 = vstv %s284
    %v286 = vadd.f32 %v252, %v285
    %v287 = vadd.f32 %v253, %v285
    %v288 = vadd.f32 %v254, %v285
    %v289 = vadd.f32 %v255, %v285
    %v290 = vadd.f32 %v256, %v285
    %v291 = vadd.f32 %v257, %v285
    %v292 = vadd.f32 %v258, %v285
    %v293 = vadd.f32 %v259, %v285
    %v294 = vadd.f32 %v260, %v285
    %v295 = vadd.f32 %v261, %v285
    %v296 = vadd.f32 %v262, %v285
    %v297 = vadd.f32 %v263, %v285
    %v298 = vadd.f32 %v264, %v285
    %v299 = vadd.f32 %v265, %v285
    %v300 = vadd.f32 %v266, %v285
    %v301 = vadd.f32 %v267, %v285
    %v302 = vadd.f32 %v268, %v285
    %v303 = vadd.f32 %v269, %v285
    %v304 = vadd.f32 %v270, %v285
    %v305 = vadd.f32 %v271, %v285
    %v306 = vadd.f32 %v272, %v285
    %v307 = vadd.f32 %v273, %v285
    %v308 = vadd.f32 %v274, %v285
    %v309 = vadd.f32 %v275, %v285
    %v310 = vadd.f32 %v276, %v285
    %v311 = vadd.f32 %v277, %v285
    %v312 = vadd.f32 %v278, %v285
    %v313 = vadd.f32 %v279, %v285
    %v314 = vadd.f32 %v280, %v285
    %v315 = vadd.f32 %v281, %v285
    %v316 = vadd.f32 %v282, %v285
    %v317 = vadd.f32 %v283, %v285
    %vm318 = vcmask 7168
    %v319 = vsel %vm318, %v286, 0.0
    %v320 = vsel %vm318, %v287, 0.0
    %v321 = vadd.f32 %v319, %v320
    %v322 = vsel %vm318, %v288, 0.0
    %v323 = vadd.f32 %v321, %v322
    %v324 = vsel %vm318, %v289, 0.0
    %v325 = vadd.f32 %v323, %v324
    %v326 = vsel %vm318, %v290, 0.0
    %v327 = vadd.f32 %v325, %v326
    %v328 = vsel %vm318, %v291, 0.0
    %v329 = vadd.f32 %v327, %v328
    %v330 = vsel %vm318, %v292, 0.0
    %v331 = vadd.f32 %v329, %v330
    %v332 = vsel %vm318, %v293, 0.0
    %v333 = vadd.f32 %v331, %v332
    %v334 = vsel %vm318, %v294, 0.0
    %v335 = vadd.f32 %v333, %v334
    %v336 = vsel %vm318, %v295, 0.0
    %v337 = vadd.f32 %v335, %v336
    %v338 = vsel %vm318, %v296, 0.0
    %v339 = vadd.f32 %v337, %v338
    %v340 = vsel %vm318, %v297, 0.0
    %v341 = vadd.f32 %v339, %v340
    %v342 = vsel %vm318, %v298, 0.0
    %v343 = vadd.f32 %v341, %v342
    %v344 = vsel %vm318, %v299, 0.0
    %v345 = vadd.f32 %v343, %v344
    %v346 = vsel %vm318, %v300, 0.0
    %v347 = vadd.f32 %v345, %v346
    %v348 = vsel %vm318, %v301, 0.0
    %v349 = vadd.f32 %v347, %v348
    %v350 = vsel %vm318, %v302, 0.0
    %v351 = vadd.f32 %v349, %v350
    %v352 = vsel %vm318, %v303, 0.0
    %v353 = vadd.f32 %v351, %v352
    %v354 = vsel %vm318, %v304, 0.0
    %v355 = vadd.f32 %v353, %v354
    %v356 = vsel %vm318, %v305, 0.0
    %v357 = vadd.f32 %v355, %v356
    %v358 = vsel %vm318, %v306, 0.0
    %v359 = vadd.f32 %v357, %v358
    %v360 = vsel %vm318, %v307, 0.0
    %v361 = vadd.f32 %v359, %v360
    %v362 = vsel %vm318, %v308, 0.0
    %v363 = vadd.f32 %v361, %v362
    %v364 = vsel %vm318, %v309, 0.0
    %v365 = vadd.f32 %v363, %v364
    %v366 = vsel %vm318, %v310, 0.0
    %v367 = vadd.f32 %v365, %v366
    %v368 = vsel %vm318, %v311, 0.0
    %v369 = vadd.f32 %v367, %v368
    %v370 = vsel %vm318, %v312, 0.0
    %v371 = vadd.f32 %v369, %v370
    %v372 = vsel %vm318, %v313, 0.0
    %v373 = vadd.f32 %v371, %v372
    %v374 = vsel %vm318, %v314, 0.0
    %v375 = vadd.f32 %v373, %v374
    %v376 = vsel %vm318, %v315, 0.0
    %v377 = vadd.f32 %v375, %v376
    %v378 = vsel %vm318, %v316, 0.0
    %v379 = vadd.f32 %v377, %v378
    %v380 = vsel %vm318, %v317, 0.0
    %v381 = vadd.f32 %v379, %v380
    %v382 = vrot.slane %v381, 4
    %v383 = vadd.f32 %v381, %v382
    %v384 = vrot.slane %v383, 2
    %v385 = vadd.f32 %v383, %v384
    %v386 = vrot.slane %v385, 1
    %v387 = vadd.f32 %v385, %v386
    %v388 = vmul.f32 %v387, 0.00390625
    %v389 = vsub.f32 %v286, %v388
    %v390 = vsub.f32 %v287, %v388
    %v391 = vsub.f32 %v288, %v388
    %v392 = vsub.f32 %v289, %v388
    %v393 = vsub.f32 %v290, %v388
    %v394 = vsub.f32 %v291, %v388
    %v395 = vsub.f32 %v292, %v388
    %v396 = vsub.f32 %v293, %v388
    %v397 = vsub.f32 %v294, %v388
    %v398 = vsub.f32 %v295, %v388
    %v399 = vsub.f32 %v296, %v388
    %v400 = vsub.f32 %v297, %v388
    %v401 = vsub.f32 %v298, %v388
    %v402 = vsub.f32 %v299, %v388
    %v403 = vsub.f32 %v300, %v388
    %v404 = vsub.f32 %v301, %v388
    %v405 = vsub.f32 %v302, %v388
    %v406 = vsub.f32 %v303, %v388
    %v407 = vsub.f32 %v304, %v388
    %v408 = vsub.f32 %v305, %v388
    %v409 = vsub.f32 %v306, %v388
    %v410 = vsub.f32 %v307, %v388
    %v411 = vsub.f32 %v308, %v388
    %v412 = vsub.f32 %v309, %v388
    %v413 = vsub.f32 %v310, %v388
    %v414 = vsub.f32 %v311, %v388
    %v415 = vsub.f32 %v312, %v388
    %v416 = vsub.f32 %v313, %v388
    %v417 = vsub.f32 %v314, %v388
    %v418 = vsub.f32 %v315, %v388
    %v419 = vsub.f32 %v316, %v388
    %v420 = vsub.f32 %v317, %v388
    %v421 = vmul.f32 %v389, %v389
    %v422 = vmul.f32 %v390, %v390
    %v423 = vmul.f32 %v391, %v391
    %v424 = vmul.f32 %v392, %v392
    %v425 = vmul.f32 %v393, %v393
    %v426 = vmul.f32 %v394, %v394
    %v427 = vmul.f32 %v395, %v395
    %v428 = vmul.f32 %v396, %v396
    %v429 = vmul.f32 %v397, %v397
    %v430 = vmul.f32 %v398, %v398
    %v431 = vmul.f32 %v399, %v399
    %v432 = vmul.f32 %v400, %v400
    %v433 = vmul.f32 %v401, %v401
    %v434 = vmul.f32 %v402, %v402
    %v435 = vmul.f32 %v403, %v403
    %v436 = vmul.f32 %v404, %v404
    %v437 = vmul.f32 %v405, %v405
    %v438 = vmul.f32 %v406, %v406
    %v439 = vmul.f32 %v407, %v407
    %v440 = vmul.f32 %v408, %v408
    %v441 = vmul.f32 %v409, %v409
    %v442 = vmul.f32 %v410, %v410
    %v443 = vmul.f32 %v411, %v411
    %v444 = vmul.f32 %v412, %v412
    %v445 = vmul.f32 %v413, %v413
    %v446 = vmul.f32 %v414, %v414
    %v447 = vmul.f32 %v415, %v415
    %v448 = vmul.f32 %v416, %v416
    %v449 = vmul.f32 %v417, %v417
    %v450 = vmul.f32 %v418, %v418
    %v451 = vmul.f32 %v419, %v419
    %v452 = vmul.f32 %v420, %v420
    %v453 = vsel %vm318, %v421, 0.0
    %v454 = vsel %vm318, %v422, 0.0
    %v455 = vadd.f32 %v453, %v454
    %v456 = vsel %vm318, %v423, 0.0
    %v457 = vadd.f32 %v455, %v456
    %v458 = vsel %vm318, %v424, 0.0
    %v459 = vadd.f32 %v457, %v458
    %v460 = vsel %vm318, %v425, 0.0
    %v461 = vadd.f32 %v459, %v460
    %v462 = vsel %vm318, %v426, 0.0
    %v463 = vadd.f32 %v461, %v462
    %v464 = vsel %vm318, %v427, 0.0
    %v465 = vadd.f32 %v463, %v464
    %v466 = vsel %vm318, %v428, 0.0
    %v467 = vadd.f32 %v465, %v466
    %v468 = vsel %vm318, %v429, 0.0
    %v469 = vadd.f32 %v467, %v468
    %v470 = vsel %vm318, %v430, 0.0
    %v471 = vadd.f32 %v469, %v470
    %v472 = vsel %vm318, %v431, 0.0
    %v473 = vadd.f32 %v471, %v472
    %v474 = vsel %vm318, %v432, 0.0
    %v475 = vadd.f32 %v473, %v474
    %v476 = vsel %vm318, %v433, 0.0
    %v477 = vadd.f32 %v475, %v476
    %v478 = vsel %vm318, %v434, 0.0
    %v479 = vadd.f32 %v477, %v478
    %v480 = vsel %vm318, %v435, 0.0
    %v481 = vadd.f32 %v479, %v480
    %v482 = vsel %vm318, %v436, 0.0
    %v483 = vadd.f32 %v481, %v482
    %v484 = vsel %vm318, %v437, 0.0
    %v485 = vadd.f32 %v483, %v484
    %v486 = vsel %vm318, %v438, 0.0
    %v487 = vadd.f32 %v485, %v486
    %v488 = vsel %vm318, %v439, 0.0
    %v489 = vadd.f32 %v487, %v488
    %v490 = vsel %vm318, %v440, 0.0
    %v491 = vadd.f32 %v489, %v490
    %v492 = vsel %vm318, %v441, 0.0
    %v493 = vadd.f32 %v491, %v492
    %v494 = vsel %vm318, %v442, 0.0
    %v495 = vadd.f32 %v493, %v494
    %v496 = vsel %vm318, %v443, 0.0
    %v497 = vadd.f32 %v495, %v496
    %v498 = vsel %vm318, %v444, 0.0
    %v499 = vadd.f32 %v497, %v498
    %v500 = vsel %vm318, %v445, 0.0
    %v501 = vadd.f32 %v499, %v500
    %v502 = vsel %vm318, %v446, 0.0
    %v503 = vadd.f32 %v501, %v502
    %v504 = vsel %vm318, %v447, 0.0
    %v505 = vadd.f32 %v503, %v504
    %v506 = vsel %vm318, %v448, 0.0
    %v507 = vadd.f32 %v505, %v506
    %v508 = vsel %vm318, %v449, 0.0
    %v509 = vadd.f32 %v507, %v508
    %v510 = vsel %vm318, %v450, 0.0
    %v511 = vadd.f32 %v509, %v510
    %v512 = vsel %vm318, %v451, 0.0
    %v513 = vadd.f32 %v511, %v512
    %v514 = vsel %vm318, %v452, 0.0
    %v515 = vadd.f32 %v513, %v514
    %v516 = vrot.slane %v515, 4
    %v517 = vadd.f32 %v515, %v516
    %v518 = vrot.slane %v517, 2
    %v519 = vadd.f32 %v517, %v518
    %v520 = vrot.slane %v519, 1
    %v521 = vadd.f32 %v519, %v520
    %v522 = vmul.f32 %v521, 0.00390625
    %s523 = sld [smem:[#allocation2 + $0xc]]
    %v524 = vadd.f32 %v522, 1e-05
    %v525 = vrsqrt.pop %v524
    %v526 = vmul.f32 %v389, %v525
    %v527 = vmul.f32 %v390, %v525
    %v528 = vmul.f32 %v391, %v525
    %v529 = vmul.f32 %v392, %v525
    %v530 = vmul.f32 %v393, %v525
    %v531 = vmul.f32 %v394, %v525
    %v532 = vmul.f32 %v395, %v525
    %v533 = vmul.f32 %v396, %v525
    %v534 = vmul.f32 %v397, %v525
    %v535 = vmul.f32 %v398, %v525
    %v536 = vmul.f32 %v399, %v525
    %v537 = vmul.f32 %v400, %v525
    %v538 = vmul.f32 %v401, %v525
    %v539 = vmul.f32 %v402, %v525
    %v540 = vmul.f32 %v403, %v525
    %v541 = vmul.f32 %v404, %v525
    %v542 = vmul.f32 %v405, %v525
    %v543 = vmul.f32 %v406, %v525
    %v544 = vmul.f32 %v407, %v525
    %v545 = vmul.f32 %v408, %v525
    %v546 = vmul.f32 %v409, %v525
    %v547 = vmul.f32 %v410, %v525
    %v548 = vmul.f32 %v411, %v525
    %v549 = vmul.f32 %v412, %v525
    %v550 = vmul.f32 %v413, %v525
    %v551 = vmul.f32 %v414, %v525
    %v552 = vmul.f32 %v415, %v525
    %v553 = vmul.f32 %v416, %v525
    %v554 = vmul.f32 %v417, %v525
    %v555 = vmul.f32 %v418, %v525
    %v556 = vmul.f32 %v419, %v525
    %v557 = vmul.f32 %v420, %v525
    %v558 = vstv %s523
    %v559 = vmul.f32 %v558, %v526
    %v560 = vmul.f32 %v558, %v527
    %v561 = vmul.f32 %v558, %v528
    %v562 = vmul.f32 %v558, %v529
    %v563 = vmul.f32 %v558, %v530
    %v564 = vmul.f32 %v558, %v531
    %v565 = vmul.f32 %v558, %v532
    %v566 = vmul.f32 %v558, %v533
    %v567 = vmul.f32 %v558, %v534
    %v568 = vmul.f32 %v558, %v535
    %v569 = vmul.f32 %v558, %v536
    %v570 = vmul.f32 %v558, %v537
    %v571 = vmul.f32 %v558, %v538
    %v572 = vmul.f32 %v558, %v539
    %v573 = vmul.f32 %v558, %v540
    %v574 = vmul.f32 %v558, %v541
    %v575 = vmul.f32 %v558, %v542
    %v576 = vmul.f32 %v558, %v543
    %v577 = vmul.f32 %v558, %v544
    %v578 = vmul.f32 %v558, %v545
    %v579 = vmul.f32 %v558, %v546
    %v580 = vmul.f32 %v558, %v547
    %v581 = vmul.f32 %v558, %v548
    %v582 = vmul.f32 %v558, %v549
    %v583 = vmul.f32 %v558, %v550
    %v584 = vmul.f32 %v558, %v551
    %v585 = vmul.f32 %v558, %v552
    %v586 = vmul.f32 %v558, %v553
    %v587 = vmul.f32 %v558, %v554
    %v588 = vmul.f32 %v558, %v555
    %v589 = vmul.f32 %v558, %v556
    %v590 = vmul.f32 %v558, %v557
    %s591 = sld [smem:[#allocation2 + $0x10]]
    %v592 = vstv %s591
    %v593 = vadd.f32 %v559, %v592
    %v594 = vadd.f32 %v560, %v592
    %v595 = vadd.f32 %v561, %v592
    %v596 = vadd.f32 %v562, %v592
    %v597 = vadd.f32 %v563, %v592
    %v598 = vadd.f32 %v564, %v592
    %v599 = vadd.f32 %v565, %v592
    %v600 = vadd.f32 %v566, %v592
    %v601 = vadd.f32 %v567, %v592
    %v602 = vadd.f32 %v568, %v592
    %v603 = vadd.f32 %v569, %v592
    %v604 = vadd.f32 %v570, %v592
    %v605 = vadd.f32 %v571, %v592
    %v606 = vadd.f32 %v572, %v592
    %v607 = vadd.f32 %v573, %v592
    %v608 = vadd.f32 %v574, %v592
    %v609 = vadd.f32 %v575, %v592
    %v610 = vadd.f32 %v576, %v592
    %v611 = vadd.f32 %v577, %v592
    %v612 = vadd.f32 %v578, %v592
    %v613 = vadd.f32 %v579, %v592
    %v614 = vadd.f32 %v580, %v592
    %v615 = vadd.f32 %v581, %v592
    %v616 = vadd.f32 %v582, %v592
    %v617 = vadd.f32 %v583, %v592
    %v618 = vadd.f32 %v584, %v592
    %v619 = vadd.f32 %v585, %v592
    %v620 = vadd.f32 %v586, %v592
    %v621 = vadd.f32 %v587, %v592
    %v622 = vadd.f32 %v588, %v592
    %v623 = vadd.f32 %v589, %v592
    %v624 = vadd.f32 %v590, %v592
    %v625 = vxor.u32 %v593, 2147483648
    %v626 = vxor.u32 %v594, 2147483648
    %v627 = vxor.u32 %v595, 2147483648
    %v628 = vxor.u32 %v596, 2147483648
    %v629 = vxor.u32 %v597, 2147483648
    %v630 = vxor.u32 %v598, 2147483648
    %v631 = vxor.u32 %v599, 2147483648
    %v632 = vxor.u32 %v600, 2147483648
    %v633 = vxor.u32 %v601, 2147483648
    %v634 = vxor.u32 %v602, 2147483648
    %v635 = vxor.u32 %v603, 2147483648
    %v636 = vxor.u32 %v604, 2147483648
    %v637 = vxor.u32 %v605, 2147483648
    %v638 = vxor.u32 %v606, 2147483648
    %v639 = vxor.u32 %v607, 2147483648
    %v640 = vxor.u32 %v608, 2147483648
    %v641 = vxor.u32 %v609, 2147483648
    %v642 = vxor.u32 %v610, 2147483648
    %v643 = vxor.u32 %v611, 2147483648
    %v644 = vxor.u32 %v612, 2147483648
    %v645 = vxor.u32 %v613, 2147483648
    %v646 = vxor.u32 %v614, 2147483648
    %v647 = vxor.u32 %v615, 2147483648
    %v648 = vxor.u32 %v616, 2147483648
    %v649 = vxor.u32 %v617, 2147483648
    %v650 = vxor.u32 %v618, 2147483648
    %v651 = vxor.u32 %v619, 2147483648
    %v652 = vxor.u32 %v620, 2147483648
    %v653 = vxor.u32 %v621, 2147483648
    %v654 = vxor.u32 %v622, 2147483648
    %v655 = vxor.u32 %v623, 2147483648
    %v656 = vxor.u32 %v624, 2147483648
    %v657 = vmul.f32 %v625, 1.442695
    %v658 = vpow.pop %v657
    %v659 = vmul.f32 %v626, 1.442695
    %v660 = vpow.pop %v659
    %v661 = vmul.f32 %v627, 1.442695
    %v662 = vpow.pop %v661
    %v663 = vmul.f32 %v628, 1.442695
    %v664 = vpow.pop %v663
    %v665 = vmul.f32 %v629, 1.442695
    %v666 = vpow.pop %v665
    %v667 = vmul.f32 %v630, 1.442695
    %v668 = vpow.pop %v667
    %v669 = vmul.f32 %v631, 1.442695
    %v670 = vpow.pop %v669
    %v671 = vmul.f32 %v632, 1.442695
    %v672 = vpow.pop %v671
    %v673 = vmul.f32 %v633, 1.442695
    %v674 = vpow.pop %v673
    %v675 = vmul.f32 %v634, 1.442695
    %v676 = vpow.pop %v675
    %v677 = vmul.f32 %v635, 1.442695
    %v678 = vpow.pop %v677
    %v679 = vmul.f32 %v636, 1.442695
    %v680 = vpow.pop %v679
    %v681 = vmul.f32 %v637, 1.442695
    %v682 = vpow.pop %v681
    %v683 = vmul.f32 %v638, 1.442695
    %v684 = vpow.pop %v683
    %v685 = vmul.f32 %v639, 1.442695
    %v686 = vpow.pop %v685
    %v687 = vmul.f32 %v640, 1.442695
    %v688 = vpow.pop %v687
    %v689 = vmul.f32 %v641, 1.442695
    %v690 = vpow.pop %v689
    %v691 = vmul.f32 %v642, 1.442695
    %v692 = vpow.pop %v691
    %v693 = vmul.f32 %v643, 1.442695
    %v694 = vpow.pop %v693
    %v695 = vmul.f32 %v644, 1.442695
    %v696 = vpow.pop %v695
    %v697 = vmul.f32 %v645, 1.442695
    %v698 = vpow.pop %v697
    %v699 = vmul.f32 %v646, 1.442695
    %v700 = vpow.pop %v699
    %v701 = vmul.f32 %v647, 1.442695
    %v702 = vpow.pop %v701
    %v703 = vmul.f32 %v648, 1.442695
    %v704 = vpow.pop %v703
    %v705 = vmul.f32 %v649, 1.442695
    %v706 = vpow.pop %v705
    %v707 = vmul.f32 %v650, 1.442695
    %v708 = vpow.pop %v707
    %v709 = vmul.f32 %v651, 1.442695
    %v710 = vpow.pop %v709
    %v711 = vmul.f32 %v652, 1.442695
    %v712 = vpow.pop %v711
    %v713 = vmul.f32 %v653, 1.442695
    %v714 = vpow.pop %v713
    %v715 = vmul.f32 %v654, 1.442695
    %v716 = vpow.pop %v715
    %v717 = vmul.f32 %v655, 1.442695
    %v718 = vpow.pop %v717
    %v719 = vmul.f32 %v656, 1.442695
    %v720 = vpow.pop %v719
    %v721 = vadd.f32 %v658, 1.0
    %v722 = vadd.f32 %v660, 1.0
    %v723 = vadd.f32 %v662, 1.0
    %v724 = vadd.f32 %v664, 1.0
    %v725 = vadd.f32 %v666, 1.0
    %v726 = vadd.f32 %v668, 1.0
    %v727 = vadd.f32 %v670, 1.0
    %v728 = vadd.f32 %v672, 1.0
    %v729 = vadd.f32 %v674, 1.0
    %v730 = vadd.f32 %v676, 1.0
    %v731 = vadd.f32 %v678, 1.0
    %v732 = vadd.f32 %v680, 1.0
    %v733 = vadd.f32 %v682, 1.0
    %v734 = vadd.f32 %v684, 1.0
    %v735 = vadd.f32 %v686, 1.0
    %v736 = vadd.f32 %v688, 1.0
    %v737 = vadd.f32 %v690, 1.0
    %v738 = vadd.f32 %v692, 1.0
    %v739 = vadd.f32 %v694, 1.0
    %v740 = vadd.f32 %v696, 1.0
    %v741 = vadd.f32 %v698, 1.0
    %v742 = vadd.f32 %v700, 1.0
    %v743 = vadd.f32 %v702, 1.0
    %v744 = vadd.f32 %v704, 1.0
    %v745 = vadd.f32 %v706, 1.0
    %v746 = vadd.f32 %v708, 1.0
    %v747 = vadd.f32 %v710, 1.0
    %v748 = vadd.f32 %v712, 1.0
    %v749 = vadd.f32 %v714, 1.0
    %v750 = vadd.f32 %v716, 1.0
    %v751 = vadd.f32 %v718, 1.0
    %v752 = vadd.f32 %v720, 1.0
    %v753 = vrcp.pop %v721
    %v754 = vmul.f32 1.0, %v753
    %v755 = vrcp.pop %v722
    %v756 = vmul.f32 1.0, %v755
    %v757 = vrcp.pop %v723
    %v758 = vmul.f32 1.0, %v757
    %v759 = vrcp.pop %v724
    %v760 = vmul.f32 1.0, %v759
    %v761 = vrcp.pop %v725
    %v762 = vmul.f32 1.0, %v761
    %v763 = vrcp.pop %v726
    %v764 = vmul.f32 1.0, %v763
    %v765 = vrcp.pop %v727
    %v766 = vmul.f32 1.0, %v765
    %v767 = vrcp.pop %v728
    %v768 = vmul.f32 1.0, %v767
    %v769 = vrcp.pop %v729
    %v770 = vmul.f32 1.0, %v769
    %v771 = vrcp.pop %v730
    %v772 = vmul.f32 1.0, %v771
    %v773 = vrcp.pop %v731
    %v774 = vmul.f32 1.0, %v773
    %v775 = vrcp.pop %v732
    %v776 = vmul.f32 1.0, %v775
    %v777 = vrcp.pop %v733
    %v778 = vmul.f32 1.0, %v777
    %v779 = vrcp.pop %v734
    %v780 = vmul.f32 1.0, %v779
    %v781 = vrcp.pop %v735
    %v782 = vmul.f32 1.0, %v781
    %v783 = vrcp.pop %v736
    %v784 = vmul.f32 1.0, %v783
    %v785 = vrcp.pop %v737
    %v786 = vmul.f32 1.0, %v785
    %v787 = vrcp.pop %v738
    %v788 = vmul.f32 1.0, %v787
    %v789 = vrcp.pop %v739
    %v790 = vmul.f32 1.0, %v789
    %v791 = vrcp.pop %v740
    %v792 = vmul.f32 1.0, %v791
    %v793 = vrcp.pop %v741
    %v794 = vmul.f32 1.0, %v793
    %v795 = vrcp.pop %v742
    %v796 = vmul.f32 1.0, %v795
    %v797 = vrcp.pop %v743
    %v798 = vmul.f32 1.0, %v797
    %v799 = vrcp.pop %v744
    %v800 = vmul.f32 1.0, %v799
    %v801 = vrcp.pop %v745
    %v802 = vmul.f32 1.0, %v801
    %v803 = vrcp.pop %v746
    %v804 = vmul.f32 1.0, %v803
    %v805 = vrcp.pop %v747
    %v806 = vmul.f32 1.0, %v805
    %v807 = vrcp.pop %v748
    %v808 = vmul.f32 1.0, %v807
    %v809 = vrcp.pop %v749
    %v810 = vmul.f32 1.0, %v809
    %v811 = vrcp.pop %v750
    %v812 = vmul.f32 1.0, %v811
    %v813 = vrcp.pop %v751
    %v814 = vmul.f32 1.0, %v813
    %v815 = vrcp.pop %v752
    %v816 = vmul.f32 1.0, %v815
    %s817 = sld [smem:[#allocation2 + $0x2]]
    %v818 = vstv %s817
    %v819 = vmul.f32 %v818, %v25
    %v820 = vmul.f32 %v818, %v26
    %v821 = vmul.f32 %v818, %v27
    %v822 = vmul.f32 %v818, %v28
    %v823 = vmul.f32 %v818, %v29
    %v824 = vmul.f32 %v818, %v30
    %v825 = vmul.f32 %v818, %v31
    %v826 = vmul.f32 %v818, %v32
    %v827 = vmul.f32 %v818, %v33
    %v828 = vmul.f32 %v818, %v34
    %v829 = vmul.f32 %v818, %v35
    %v830 = vmul.f32 %v818, %v36
    %v831 = vmul.f32 %v818, %v37
    %v832 = vmul.f32 %v818, %v38
    %v833 = vmul.f32 %v818, %v39
    %v834 = vmul.f32 %v818, %v40
    %v835 = vmul.f32 %v818, %v41
    %v836 = vmul.f32 %v818, %v42
    %v837 = vmul.f32 %v818, %v43
    %v838 = vmul.f32 %v818, %v44
    %v839 = vmul.f32 %v818, %v45
    %v840 = vmul.f32 %v818, %v46
    %v841 = vmul.f32 %v818, %v47
    %v842 = vmul.f32 %v818, %v48
    %v843 = vmul.f32 %v818, %v49
    %v844 = vmul.f32 %v818, %v50
    %v845 = vmul.f32 %v818, %v51
    %v846 = vmul.f32 %v818, %v52
    %v847 = vmul.f32 %v818, %v53
    %v848 = vmul.f32 %v818, %v54
    %v849 = vmul.f32 %v818, %v55
    %v850 = vmul.f32 %v818, %v56
    %s851 = sld [smem:[#allocation2 + $0x3]]
    %v852 = vstv %s851
    %v853 = vmul.f32 %v852, %v25
    %v854 = vmul.f32 %v852, %v26
    %v855 = vmul.f32 %v852, %v27
    %v856 = vmul.f32 %v852, %v28
    %v857 = vmul.f32 %v852, %v29
    %v858 = vmul.f32 %v852, %v30
    %v859 = vmul.f32 %v852, %v31
    %v860 = vmul.f32 %v852, %v32
    %v861 = vmul.f32 %v852, %v33
    %v862 = vmul.f32 %v852, %v34
    %v863 = vmul.f32 %v852, %v35
    %v864 = vmul.f32 %v852, %v36
    %v865 = vmul.f32 %v852, %v37
    %v866 = vmul.f32 %v852, %v38
    %v867 = vmul.f32 %v852, %v39
    %v868 = vmul.f32 %v852, %v40
    %v869 = vmul.f32 %v852, %v41
    %v870 = vmul.f32 %v852, %v42
    %v871 = vmul.f32 %v852, %v43
    %v872 = vmul.f32 %v852, %v44
    %v873 = vmul.f32 %v852, %v45
    %v874 = vmul.f32 %v852, %v46
    %v875 = vmul.f32 %v852, %v47
    %v876 = vmul.f32 %v852, %v48
    %v877 = vmul.f32 %v852, %v49
    %v878 = vmul.f32 %v852, %v50
    %v879 = vmul.f32 %v852, %v51
    %v880 = vmul.f32 %v852, %v52
    %v881 = vmul.f32 %v852, %v53
    %v882 = vmul.f32 %v852, %v54
    %v883 = vmul.f32 %v852, %v55
    %v884 = vmul.f32 %v852, %v56
    %917 = vrot.lane.b32.xlu0 %v853, 127
    %v918 = vpop.permute.xlu0 %917
    %919 = vrot.lane.b32.xlu0 %v854, 127
    %v920 = vpop.permute.xlu0 %919
    %921 = vrot.lane.b32.xlu0 %v855, 127
    %v922 = vpop.permute.xlu0 %921
    %923 = vrot.lane.b32.xlu0 %v856, 127
    %v924 = vpop.permute.xlu0 %923
    %925 = vrot.lane.b32.xlu0 %v857, 127
    %v926 = vpop.permute.xlu0 %925
    %927 = vrot.lane.b32.xlu0 %v858, 127
    %v928 = vpop.permute.xlu0 %927
    %929 = vrot.lane.b32.xlu0 %v859, 127
    %v930 = vpop.permute.xlu0 %929
    %931 = vrot.lane.b32.xlu0 %v860, 127
    %v932 = vpop.permute.xlu0 %931
    %933 = vrot.lane.b32.xlu0 %v861, 127
    %v934 = vpop.permute.xlu0 %933
    %935 = vrot.lane.b32.xlu0 %v862, 127
    %v936 = vpop.permute.xlu0 %935
    %937 = vrot.lane.b32.xlu0 %v863, 127
    %v938 = vpop.permute.xlu0 %937
    %939 = vrot.lane.b32.xlu0 %v864, 127
    %v940 = vpop.permute.xlu0 %939
    %941 = vrot.lane.b32.xlu0 %v865, 127
    %v942 = vpop.permute.xlu0 %941
    %943 = vrot.lane.b32.xlu0 %v866, 127
    %v944 = vpop.permute.xlu0 %943
    %945 = vrot.lane.b32.xlu0 %v867, 127
    %v946 = vpop.permute.xlu0 %945
    %947 = vrot.lane.b32.xlu0 %v868, 127
    %v948 = vpop.permute.xlu0 %947
    %949 = vrot.lane.b32.xlu0 %v869, 127
    %v950 = vpop.permute.xlu0 %949
    %951 = vrot.lane.b32.xlu0 %v870, 127
    %v952 = vpop.permute.xlu0 %951
    %953 = vrot.lane.b32.xlu0 %v871, 127
    %v954 = vpop.permute.xlu0 %953
    %955 = vrot.lane.b32.xlu0 %v872, 127
    %v956 = vpop.permute.xlu0 %955
    %957 = vrot.lane.b32.xlu0 %v873, 127
    %v958 = vpop.permute.xlu0 %957
    %959 = vrot.lane.b32.xlu0 %v874, 127
    %v960 = vpop.permute.xlu0 %959
    %961 = vrot.lane.b32.xlu0 %v875, 127
    %v962 = vpop.permute.xlu0 %961
    %963 = vrot.lane.b32.xlu0 %v876, 127
    %v964 = vpop.permute.xlu0 %963
    %965 = vrot.lane.b32.xlu0 %v877, 127
    %v966 = vpop.permute.xlu0 %965
    %967 = vrot.lane.b32.xlu0 %v878, 127
    %v968 = vpop.permute.xlu0 %967
    %969 = vrot.lane.b32.xlu0 %v879, 127
    %v970 = vpop.permute.xlu0 %969
    %971 = vrot.lane.b32.xlu0 %v880, 127
    %v972 = vpop.permute.xlu0 %971
    %973 = vrot.lane.b32.xlu0 %v881, 127
    %v974 = vpop.permute.xlu0 %973
    %975 = vrot.lane.b32.xlu0 %v882, 127
    %v976 = vpop.permute.xlu0 %975
    %977 = vrot.lane.b32.xlu0 %v883, 127
    %v978 = vpop.permute.xlu0 %977
    %979 = vrot.lane.b32.xlu0 %v884, 127
    %v980 = vpop.permute.xlu0 %979
    %v1013 = vadd.f32 %v819, %v918
    %v1014 = vadd.f32 %v820, %v920
    %v1015 = vadd.f32 %v821, %v922
    %v1016 = vadd.f32 %v822, %v924
    %v1017 = vadd.f32 %v823, %v926
    %v1018 = vadd.f32 %v824, %v928
    %v1019 = vadd.f32 %v825, %v930
    %v1020 = vadd.f32 %v826, %v932
    %v1021 = vadd.f32 %v827, %v934
    %v1022 = vadd.f32 %v828, %v936
    %v1023 = vadd.f32 %v829, %v938
    %v1024 = vadd.f32 %v830, %v940
    %v1025 = vadd.f32 %v831, %v942
    %v1026 = vadd.f32 %v832, %v944
    %v1027 = vadd.f32 %v833, %v946
    %v1028 = vadd.f32 %v834, %v948
    %v1029 = vadd.f32 %v835, %v950
    %v1030 = vadd.f32 %v836, %v952
    %v1031 = vadd.f32 %v837, %v954
    %v1032 = vadd.f32 %v838, %v956
    %v1033 = vadd.f32 %v839, %v958
    %v1034 = vadd.f32 %v840, %v960
    %v1035 = vadd.f32 %v841, %v962
    %v1036 = vadd.f32 %v842, %v964
    %v1037 = vadd.f32 %v843, %v966
    %v1038 = vadd.f32 %v844, %v968
    %v1039 = vadd.f32 %v845, %v970
    %v1040 = vadd.f32 %v846, %v972
    %v1041 = vadd.f32 %v847, %v974
    %v1042 = vadd.f32 %v848, %v976
    %v1043 = vadd.f32 %v849, %v978
    %v1044 = vadd.f32 %v850, %v980
    %s1045 = sld [smem:[#allocation2 + $0x9]]
    %v1046 = vstv %s1045
    %v1047 = vadd.f32 %v1013, %v1046
    %v1048 = vadd.f32 %v1014, %v1046
    %v1049 = vadd.f32 %v1015, %v1046
    %v1050 = vadd.f32 %v1016, %v1046
    %v1051 = vadd.f32 %v1017, %v1046
    %v1052 = vadd.f32 %v1018, %v1046
    %v1053 = vadd.f32 %v1019, %v1046
    %v1054 = vadd.f32 %v1020, %v1046
    %v1055 = vadd.f32 %v1021, %v1046
    %v1056 = vadd.f32 %v1022, %v1046
    %v1057 = vadd.f32 %v1023, %v1046
    %v1058 = vadd.f32 %v1024, %v1046
    %v1059 = vadd.f32 %v1025, %v1046
    %v1060 = vadd.f32 %v1026, %v1046
    %v1061 = vadd.f32 %v1027, %v1046
    %v1062 = vadd.f32 %v1028, %v1046
    %v1063 = vadd.f32 %v1029, %v1046
    %v1064 = vadd.f32 %v1030, %v1046
    %v1065 = vadd.f32 %v1031, %v1046
    %v1066 = vadd.f32 %v1032, %v1046
    %v1067 = vadd.f32 %v1033, %v1046
    %v1068 = vadd.f32 %v1034, %v1046
    %v1069 = vadd.f32 %v1035, %v1046
    %v1070 = vadd.f32 %v1036, %v1046
    %v1071 = vadd.f32 %v1037, %v1046
    %v1072 = vadd.f32 %v1038, %v1046
    %v1073 = vadd.f32 %v1039, %v1046
    %v1074 = vadd.f32 %v1040, %v1046
    %v1075 = vadd.f32 %v1041, %v1046
    %v1076 = vadd.f32 %v1042, %v1046
    %v1077 = vadd.f32 %v1043, %v1046
    %v1078 = vadd.f32 %v1044, %v1046
    %v1079 = vsel %vm318, %v1047, 0.0
    %v1080 = vsel %vm318, %v1048, 0.0
    %v1081 = vadd.f32 %v1079, %v1080
    %v1082 = vsel %vm318, %v1049, 0.0
    %v1083 = vadd.f32 %v1081, %v1082
    %v1084 = vsel %vm318, %v1050, 0.0
    %v1085 = vadd.f32 %v1083, %v1084
    %v1086 = vsel %vm318, %v1051, 0.0
    %v1087 = vadd.f32 %v1085, %v1086
    %v1088 = vsel %vm318, %v1052, 0.0
    %v1089 = vadd.f32 %v1087, %v1088
    %v1090 = vsel %vm318, %v1053, 0.0
    %v1091 = vadd.f32 %v1089, %v1090
    %v1092 = vsel %vm318, %v1054, 0.0
    %v1093 = vadd.f32 %v1091, %v1092
    %v1094 = vsel %vm318, %v1055, 0.0
    %v1095 = vadd.f32 %v1093, %v1094
    %v1096 = vsel %vm318, %v1056, 0.0
    %v1097 = vadd.f32 %v1095, %v1096
    %v1098 = vsel %vm318, %v1057, 0.0
    %v1099 = vadd.f32 %v1097, %v1098
    %v1100 = vsel %vm318, %v1058, 0.0
    %v1101 = vadd.f32 %v1099, %v1100
    %v1102 = vsel %vm318, %v1059, 0.0
    %v1103 = vadd.f32 %v1101, %v1102
    %v1104 = vsel %vm318, %v1060, 0.0
    %v1105 = vadd.f32 %v1103, %v1104
    %v1106 = vsel %vm318, %v1061, 0.0
    %v1107 = vadd.f32 %v1105, %v1106
    %v1108 = vsel %vm318, %v1062, 0.0
    %v1109 = vadd.f32 %v1107, %v1108
    %v1110 = vsel %vm318, %v1063, 0.0
    %v1111 = vadd.f32 %v1109, %v1110
    %v1112 = vsel %vm318, %v1064, 0.0
    %v1113 = vadd.f32 %v1111, %v1112
    %v1114 = vsel %vm318, %v1065, 0.0
    %v1115 = vadd.f32 %v1113, %v1114
    %v1116 = vsel %vm318, %v1066, 0.0
    %v1117 = vadd.f32 %v1115, %v1116
    %v1118 = vsel %vm318, %v1067, 0.0
    %v1119 = vadd.f32 %v1117, %v1118
    %v1120 = vsel %vm318, %v1068, 0.0
    %v1121 = vadd.f32 %v1119, %v1120
    %v1122 = vsel %vm318, %v1069, 0.0
    %v1123 = vadd.f32 %v1121, %v1122
    %v1124 = vsel %vm318, %v1070, 0.0
    %v1125 = vadd.f32 %v1123, %v1124
    %v1126 = vsel %vm318, %v1071, 0.0
    %v1127 = vadd.f32 %v1125, %v1126
    %v1128 = vsel %vm318, %v1072, 0.0
    %v1129 = vadd.f32 %v1127, %v1128
    %v1130 = vsel %vm318, %v1073, 0.0
    %v1131 = vadd.f32 %v1129, %v1130
    %v1132 = vsel %vm318, %v1074, 0.0
    %v1133 = vadd.f32 %v1131, %v1132
    %v1134 = vsel %vm318, %v1075, 0.0
    %v1135 = vadd.f32 %v1133, %v1134
    %v1136 = vsel %vm318, %v1076, 0.0
    %v1137 = vadd.f32 %v1135, %v1136
    %v1138 = vsel %vm318, %v1077, 0.0
    %v1139 = vadd.f32 %v1137, %v1138
    %v1140 = vsel %vm318, %v1078, 0.0
    %v1141 = vadd.f32 %v1139, %v1140
    %v1142 = vrot.slane %v1141, 4
    %v1143 = vadd.f32 %v1141, %v1142
    %v1144 = vrot.slane %v1143, 2
    %v1145 = vadd.f32 %v1143, %v1144
    %v1146 = vrot.slane %v1145, 1
    %v1147 = vadd.f32 %v1145, %v1146
    %v1148 = vmul.f32 %v1147, 0.00390625
    %v1149 = vsub.f32 %v1047, %v1148
    %v1150 = vsub.f32 %v1048, %v1148
    %v1151 = vsub.f32 %v1049, %v1148
    %v1152 = vsub.f32 %v1050, %v1148
    %v1153 = vsub.f32 %v1051, %v1148
    %v1154 = vsub.f32 %v1052, %v1148
    %v1155 = vsub.f32 %v1053, %v1148
    %v1156 = vsub.f32 %v1054, %v1148
    %v1157 = vsub.f32 %v1055, %v1148
    %v1158 = vsub.f32 %v1056, %v1148
    %v1159 = vsub.f32 %v1057, %v1148
    %v1160 = vsub.f32 %v1058, %v1148
    %v1161 = vsub.f32 %v1059, %v1148
    %v1162 = vsub.f32 %v1060, %v1148
    %v1163 = vsub.f32 %v1061, %v1148
    %v1164 = vsub.f32 %v1062, %v1148
    %v1165 = vsub.f32 %v1063, %v1148
    %v1166 = vsub.f32 %v1064, %v1148
    %v1167 = vsub.f32 %v1065, %v1148
    %v1168 = vsub.f32 %v1066, %v1148
    %v1169 = vsub.f32 %v1067, %v1148
    %v1170 = vsub.f32 %v1068, %v1148
    %v1171 = vsub.f32 %v1069, %v1148
    %v1172 = vsub.f32 %v1070, %v1148
    %v1173 = vsub.f32 %v1071, %v1148
    %v1174 = vsub.f32 %v1072, %v1148
    %v1175 = vsub.f32 %v1073, %v1148
    %v1176 = vsub.f32 %v1074, %v1148
    %v1177 = vsub.f32 %v1075, %v1148
    %v1178 = vsub.f32 %v1076, %v1148
    %v1179 = vsub.f32 %v1077, %v1148
    %v1180 = vsub.f32 %v1078, %v1148
    %v1181 = vmul.f32 %v1149, %v1149
    %v1182 = vmul.f32 %v1150, %v1150
    %v1183 = vmul.f32 %v1151, %v1151
    %v1184 = vmul.f32 %v1152, %v1152
    %v1185 = vmul.f32 %v1153, %v1153
    %v1186 = vmul.f32 %v1154, %v1154
    %v1187 = vmul.f32 %v1155, %v1155
    %v1188 = vmul.f32 %v1156, %v1156
    %v1189 = vmul.f32 %v1157, %v1157
    %v1190 = vmul.f32 %v1158, %v1158
    %v1191 = vmul.f32 %v1159, %v1159
    %v1192 = vmul.f32 %v1160, %v1160
    %v1193 = vmul.f32 %v1161, %v1161
    %v1194 = vmul.f32 %v1162, %v1162
    %v1195 = vmul.f32 %v1163, %v1163
    %v1196 = vmul.f32 %v1164, %v1164
    %v1197 = vmul.f32 %v1165, %v1165
    %v1198 = vmul.f32 %v1166, %v1166
    %v1199 = vmul.f32 %v1167, %v1167
    %v1200 = vmul.f32 %v1168, %v1168
    %v1201 = vmul.f32 %v1169, %v1169
    %v1202 = vmul.f32 %v1170, %v1170
    %v1203 = vmul.f32 %v1171, %v1171
    %v1204 = vmul.f32 %v1172, %v1172
    %v1205 = vmul.f32 %v1173, %v1173
    %v1206 = vmul.f32 %v1174, %v1174
    %v1207 = vmul.f32 %v1175, %v1175
    %v1208 = vmul.f32 %v1176, %v1176
    %v1209 = vmul.f32 %v1177, %v1177
    %v1210 = vmul.f32 %v1178, %v1178
    %v1211 = vmul.f32 %v1179, %v1179
    %v1212 = vmul.f32 %v1180, %v1180
    %v1213 = vsel %vm318, %v1181, 0.0
    %v1214 = vsel %vm318, %v1182, 0.0
    %v1215 = vadd.f32 %v1213, %v1214
    %v1216 = vsel %vm318, %v1183, 0.0
    %v1217 = vadd.f32 %v1215, %v1216
    %v1218 = vsel %vm318, %v1184, 0.0
    %v1219 = vadd.f32 %v1217, %v1218
    %v1220 = vsel %vm318, %v1185, 0.0
    %v1221 = vadd.f32 %v1219, %v1220
    %v1222 = vsel %vm318, %v1186, 0.0
    %v1223 = vadd.f32 %v1221, %v1222
    %v1224 = vsel %vm318, %v1187, 0.0
    %v1225 = vadd.f32 %v1223, %v1224
    %v1226 = vsel %vm318, %v1188, 0.0
    %v1227 = vadd.f32 %v1225, %v1226
    %v1228 = vsel %vm318, %v1189, 0.0
    %v1229 = vadd.f32 %v1227, %v1228
    %v1230 = vsel %vm318, %v1190, 0.0
    %v1231 = vadd.f32 %v1229, %v1230
    %v1232 = vsel %vm318, %v1191, 0.0
    %v1233 = vadd.f32 %v1231, %v1232
    %v1234 = vsel %vm318, %v1192, 0.0
    %v1235 = vadd.f32 %v1233, %v1234
    %v1236 = vsel %vm318, %v1193, 0.0
    %v1237 = vadd.f32 %v1235, %v1236
    %v1238 = vsel %vm318, %v1194, 0.0
    %v1239 = vadd.f32 %v1237, %v1238
    %v1240 = vsel %vm318, %v1195, 0.0
    %v1241 = vadd.f32 %v1239, %v1240
    %v1242 = vsel %vm318, %v1196, 0.0
    %v1243 = vadd.f32 %v1241, %v1242
    %v1244 = vsel %vm318, %v1197, 0.0
    %v1245 = vadd.f32 %v1243, %v1244
    %v1246 = vsel %vm318, %v1198, 0.0
    %v1247 = vadd.f32 %v1245, %v1246
    %v1248 = vsel %vm318, %v1199, 0.0
    %v1249 = vadd.f32 %v1247, %v1248
    %v1250 = vsel %vm318, %v1200, 0.0
    %v1251 = vadd.f32 %v1249, %v1250
    %v1252 = vsel %vm318, %v1201, 0.0
    %v1253 = vadd.f32 %v1251, %v1252
    %v1254 = vsel %vm318, %v1202, 0.0
    %v1255 = vadd.f32 %v1253, %v1254
    %v1256 = vsel %vm318, %v1203, 0.0
    %v1257 = vadd.f32 %v1255, %v1256
    %v1258 = vsel %vm318, %v1204, 0.0
    %v1259 = vadd.f32 %v1257, %v1258
    %v1260 = vsel %vm318, %v1205, 0.0
    %v1261 = vadd.f32 %v1259, %v1260
    %v1262 = vsel %vm318, %v1206, 0.0
    %v1263 = vadd.f32 %v1261, %v1262
    %v1264 = vsel %vm318, %v1207, 0.0
    %v1265 = vadd.f32 %v1263, %v1264
    %v1266 = vsel %vm318, %v1208, 0.0
    %v1267 = vadd.f32 %v1265, %v1266
    %v1268 = vsel %vm318, %v1209, 0.0
    %v1269 = vadd.f32 %v1267, %v1268
    %v1270 = vsel %vm318, %v1210, 0.0
    %v1271 = vadd.f32 %v1269, %v1270
    %v1272 = vsel %vm318, %v1211, 0.0
    %v1273 = vadd.f32 %v1271, %v1272
    %v1274 = vsel %vm318, %v1212, 0.0
    %v1275 = vadd.f32 %v1273, %v1274
    %v1276 = vrot.slane %v1275, 4
    %v1277 = vadd.f32 %v1275, %v1276
    %v1278 = vrot.slane %v1277, 2
    %v1279 = vadd.f32 %v1277, %v1278
    %v1280 = vrot.slane %v1279, 1
    %v1281 = vadd.f32 %v1279, %v1280
    %v1282 = vmul.f32 %v1281, 0.00390625
    %s1283 = sld [smem:[#allocation2 + $0xd]]
    %v1284 = vadd.f32 %v1282, 1e-05
    %v1285 = vrsqrt.pop %v1284
    %v1286 = vmul.f32 %v1149, %v1285
    %v1287 = vmul.f32 %v1150, %v1285
    %v1288 = vmul.f32 %v1151, %v1285
    %v1289 = vmul.f32 %v1152, %v1285
    %v1290 = vmul.f32 %v1153, %v1285
    %v1291 = vmul.f32 %v1154, %v1285
    %v1292 = vmul.f32 %v1155, %v1285
    %v1293 = vmul.f32 %v1156, %v1285
    %v1294 = vmul.f32 %v1157, %v1285
    %v1295 = vmul.f32 %v1158, %v1285
    %v1296 = vmul.f32 %v1159, %v1285
    %v1297 = vmul.f32 %v1160, %v1285
    %v1298 = vmul.f32 %v1161, %v1285
    %v1299 = vmul.f32 %v1162, %v1285
    %v1300 = vmul.f32 %v1163, %v1285
    %v1301 = vmul.f32 %v1164, %v1285
    %v1302 = vmul.f32 %v1165, %v1285
    %v1303 = vmul.f32 %v1166, %v1285
    %v1304 = vmul.f32 %v1167, %v1285
    %v1305 = vmul.f32 %v1168, %v1285
    %v1306 = vmul.f32 %v1169, %v1285
    %v1307 = vmul.f32 %v1170, %v1285
    %v1308 = vmul.f32 %v1171, %v1285
    %v1309 = vmul.f32 %v1172, %v1285
    %v1310 = vmul.f32 %v1173, %v1285
    %v1311 = vmul.f32 %v1174, %v1285
    %v1312 = vmul.f32 %v1175, %v1285
    %v1313 = vmul.f32 %v1176, %v1285
    %v1314 = vmul.f32 %v1177, %v1285
    %v1315 = vmul.f32 %v1178, %v1285
    %v1316 = vmul.f32 %v1179, %v1285
    %v1317 = vmul.f32 %v1180, %v1285
    %v1318 = vstv %s1283
    %v1319 = vmul.f32 %v1318, %v1286
    %v1320 = vmul.f32 %v1318, %v1287
    %v1321 = vmul.f32 %v1318, %v1288
    %v1322 = vmul.f32 %v1318, %v1289
    %v1323 = vmul.f32 %v1318, %v1290
    %v1324 = vmul.f32 %v1318, %v1291
    %v1325 = vmul.f32 %v1318, %v1292
    %v1326 = vmul.f32 %v1318, %v1293
    %v1327 = vmul.f32 %v1318, %v1294
    %v1328 = vmul.f32 %v1318, %v1295
    %v1329 = vmul.f32 %v1318, %v1296
    %v1330 = vmul.f32 %v1318, %v1297
    %v1331 = vmul.f32 %v1318, %v1298
    %v1332 = vmul.f32 %v1318, %v1299
    %v1333 = vmul.f32 %v1318, %v1300
    %v1334 = vmul.f32 %v1318, %v1301
    %v1335 = vmul.f32 %v1318, %v1302
    %v1336 = vmul.f32 %v1318, %v1303
    %v1337 = vmul.f32 %v1318, %v1304
    %v1338 = vmul.f32 %v1318, %v1305
    %v1339 = vmul.f32 %v1318, %v1306
    %v1340 = vmul.f32 %v1318, %v1307
    %v1341 = vmul.f32 %v1318, %v1308
    %v1342 = vmul.f32 %v1318, %v1309
    %v1343 = vmul.f32 %v1318, %v1310
    %v1344 = vmul.f32 %v1318, %v1311
    %v1345 = vmul.f32 %v1318, %v1312
    %v1346 = vmul.f32 %v1318, %v1313
    %v1347 = vmul.f32 %v1318, %v1314
    %v1348 = vmul.f32 %v1318, %v1315
    %v1349 = vmul.f32 %v1318, %v1316
    %v1350 = vmul.f32 %v1318, %v1317
    %s1351 = sld [smem:[#allocation2 + $0x11]]
    %v1352 = vstv %s1351
    %v1353 = vadd.f32 %v1319, %v1352
    %v1354 = vadd.f32 %v1320, %v1352
    %v1355 = vadd.f32 %v1321, %v1352
    %v1356 = vadd.f32 %v1322, %v1352
    %v1357 = vadd.f32 %v1323, %v1352
    %v1358 = vadd.f32 %v1324, %v1352
    %v1359 = vadd.f32 %v1325, %v1352
    %v1360 = vadd.f32 %v1326, %v1352
    %v1361 = vadd.f32 %v1327, %v1352
    %v1362 = vadd.f32 %v1328, %v1352
    %v1363 = vadd.f32 %v1329, %v1352
    %v1364 = vadd.f32 %v1330, %v1352
    %v1365 = vadd.f32 %v1331, %v1352
    %v1366 = vadd.f32 %v1332, %v1352
    %v1367 = vadd.f32 %v1333, %v1352
    %v1368 = vadd.f32 %v1334, %v1352
    %v1369 = vadd.f32 %v1335, %v1352
    %v1370 = vadd.f32 %v1336, %v1352
    %v1371 = vadd.f32 %v1337, %v1352
    %v1372 = vadd.f32 %v1338, %v1352
    %v1373 = vadd.f32 %v1339, %v1352
    %v1374 = vadd.f32 %v1340, %v1352
    %v1375 = vadd.f32 %v1341, %v1352
    %v1376 = vadd.f32 %v1342, %v1352
    %v1377 = vadd.f32 %v1343, %v1352
    %v1378 = vadd.f32 %v1344, %v1352
    %v1379 = vadd.f32 %v1345, %v1352
    %v1380 = vadd.f32 %v1346, %v1352
    %v1381 = vadd.f32 %v1347, %v1352
    %v1382 = vadd.f32 %v1348, %v1352
    %v1383 = vadd.f32 %v1349, %v1352
    %v1384 = vadd.f32 %v1350, %v1352
    %v1385 = vxor.u32 %v1353, 2147483648
    %v1386 = vxor.u32 %v1354, 2147483648
    %v1387 = vxor.u32 %v1355, 2147483648
    %v1388 = vxor.u32 %v1356, 2147483648
    %v1389 = vxor.u32 %v1357, 2147483648
    %v1390 = vxor.u32 %v1358, 2147483648
    %v1391 = vxor.u32 %v1359, 2147483648
    %v1392 = vxor.u32 %v1360, 2147483648
    %v1393 = vxor.u32 %v1361, 2147483648
    %v1394 = vxor.u32 %v1362, 2147483648
    %v1395 = vxor.u32 %v1363, 2147483648
    %v1396 = vxor.u32 %v1364, 2147483648
    %v1397 = vxor.u32 %v1365, 2147483648
    %v1398 = vxor.u32 %v1366, 2147483648
    %v1399 = vxor.u32 %v1367, 2147483648
    %v1400 = vxor.u32 %v1368, 2147483648
    %v1401 = vxor.u32 %v1369, 2147483648
    %v1402 = vxor.u32 %v1370, 2147483648
    %v1403 = vxor.u32 %v1371, 2147483648
    %v1404 = vxor.u32 %v1372, 2147483648
    %v1405 = vxor.u32 %v1373, 2147483648
    %v1406 = vxor.u32 %v1374, 2147483648
    %v1407 = vxor.u32 %v1375, 2147483648
    %v1408 = vxor.u32 %v1376, 2147483648
    %v1409 = vxor.u32 %v1377, 2147483648
    %v1410 = vxor.u32 %v1378, 2147483648
    %v1411 = vxor.u32 %v1379, 2147483648
    %v1412 = vxor.u32 %v1380, 2147483648
    %v1413 = vxor.u32 %v1381, 2147483648
    %v1414 = vxor.u32 %v1382, 2147483648
    %v1415 = vxor.u32 %v1383, 2147483648
    %v1416 = vxor.u32 %v1384, 2147483648
    %v1417 = vmul.f32 %v1385, 1.442695
    %v1418 = vpow.pop %v1417
    %v1419 = vmul.f32 %v1386, 1.442695
    %v1420 = vpow.pop %v1419
    %v1421 = vmul.f32 %v1387, 1.442695
    %v1422 = vpow.pop %v1421
    %v1423 = vmul.f32 %v1388, 1.442695
    %v1424 = vpow.pop %v1423
    %v1425 = vmul.f32 %v1389, 1.442695
    %v1426 = vpow.pop %v1425
    %v1427 = vmul.f32 %v1390, 1.442695
    %v1428 = vpow.pop %v1427
    %v1429 = vmul.f32 %v1391, 1.442695
    %v1430 = vpow.pop %v1429
    %v1431 = vmul.f32 %v1392, 1.442695
    %v1432 = vpow.pop %v1431
    %v1433 = vmul.f32 %v1393, 1.442695
    %v1434 = vpow.pop %v1433
    %v1435 = vmul.f32 %v1394, 1.442695
    %v1436 = vpow.pop %v1435
    %v1437 = vmul.f32 %v1395, 1.442695
    %v1438 = vpow.pop %v1437
    %v1439 = vmul.f32 %v1396, 1.442695
    %v1440 = vpow.pop %v1439
    %v1441 = vmul.f32 %v1397, 1.442695
    %v1442 = vpow.pop %v1441
    %v1443 = vmul.f32 %v1398, 1.442695
    %v1444 = vpow.pop %v1443
    %v1445 = vmul.f32 %v1399, 1.442695
    %v1446 = vpow.pop %v1445
    %v1447 = vmul.f32 %v1400, 1.442695
    %v1448 = vpow.pop %v1447
    %v1449 = vmul.f32 %v1401, 1.442695
    %v1450 = vpow.pop %v1449
    %v1451 = vmul.f32 %v1402, 1.442695
    %v1452 = vpow.pop %v1451
    %v1453 = vmul.f32 %v1403, 1.442695
    %v1454 = vpow.pop %v1453
    %v1455 = vmul.f32 %v1404, 1.442695
    %v1456 = vpow.pop %v1455
    %v1457 = vmul.f32 %v1405, 1.442695
    %v1458 = vpow.pop %v1457
    %v1459 = vmul.f32 %v1406, 1.442695
    %v1460 = vpow.pop %v1459
    %v1461 = vmul.f32 %v1407, 1.442695
    %v1462 = vpow.pop %v1461
    %v1463 = vmul.f32 %v1408, 1.442695
    %v1464 = vpow.pop %v1463
    %v1465 = vmul.f32 %v1409, 1.442695
    %v1466 = vpow.pop %v1465
    %v1467 = vmul.f32 %v1410, 1.442695
    %v1468 = vpow.pop %v1467
    %v1469 = vmul.f32 %v1411, 1.442695
    %v1470 = vpow.pop %v1469
    %v1471 = vmul.f32 %v1412, 1.442695
    %v1472 = vpow.pop %v1471
    %v1473 = vmul.f32 %v1413, 1.442695
    %v1474 = vpow.pop %v1473
    %v1475 = vmul.f32 %v1414, 1.442695
    %v1476 = vpow.pop %v1475
    %v1477 = vmul.f32 %v1415, 1.442695
    %v1478 = vpow.pop %v1477
    %v1479 = vmul.f32 %v1416, 1.442695
    %v1480 = vpow.pop %v1479
    %v1481 = vadd.f32 %v1418, 1.0
    %v1482 = vadd.f32 %v1420, 1.0
    %v1483 = vadd.f32 %v1422, 1.0
    %v1484 = vadd.f32 %v1424, 1.0
    %v1485 = vadd.f32 %v1426, 1.0
    %v1486 = vadd.f32 %v1428, 1.0
    %v1487 = vadd.f32 %v1430, 1.0
    %v1488 = vadd.f32 %v1432, 1.0
    %v1489 = vadd.f32 %v1434, 1.0
    %v1490 = vadd.f32 %v1436, 1.0
    %v1491 = vadd.f32 %v1438, 1.0
    %v1492 = vadd.f32 %v1440, 1.0
    %v1493 = vadd.f32 %v1442, 1.0
    %v1494 = vadd.f32 %v1444, 1.0
    %v1495 = vadd.f32 %v1446, 1.0
    %v1496 = vadd.f32 %v1448, 1.0
    %v1497 = vadd.f32 %v1450, 1.0
    %v1498 = vadd.f32 %v1452, 1.0
    %v1499 = vadd.f32 %v1454, 1.0
    %v1500 = vadd.f32 %v1456, 1.0
    %v1501 = vadd.f32 %v1458, 1.0
    %v1502 = vadd.f32 %v1460, 1.0
    %v1503 = vadd.f32 %v1462, 1.0
    %v1504 = vadd.f32 %v1464, 1.0
    %v1505 = vadd.f32 %v1466, 1.0
    %v1506 = vadd.f32 %v1468, 1.0
    %v1507 = vadd.f32 %v1470, 1.0
    %v1508 = vadd.f32 %v1472, 1.0
    %v1509 = vadd.f32 %v1474, 1.0
    %v1510 = vadd.f32 %v1476, 1.0
    %v1511 = vadd.f32 %v1478, 1.0
    %v1512 = vadd.f32 %v1480, 1.0
    %v1513 = vrcp.pop %v1481
    %v1514 = vmul.f32 1.0, %v1513
    %v1515 = vrcp.pop %v1482
    %v1516 = vmul.f32 1.0, %v1515
    %v1517 = vrcp.pop %v1483
    %v1518 = vmul.f32 1.0, %v1517
    %v1519 = vrcp.pop %v1484
    %v1520 = vmul.f32 1.0, %v1519
    %v1521 = vrcp.pop %v1485
    %v1522 = vmul.f32 1.0, %v1521
    %v1523 = vrcp.pop %v1486
    %v1524 = vmul.f32 1.0, %v1523
    %v1525 = vrcp.pop %v1487
    %v1526 = vmul.f32 1.0, %v1525
    %v1527 = vrcp.pop %v1488
    %v1528 = vmul.f32 1.0, %v1527
    %v1529 = vrcp.pop %v1489
    %v1530 = vmul.f32 1.0, %v1529
    %v1531 = vrcp.pop %v1490
    %v1532 = vmul.f32 1.0, %v1531
    %v1533 = vrcp.pop %v1491
    %v1534 = vmul.f32 1.0, %v1533
    %v1535 = vrcp.pop %v1492
    %v1536 = vmul.f32 1.0, %v1535
    %v1537 = vrcp.pop %v1493
    %v1538 = vmul.f32 1.0, %v1537
    %v1539 = vrcp.pop %v1494
    %v1540 = vmul.f32 1.0, %v1539
    %v1541 = vrcp.pop %v1495
    %v1542 = vmul.f32 1.0, %v1541
    %v1543 = vrcp.pop %v1496
    %v1544 = vmul.f32 1.0, %v1543
    %v1545 = vrcp.pop %v1497
    %v1546 = vmul.f32 1.0, %v1545
    %v1547 = vrcp.pop %v1498
    %v1548 = vmul.f32 1.0, %v1547
    %v1549 = vrcp.pop %v1499
    %v1550 = vmul.f32 1.0, %v1549
    %v1551 = vrcp.pop %v1500
    %v1552 = vmul.f32 1.0, %v1551
    %v1553 = vrcp.pop %v1501
    %v1554 = vmul.f32 1.0, %v1553
    %v1555 = vrcp.pop %v1502
    %v1556 = vmul.f32 1.0, %v1555
    %v1557 = vrcp.pop %v1503
    %v1558 = vmul.f32 1.0, %v1557
    %v1559 = vrcp.pop %v1504
    %v1560 = vmul.f32 1.0, %v1559
    %v1561 = vrcp.pop %v1505
    %v1562 = vmul.f32 1.0, %v1561
    %v1563 = vrcp.pop %v1506
    %v1564 = vmul.f32 1.0, %v1563
    %v1565 = vrcp.pop %v1507
    %v1566 = vmul.f32 1.0, %v1565
    %v1567 = vrcp.pop %v1508
    %v1568 = vmul.f32 1.0, %v1567
    %v1569 = vrcp.pop %v1509
    %v1570 = vmul.f32 1.0, %v1569
    %v1571 = vrcp.pop %v1510
    %v1572 = vmul.f32 1.0, %v1571
    %v1573 = vrcp.pop %v1511
    %v1574 = vmul.f32 1.0, %v1573
    %v1575 = vrcp.pop %v1512
    %v1576 = vmul.f32 1.0, %v1575
    %s1577 = sld [smem:[#allocation2 + $0x4]]
    %v1578 = vstv %s1577
    %v1579 = vmul.f32 %v1578, %v25
    %v1580 = vmul.f32 %v1578, %v26
    %v1581 = vmul.f32 %v1578, %v27
    %v1582 = vmul.f32 %v1578, %v28
    %v1583 = vmul.f32 %v1578, %v29
    %v1584 = vmul.f32 %v1578, %v30
    %v1585 = vmul.f32 %v1578, %v31
    %v1586 = vmul.f32 %v1578, %v32
    %v1587 = vmul.f32 %v1578, %v33
    %v1588 = vmul.f32 %v1578, %v34
    %v1589 = vmul.f32 %v1578, %v35
    %v1590 = vmul.f32 %v1578, %v36
    %v1591 = vmul.f32 %v1578, %v37
    %v1592 = vmul.f32 %v1578, %v38
    %v1593 = vmul.f32 %v1578, %v39
    %v1594 = vmul.f32 %v1578, %v40
    %v1595 = vmul.f32 %v1578, %v41
    %v1596 = vmul.f32 %v1578, %v42
    %v1597 = vmul.f32 %v1578, %v43
    %v1598 = vmul.f32 %v1578, %v44
    %v1599 = vmul.f32 %v1578, %v45
    %v1600 = vmul.f32 %v1578, %v46
    %v1601 = vmul.f32 %v1578, %v47
    %v1602 = vmul.f32 %v1578, %v48
    %v1603 = vmul.f32 %v1578, %v49
    %v1604 = vmul.f32 %v1578, %v50
    %v1605 = vmul.f32 %v1578, %v51
    %v1606 = vmul.f32 %v1578, %v52
    %v1607 = vmul.f32 %v1578, %v53
    %v1608 = vmul.f32 %v1578, %v54
    %v1609 = vmul.f32 %v1578, %v55
    %v1610 = vmul.f32 %v1578, %v56
    %s1611 = sld [smem:[#allocation2 + $0x5]]
    %v1612 = vstv %s1611
    %v1613 = vmul.f32 %v1612, %v25
    %v1614 = vmul.f32 %v1612, %v26
    %v1615 = vmul.f32 %v1612, %v27
    %v1616 = vmul.f32 %v1612, %v28
    %v1617 = vmul.f32 %v1612, %v29
    %v1618 = vmul.f32 %v1612, %v30
    %v1619 = vmul.f32 %v1612, %v31
    %v1620 = vmul.f32 %v1612, %v32
    %v1621 = vmul.f32 %v1612, %v33
    %v1622 = vmul.f32 %v1612, %v34
    %v1623 = vmul.f32 %v1612, %v35
    %v1624 = vmul.f32 %v1612, %v36
    %v1625 = vmul.f32 %v1612, %v37
    %v1626 = vmul.f32 %v1612, %v38
    %v1627 = vmul.f32 %v1612, %v39
    %v1628 = vmul.f32 %v1612, %v40
    %v1629 = vmul.f32 %v1612, %v41
    %v1630 = vmul.f32 %v1612, %v42
    %v1631 = vmul.f32 %v1612, %v43
    %v1632 = vmul.f32 %v1612, %v44
    %v1633 = vmul.f32 %v1612, %v45
    %v1634 = vmul.f32 %v1612, %v46
    %v1635 = vmul.f32 %v1612, %v47
    %v1636 = vmul.f32 %v1612, %v48
    %v1637 = vmul.f32 %v1612, %v49
    %v1638 = vmul.f32 %v1612, %v50
    %v1639 = vmul.f32 %v1612, %v51
    %v1640 = vmul.f32 %v1612, %v52
    %v1641 = vmul.f32 %v1612, %v53
    %v1642 = vmul.f32 %v1612, %v54
    %v1643 = vmul.f32 %v1612, %v55
    %v1644 = vmul.f32 %v1612, %v56
    %1677 = vrot.lane.b32.xlu0 %v1613, 127
    %v1678 = vpop.permute.xlu0 %1677
    %1679 = vrot.lane.b32.xlu0 %v1614, 127
    %v1680 = vpop.permute.xlu0 %1679
    %1681 = vrot.lane.b32.xlu0 %v1615, 127
    %v1682 = vpop.permute.xlu0 %1681
    %1683 = vrot.lane.b32.xlu0 %v1616, 127
    %v1684 = vpop.permute.xlu0 %1683
    %1685 = vrot.lane.b32.xlu0 %v1617, 127
    %v1686 = vpop.permute.xlu0 %1685
    %1687 = vrot.lane.b32.xlu0 %v1618, 127
    %v1688 = vpop.permute.xlu0 %1687
    %1689 = vrot.lane.b32.xlu0 %v1619, 127
    %v1690 = vpop.permute.xlu0 %1689
    %1691 = vrot.lane.b32.xlu0 %v1620, 127
    %v1692 = vpop.permute.xlu0 %1691
    %1693 = vrot.lane.b32.xlu0 %v1621, 127
    %v1694 = vpop.permute.xlu0 %1693
    %1695 = vrot.lane.b32.xlu0 %v1622, 127
    %v1696 = vpop.permute.xlu0 %1695
    %1697 = vrot.lane.b32.xlu0 %v1623, 127
    %v1698 = vpop.permute.xlu0 %1697
    %1699 = vrot.lane.b32.xlu0 %v1624, 127
    %v1700 = vpop.permute.xlu0 %1699
    %1701 = vrot.lane.b32.xlu0 %v1625, 127
    %v1702 = vpop.permute.xlu0 %1701
    %1703 = vrot.lane.b32.xlu0 %v1626, 127
    %v1704 = vpop.permute.xlu0 %1703
    %1705 = vrot.lane.b32.xlu0 %v1627, 127
    %v1706 = vpop.permute.xlu0 %1705
    %1707 = vrot.lane.b32.xlu0 %v1628, 127
    %v1708 = vpop.permute.xlu0 %1707
    %1709 = vrot.lane.b32.xlu0 %v1629, 127
    %v1710 = vpop.permute.xlu0 %1709
    %1711 = vrot.lane.b32.xlu0 %v1630, 127
    %v1712 = vpop.permute.xlu0 %1711
    %1713 = vrot.lane.b32.xlu0 %v1631, 127
    %v1714 = vpop.permute.xlu0 %1713
    %1715 = vrot.lane.b32.xlu0 %v1632, 127
    %v1716 = vpop.permute.xlu0 %1715
    %1717 = vrot.lane.b32.xlu0 %v1633, 127
    %v1718 = vpop.permute.xlu0 %1717
    %1719 = vrot.lane.b32.xlu0 %v1634, 127
    %v1720 = vpop.permute.xlu0 %1719
    %1721 = vrot.lane.b32.xlu0 %v1635, 127
    %v1722 = vpop.permute.xlu0 %1721
    %1723 = vrot.lane.b32.xlu0 %v1636, 127
    %v1724 = vpop.permute.xlu0 %1723
    %1725 = vrot.lane.b32.xlu0 %v1637, 127
    %v1726 = vpop.permute.xlu0 %1725
    %1727 = vrot.lane.b32.xlu0 %v1638, 127
    %v1728 = vpop.permute.xlu0 %1727
    %1729 = vrot.lane.b32.xlu0 %v1639, 127
    %v1730 = vpop.permute.xlu0 %1729
    %1731 = vrot.lane.b32.xlu0 %v1640, 127
    %v1732 = vpop.permute.xlu0 %1731
    %1733 = vrot.lane.b32.xlu0 %v1641, 127
    %v1734 = vpop.permute.xlu0 %1733
    %1735 = vrot.lane.b32.xlu0 %v1642, 127
    %v1736 = vpop.permute.xlu0 %1735
    %1737 = vrot.lane.b32.xlu0 %v1643, 127
    %v1738 = vpop.permute.xlu0 %1737
    %1739 = vrot.lane.b32.xlu0 %v1644, 127
    %v1740 = vpop.permute.xlu0 %1739
    %v1773 = vadd.f32 %v1579, %v1678
    %v1774 = vadd.f32 %v1580, %v1680
    %v1775 = vadd.f32 %v1581, %v1682
    %v1776 = vadd.f32 %v1582, %v1684
    %v1777 = vadd.f32 %v1583, %v1686
    %v1778 = vadd.f32 %v1584, %v1688
    %v1779 = vadd.f32 %v1585, %v1690
    %v1780 = vadd.f32 %v1586, %v1692
    %v1781 = vadd.f32 %v1587, %v1694
    %v1782 = vadd.f32 %v1588, %v1696
    %v1783 = vadd.f32 %v1589, %v1698
    %v1784 = vadd.f32 %v1590, %v1700
    %v1785 = vadd.f32 %v1591, %v1702
    %v1786 = vadd.f32 %v1592, %v1704
    %v1787 = vadd.f32 %v1593, %v1706
    %v1788 = vadd.f32 %v1594, %v1708
    %v1789 = vadd.f32 %v1595, %v1710
    %v1790 = vadd.f32 %v1596, %v1712
    %v1791 = vadd.f32 %v1597, %v1714
    %v1792 = vadd.f32 %v1598, %v1716
    %v1793 = vadd.f32 %v1599, %v1718
    %v1794 = vadd.f32 %v1600, %v1720
    %v1795 = vadd.f32 %v1601, %v1722
    %v1796 = vadd.f32 %v1602, %v1724
    %v1797 = vadd.f32 %v1603, %v1726
    %v1798 = vadd.f32 %v1604, %v1728
    %v1799 = vadd.f32 %v1605, %v1730
    %v1800 = vadd.f32 %v1606, %v1732
    %v1801 = vadd.f32 %v1607, %v1734
    %v1802 = vadd.f32 %v1608, %v1736
    %v1803 = vadd.f32 %v1609, %v1738
    %v1804 = vadd.f32 %v1610, %v1740
    %s1805 = sld [smem:[#allocation2 + $0xa]]
    %v1806 = vstv %s1805
    %v1807 = vadd.f32 %v1773, %v1806
    %v1808 = vadd.f32 %v1774, %v1806
    %v1809 = vadd.f32 %v1775, %v1806
    %v1810 = vadd.f32 %v1776, %v1806
    %v1811 = vadd.f32 %v1777, %v1806
    %v1812 = vadd.f32 %v1778, %v1806
    %v1813 = vadd.f32 %v1779, %v1806
    %v1814 = vadd.f32 %v1780, %v1806
    %v1815 = vadd.f32 %v1781, %v1806
    %v1816 = vadd.f32 %v1782, %v1806
    %v1817 = vadd.f32 %v1783, %v1806
    %v1818 = vadd.f32 %v1784, %v1806
    %v1819 = vadd.f32 %v1785, %v1806
    %v1820 = vadd.f32 %v1786, %v1806
    %v1821 = vadd.f32 %v1787, %v1806
    %v1822 = vadd.f32 %v1788, %v1806
    %v1823 = vadd.f32 %v1789, %v1806
    %v1824 = vadd.f32 %v1790, %v1806
    %v1825 = vadd.f32 %v1791, %v1806
    %v1826 = vadd.f32 %v1792, %v1806
    %v1827 = vadd.f32 %v1793, %v1806
    %v1828 = vadd.f32 %v1794, %v1806
    %v1829 = vadd.f32 %v1795, %v1806
    %v1830 = vadd.f32 %v1796, %v1806
    %v1831 = vadd.f32 %v1797, %v1806
    %v1832 = vadd.f32 %v1798, %v1806
    %v1833 = vadd.f32 %v1799, %v1806
    %v1834 = vadd.f32 %v1800, %v1806
    %v1835 = vadd.f32 %v1801, %v1806
    %v1836 = vadd.f32 %v1802, %v1806
    %v1837 = vadd.f32 %v1803, %v1806
    %v1838 = vadd.f32 %v1804, %v1806
    %v1839 = vsel %vm318, %v1807, 0.0
    %v1840 = vsel %vm318, %v1808, 0.0
    %v1841 = vadd.f32 %v1839, %v1840
    %v1842 = vsel %vm318, %v1809, 0.0
    %v1843 = vadd.f32 %v1841, %v1842
    %v1844 = vsel %vm318, %v1810, 0.0
    %v1845 = vadd.f32 %v1843, %v1844
    %v1846 = vsel %vm318, %v1811, 0.0
    %v1847 = vadd.f32 %v1845, %v1846
    %v1848 = vsel %vm318, %v1812, 0.0
    %v1849 = vadd.f32 %v1847, %v1848
    %v1850 = vsel %vm318, %v1813, 0.0
    %v1851 = vadd.f32 %v1849, %v1850
    %v1852 = vsel %vm318, %v1814, 0.0
    %v1853 = vadd.f32 %v1851, %v1852
    %v1854 = vsel %vm318, %v1815, 0.0
    %v1855 = vadd.f32 %v1853, %v1854
    %v1856 = vsel %vm318, %v1816, 0.0
    %v1857 = vadd.f32 %v1855, %v1856
    %v1858 = vsel %vm318, %v1817, 0.0
    %v1859 = vadd.f32 %v1857, %v1858
    %v1860 = vsel %vm318, %v1818, 0.0
    %v1861 = vadd.f32 %v1859, %v1860
    %v1862 = vsel %vm318, %v1819, 0.0
    %v1863 = vadd.f32 %v1861, %v1862
    %v1864 = vsel %vm318, %v1820, 0.0
    %v1865 = vadd.f32 %v1863, %v1864
    %v1866 = vsel %vm318, %v1821, 0.0
    %v1867 = vadd.f32 %v1865, %v1866
    %v1868 = vsel %vm318, %v1822, 0.0
    %v1869 = vadd.f32 %v1867, %v1868
    %v1870 = vsel %vm318, %v1823, 0.0
    %v1871 = vadd.f32 %v1869, %v1870
    %v1872 = vsel %vm318, %v1824, 0.0
    %v1873 = vadd.f32 %v1871, %v1872
    %v1874 = vsel %vm318, %v1825, 0.0
    %v1875 = vadd.f32 %v1873, %v1874
    %v1876 = vsel %vm318, %v1826, 0.0
    %v1877 = vadd.f32 %v1875, %v1876
    %v1878 = vsel %vm318, %v1827, 0.0
    %v1879 = vadd.f32 %v1877, %v1878
    %v1880 = vsel %vm318, %v1828, 0.0
    %v1881 = vadd.f32 %v1879, %v1880
    %v1882 = vsel %vm318, %v1829, 0.0
    %v1883 = vadd.f32 %v1881, %v1882
    %v1884 = vsel %vm318, %v1830, 0.0
    %v1885 = vadd.f32 %v1883, %v1884
    %v1886 = vsel %vm318, %v1831, 0.0
    %v1887 = vadd.f32 %v1885, %v1886
    %v1888 = vsel %vm318, %v1832, 0.0
    %v1889 = vadd.f32 %v1887, %v1888
    %v1890 = vsel %vm318, %v1833, 0.0
    %v1891 = vadd.f32 %v1889, %v1890
    %v1892 = vsel %vm318, %v1834, 0.0
    %v1893 = vadd.f32 %v1891, %v1892
    %v1894 = vsel %vm318, %v1835, 0.0
    %v1895 = vadd.f32 %v1893, %v1894
    %v1896 = vsel %vm318, %v1836, 0.0
    %v1897 = vadd.f32 %v1895, %v1896
    %v1898 = vsel %vm318, %v1837, 0.0
    %v1899 = vadd.f32 %v1897, %v1898
    %v1900 = vsel %vm318, %v1838, 0.0
    %v1901 = vadd.f32 %v1899, %v1900
    %v1902 = vrot.slane %v1901, 4
    %v1903 = vadd.f32 %v1901, %v1902
    %v1904 = vrot.slane %v1903, 2
    %v1905 = vadd.f32 %v1903, %v1904
    %v1906 = vrot.slane %v1905, 1
    %v1907 = vadd.f32 %v1905, %v1906
    %v1908 = vmul.f32 %v1907, 0.00390625
    %v1909 = vsub.f32 %v1807, %v1908
    %v1910 = vsub.f32 %v1808, %v1908
    %v1911 = vsub.f32 %v1809, %v1908
    %v1912 = vsub.f32 %v1810, %v1908
    %v1913 = vsub.f32 %v1811, %v1908
    %v1914 = vsub.f32 %v1812, %v1908
    %v1915 = vsub.f32 %v1813, %v1908
    %v1916 = vsub.f32 %v1814, %v1908
    %v1917 = vsub.f32 %v1815, %v1908
    %v1918 = vsub.f32 %v1816, %v1908
    %v1919 = vsub.f32 %v1817, %v1908
    %v1920 = vsub.f32 %v1818, %v1908
    %v1921 = vsub.f32 %v1819, %v1908
    %v1922 = vsub.f32 %v1820, %v1908
    %v1923 = vsub.f32 %v1821, %v1908
    %v1924 = vsub.f32 %v1822, %v1908
    %v1925 = vsub.f32 %v1823, %v1908
    %v1926 = vsub.f32 %v1824, %v1908
    %v1927 = vsub.f32 %v1825, %v1908
    %v1928 = vsub.f32 %v1826, %v1908
    %v1929 = vsub.f32 %v1827, %v1908
    %v1930 = vsub.f32 %v1828, %v1908
    %v1931 = vsub.f32 %v1829, %v1908
    %v1932 = vsub.f32 %v1830, %v1908
    %v1933 = vsub.f32 %v1831, %v1908
    %v1934 = vsub.f32 %v1832, %v1908
    %v1935 = vsub.f32 %v1833, %v1908
    %v1936 = vsub.f32 %v1834, %v1908
    %v1937 = vsub.f32 %v1835, %v1908
    %v1938 = vsub.f32 %v1836, %v1908
    %v1939 = vsub.f32 %v1837, %v1908
    %v1940 = vsub.f32 %v1838, %v1908
    %v1941 = vmul.f32 %v1909, %v1909
    %v1942 = vmul.f32 %v1910, %v1910
    %v1943 = vmul.f32 %v1911, %v1911
    %v1944 = vmul.f32 %v1912, %v1912
    %v1945 = vmul.f32 %v1913, %v1913
    %v1946 = vmul.f32 %v1914, %v1914
    %v1947 = vmul.f32 %v1915, %v1915
    %v1948 = vmul.f32 %v1916, %v1916
    %v1949 = vmul.f32 %v1917, %v1917
    %v1950 = vmul.f32 %v1918, %v1918
    %v1951 = vmul.f32 %v1919, %v1919
    %v1952 = vmul.f32 %v1920, %v1920
    %v1953 = vmul.f32 %v1921, %v1921
    %v1954 = vmul.f32 %v1922, %v1922
    %v1955 = vmul.f32 %v1923, %v1923
    %v1956 = vmul.f32 %v1924, %v1924
    %v1957 = vmul.f32 %v1925, %v1925
    %v1958 = vmul.f32 %v1926, %v1926
    %v1959 = vmul.f32 %v1927, %v1927
    %v1960 = vmul.f32 %v1928, %v1928
    %v1961 = vmul.f32 %v1929, %v1929
    %v1962 = vmul.f32 %v1930, %v1930
    %v1963 = vmul.f32 %v1931, %v1931
    %v1964 = vmul.f32 %v1932, %v1932
    %v1965 = vmul.f32 %v1933, %v1933
    %v1966 = vmul.f32 %v1934, %v1934
    %v1967 = vmul.f32 %v1935, %v1935
    %v1968 = vmul.f32 %v1936, %v1936
    %v1969 = vmul.f32 %v1937, %v1937
    %v1970 = vmul.f32 %v1938, %v1938
    %v1971 = vmul.f32 %v1939, %v1939
    %v1972 = vmul.f32 %v1940, %v1940
    %v1973 = vsel %vm318, %v1941, 0.0
    %v1974 = vsel %vm318, %v1942, 0.0
    %v1975 = vadd.f32 %v1973, %v1974
    %v1976 = vsel %vm318, %v1943, 0.0
    %v1977 = vadd.f32 %v1975, %v1976
    %v1978 = vsel %vm318, %v1944, 0.0
    %v1979 = vadd.f32 %v1977, %v1978
    %v1980 = vsel %vm318, %v1945, 0.0
    %v1981 = vadd.f32 %v1979, %v1980
    %v1982 = vsel %vm318, %v1946, 0.0
    %v1983 = vadd.f32 %v1981, %v1982
    %v1984 = vsel %vm318, %v1947, 0.0
    %v1985 = vadd.f32 %v1983, %v1984
    %v1986 = vsel %vm318, %v1948, 0.0
    %v1987 = vadd.f32 %v1985, %v1986
    %v1988 = vsel %vm318, %v1949, 0.0
    %v1989 = vadd.f32 %v1987, %v1988
    %v1990 = vsel %vm318, %v1950, 0.0
    %v1991 = vadd.f32 %v1989, %v1990
    %v1992 = vsel %vm318, %v1951, 0.0
    %v1993 = vadd.f32 %v1991, %v1992
    %v1994 = vsel %vm318, %v1952, 0.0
    %v1995 = vadd.f32 %v1993, %v1994
    %v1996 = vsel %vm318, %v1953, 0.0
    %v1997 = vadd.f32 %v1995, %v1996
    %v1998 = vsel %vm318, %v1954, 0.0
    %v1999 = vadd.f32 %v1997, %v1998
    %v2000 = vsel %vm318, %v1955, 0.0
    %v2001 = vadd.f32 %v1999, %v2000
    %v2002 = vsel %vm318, %v1956, 0.0
    %v2003 = vadd.f32 %v2001, %v2002
    %v2004 = vsel %vm318, %v1957, 0.0
    %v2005 = vadd.f32 %v2003, %v2004
    %v2006 = vsel %vm318, %v1958, 0.0
    %v2007 = vadd.f32 %v2005, %v2006
    %v2008 = vsel %vm318, %v1959, 0.0
    %v2009 = vadd.f32 %v2007, %v2008
    %v2010 = vsel %vm318, %v1960, 0.0
    %v2011 = vadd.f32 %v2009, %v2010
    %v2012 = vsel %vm318, %v1961, 0.0
    %v2013 = vadd.f32 %v2011, %v2012
    %v2014 = vsel %vm318, %v1962, 0.0
    %v2015 = vadd.f32 %v2013, %v2014
    %v2016 = vsel %vm318, %v1963, 0.0
    %v2017 = vadd.f32 %v2015, %v2016
    %v2018 = vsel %vm318, %v1964, 0.0
    %v2019 = vadd.f32 %v2017, %v2018
    %v2020 = vsel %vm318, %v1965, 0.0
    %v2021 = vadd.f32 %v2019, %v2020
    %v2022 = vsel %vm318, %v1966, 0.0
    %v2023 = vadd.f32 %v2021, %v2022
    %v2024 = vsel %vm318, %v1967, 0.0
    %v2025 = vadd.f32 %v2023, %v2024
    %v2026 = vsel %vm318, %v1968, 0.0
    %v2027 = vadd.f32 %v2025, %v2026
    %v2028 = vsel %vm318, %v1969, 0.0
    %v2029 = vadd.f32 %v2027, %v2028
    %v2030 = vsel %vm318, %v1970, 0.0
    %v2031 = vadd.f32 %v2029, %v2030
    %v2032 = vsel %vm318, %v1971, 0.0
    %v2033 = vadd.f32 %v2031, %v2032
    %v2034 = vsel %vm318, %v1972, 0.0
    %v2035 = vadd.f32 %v2033, %v2034
    %v2036 = vrot.slane %v2035, 4
    %v2037 = vadd.f32 %v2035, %v2036
    %v2038 = vrot.slane %v2037, 2
    %v2039 = vadd.f32 %v2037, %v2038
    %v2040 = vrot.slane %v2039, 1
    %v2041 = vadd.f32 %v2039, %v2040
    %v2042 = vmul.f32 %v2041, 0.00390625
    %s2043 = sld [smem:[#allocation2 + $0xe]]
    %v2044 = vadd.f32 %v2042, 1e-05
    %v2045 = vrsqrt.pop %v2044
    %v2046 = vmul.f32 %v1909, %v2045
    %v2047 = vmul.f32 %v1910, %v2045
    %v2048 = vmul.f32 %v1911, %v2045
    %v2049 = vmul.f32 %v1912, %v2045
    %v2050 = vmul.f32 %v1913, %v2045
    %v2051 = vmul.f32 %v1914, %v2045
    %v2052 = vmul.f32 %v1915, %v2045
    %v2053 = vmul.f32 %v1916, %v2045
    %v2054 = vmul.f32 %v1917, %v2045
    %v2055 = vmul.f32 %v1918, %v2045
    %v2056 = vmul.f32 %v1919, %v2045
    %v2057 = vmul.f32 %v1920, %v2045
    %v2058 = vmul.f32 %v1921, %v2045
    %v2059 = vmul.f32 %v1922, %v2045
    %v2060 = vmul.f32 %v1923, %v2045
    %v2061 = vmul.f32 %v1924, %v2045
    %v2062 = vmul.f32 %v1925, %v2045
    %v2063 = vmul.f32 %v1926, %v2045
    %v2064 = vmul.f32 %v1927, %v2045
    %v2065 = vmul.f32 %v1928, %v2045
    %v2066 = vmul.f32 %v1929, %v2045
    %v2067 = vmul.f32 %v1930, %v2045
    %v2068 = vmul.f32 %v1931, %v2045
    %v2069 = vmul.f32 %v1932, %v2045
    %v2070 = vmul.f32 %v1933, %v2045
    %v2071 = vmul.f32 %v1934, %v2045
    %v2072 = vmul.f32 %v1935, %v2045
    %v2073 = vmul.f32 %v1936, %v2045
    %v2074 = vmul.f32 %v1937, %v2045
    %v2075 = vmul.f32 %v1938, %v2045
    %v2076 = vmul.f32 %v1939, %v2045
    %v2077 = vmul.f32 %v1940, %v2045
    %v2078 = vstv %s2043
    %v2079 = vmul.f32 %v2078, %v2046
    %v2080 = vmul.f32 %v2078, %v2047
    %v2081 = vmul.f32 %v2078, %v2048
    %v2082 = vmul.f32 %v2078, %v2049
    %v2083 = vmul.f32 %v2078, %v2050
    %v2084 = vmul.f32 %v2078, %v2051
    %v2085 = vmul.f32 %v2078, %v2052
    %v2086 = vmul.f32 %v2078, %v2053
    %v2087 = vmul.f32 %v2078, %v2054
    %v2088 = vmul.f32 %v2078, %v2055
    %v2089 = vmul.f32 %v2078, %v2056
    %v2090 = vmul.f32 %v2078, %v2057
    %v2091 = vmul.f32 %v2078, %v2058
    %v2092 = vmul.f32 %v2078, %v2059
    %v2093 = vmul.f32 %v2078, %v2060
    %v2094 = vmul.f32 %v2078, %v2061
    %v2095 = vmul.f32 %v2078, %v2062
    %v2096 = vmul.f32 %v2078, %v2063
    %v2097 = vmul.f32 %v2078, %v2064
    %v2098 = vmul.f32 %v2078, %v2065
    %v2099 = vmul.f32 %v2078, %v2066
    %v2100 = vmul.f32 %v2078, %v2067
    %v2101 = vmul.f32 %v2078, %v2068
    %v2102 = vmul.f32 %v2078, %v2069
    %v2103 = vmul.f32 %v2078, %v2070
    %v2104 = vmul.f32 %v2078, %v2071
    %v2105 = vmul.f32 %v2078, %v2072
    %v2106 = vmul.f32 %v2078, %v2073
    %v2107 = vmul.f32 %v2078, %v2074
    %v2108 = vmul.f32 %v2078, %v2075
    %v2109 = vmul.f32 %v2078, %v2076
    %v2110 = vmul.f32 %v2078, %v2077
    %s2111 = sld [smem:[#allocation2 + $0x12]]
    %v2112 = vstv %s2111
    %v2113 = vadd.f32 %v2079, %v2112
    %v2114 = vadd.f32 %v2080, %v2112
    %v2115 = vadd.f32 %v2081, %v2112
    %v2116 = vadd.f32 %v2082, %v2112
    %v2117 = vadd.f32 %v2083, %v2112
    %v2118 = vadd.f32 %v2084, %v2112
    %v2119 = vadd.f32 %v2085, %v2112
    %v2120 = vadd.f32 %v2086, %v2112
    %v2121 = vadd.f32 %v2087, %v2112
    %v2122 = vadd.f32 %v2088, %v2112
    %v2123 = vadd.f32 %v2089, %v2112
    %v2124 = vadd.f32 %v2090, %v2112
    %v2125 = vadd.f32 %v2091, %v2112
    %v2126 = vadd.f32 %v2092, %v2112
    %v2127 = vadd.f32 %v2093, %v2112
    %v2128 = vadd.f32 %v2094, %v2112
    %v2129 = vadd.f32 %v2095, %v2112
    %v2130 = vadd.f32 %v2096, %v2112
    %v2131 = vadd.f32 %v2097, %v2112
    %v2132 = vadd.f32 %v2098, %v2112
    %v2133 = vadd.f32 %v2099, %v2112
    %v2134 = vadd.f32 %v2100, %v2112
    %v2135 = vadd.f32 %v2101, %v2112
    %v2136 = vadd.f32 %v2102, %v2112
    %v2137 = vadd.f32 %v2103, %v2112
    %v2138 = vadd.f32 %v2104, %v2112
    %v2139 = vadd.f32 %v2105, %v2112
    %v2140 = vadd.f32 %v2106, %v2112
    %v2141 = vadd.f32 %v2107, %v2112
    %v2142 = vadd.f32 %v2108, %v2112
    %v2143 = vadd.f32 %v2109, %v2112
    %v2144 = vadd.f32 %v2110, %v2112
    %v2145 = vxor.u32 %v2113, 2147483648
    %v2146 = vxor.u32 %v2114, 2147483648
    %v2147 = vxor.u32 %v2115, 2147483648
    %v2148 = vxor.u32 %v2116, 2147483648
    %v2149 = vxor.u32 %v2117, 2147483648
    %v2150 = vxor.u32 %v2118, 2147483648
    %v2151 = vxor.u32 %v2119, 2147483648
    %v2152 = vxor.u32 %v2120, 2147483648
    %v2153 = vxor.u32 %v2121, 2147483648
    %v2154 = vxor.u32 %v2122, 2147483648
    %v2155 = vxor.u32 %v2123, 2147483648
    %v2156 = vxor.u32 %v2124, 2147483648
    %v2157 = vxor.u32 %v2125, 2147483648
    %v2158 = vxor.u32 %v2126, 2147483648
    %v2159 = vxor.u32 %v2127, 2147483648
    %v2160 = vxor.u32 %v2128, 2147483648
    %v2161 = vxor.u32 %v2129, 2147483648
    %v2162 = vxor.u32 %v2130, 2147483648
    %v2163 = vxor.u32 %v2131, 2147483648
    %v2164 = vxor.u32 %v2132, 2147483648
    %v2165 = vxor.u32 %v2133, 2147483648
    %v2166 = vxor.u32 %v2134, 2147483648
    %v2167 = vxor.u32 %v2135, 2147483648
    %v2168 = vxor.u32 %v2136, 2147483648
    %v2169 = vxor.u32 %v2137, 2147483648
    %v2170 = vxor.u32 %v2138, 2147483648
    %v2171 = vxor.u32 %v2139, 2147483648
    %v2172 = vxor.u32 %v2140, 2147483648
    %v2173 = vxor.u32 %v2141, 2147483648
    %v2174 = vxor.u32 %v2142, 2147483648
    %v2175 = vxor.u32 %v2143, 2147483648
    %v2176 = vxor.u32 %v2144, 2147483648
    %v2177 = vmul.f32 %v2145, 1.442695
    %v2178 = vpow.pop %v2177
    %v2179 = vmul.f32 %v2146, 1.442695
    %v2180 = vpow.pop %v2179
    %v2181 = vmul.f32 %v2147, 1.442695
    %v2182 = vpow.pop %v2181
    %v2183 = vmul.f32 %v2148, 1.442695
    %v2184 = vpow.pop %v2183
    %v2185 = vmul.f32 %v2149, 1.442695
    %v2186 = vpow.pop %v2185
    %v2187 = vmul.f32 %v2150, 1.442695
    %v2188 = vpow.pop %v2187
    %v2189 = vmul.f32 %v2151, 1.442695
    %v2190 = vpow.pop %v2189
    %v2191 = vmul.f32 %v2152, 1.442695
    %v2192 = vpow.pop %v2191
    %v2193 = vmul.f32 %v2153, 1.442695
    %v2194 = vpow.pop %v2193
    %v2195 = vmul.f32 %v2154, 1.442695
    %v2196 = vpow.pop %v2195
    %v2197 = vmul.f32 %v2155, 1.442695
    %v2198 = vpow.pop %v2197
    %v2199 = vmul.f32 %v2156, 1.442695
    %v2200 = vpow.pop %v2199
    %v2201 = vmul.f32 %v2157, 1.442695
    %v2202 = vpow.pop %v2201
    %v2203 = vmul.f32 %v2158, 1.442695
    %v2204 = vpow.pop %v2203
    %v2205 = vmul.f32 %v2159, 1.442695
    %v2206 = vpow.pop %v2205
    %v2207 = vmul.f32 %v2160, 1.442695
    %v2208 = vpow.pop %v2207
    %v2209 = vmul.f32 %v2161, 1.442695
    %v2210 = vpow.pop %v2209
    %v2211 = vmul.f32 %v2162, 1.442695
    %v2212 = vpow.pop %v2211
    %v2213 = vmul.f32 %v2163, 1.442695
    %v2214 = vpow.pop %v2213
    %v2215 = vmul.f32 %v2164, 1.442695
    %v2216 = vpow.pop %v2215
    %v2217 = vmul.f32 %v2165, 1.442695
    %v2218 = vpow.pop %v2217
    %v2219 = vmul.f32 %v2166, 1.442695
    %v2220 = vpow.pop %v2219
    %v2221 = vmul.f32 %v2167, 1.442695
    %v2222 = vpow.pop %v2221
    %v2223 = vmul.f32 %v2168, 1.442695
    %v2224 = vpow.pop %v2223
    %v2225 = vmul.f32 %v2169, 1.442695
    %v2226 = vpow.pop %v2225
    %v2227 = vmul.f32 %v2170, 1.442695
    %v2228 = vpow.pop %v2227
    %v2229 = vmul.f32 %v2171, 1.442695
    %v2230 = vpow.pop %v2229
    %v2231 = vmul.f32 %v2172, 1.442695
    %v2232 = vpow.pop %v2231
    %v2233 = vmul.f32 %v2173, 1.442695
    %v2234 = vpow.pop %v2233
    %v2235 = vmul.f32 %v2174, 1.442695
    %v2236 = vpow.pop %v2235
    %v2237 = vmul.f32 %v2175, 1.442695
    %v2238 = vpow.pop %v2237
    %v2239 = vmul.f32 %v2176, 1.442695
    %v2240 = vpow.pop %v2239
    %v2241 = vadd.f32 %v2178, 1.0
    %v2242 = vadd.f32 %v2180, 1.0
    %v2243 = vadd.f32 %v2182, 1.0
    %v2244 = vadd.f32 %v2184, 1.0
    %v2245 = vadd.f32 %v2186, 1.0
    %v2246 = vadd.f32 %v2188, 1.0
    %v2247 = vadd.f32 %v2190, 1.0
    %v2248 = vadd.f32 %v2192, 1.0
    %v2249 = vadd.f32 %v2194, 1.0
    %v2250 = vadd.f32 %v2196, 1.0
    %v2251 = vadd.f32 %v2198, 1.0
    %v2252 = vadd.f32 %v2200, 1.0
    %v2253 = vadd.f32 %v2202, 1.0
    %v2254 = vadd.f32 %v2204, 1.0
    %v2255 = vadd.f32 %v2206, 1.0
    %v2256 = vadd.f32 %v2208, 1.0
    %v2257 = vadd.f32 %v2210, 1.0
    %v2258 = vadd.f32 %v2212, 1.0
    %v2259 = vadd.f32 %v2214, 1.0
    %v2260 = vadd.f32 %v2216, 1.0
    %v2261 = vadd.f32 %v2218, 1.0
    %v2262 = vadd.f32 %v2220, 1.0
    %v2263 = vadd.f32 %v2222, 1.0
    %v2264 = vadd.f32 %v2224, 1.0
    %v2265 = vadd.f32 %v2226, 1.0
    %v2266 = vadd.f32 %v2228, 1.0
    %v2267 = vadd.f32 %v2230, 1.0
    %v2268 = vadd.f32 %v2232, 1.0
    %v2269 = vadd.f32 %v2234, 1.0
    %v2270 = vadd.f32 %v2236, 1.0
    %v2271 = vadd.f32 %v2238, 1.0
    %v2272 = vadd.f32 %v2240, 1.0
    %v2273 = vrcp.pop %v2241
    %v2274 = vmul.f32 1.0, %v2273
    %v2275 = vrcp.pop %v2242
    %v2276 = vmul.f32 1.0, %v2275
    %v2277 = vrcp.pop %v2243
    %v2278 = vmul.f32 1.0, %v2277
    %v2279 = vrcp.pop %v2244
    %v2280 = vmul.f32 1.0, %v2279
    %v2281 = vrcp.pop %v2245
    %v2282 = vmul.f32 1.0, %v2281
    %v2283 = vrcp.pop %v2246
    %v2284 = vmul.f32 1.0, %v2283
    %v2285 = vrcp.pop %v2247
    %v2286 = vmul.f32 1.0, %v2285
    %v2287 = vrcp.pop %v2248
    %v2288 = vmul.f32 1.0, %v2287
    %v2289 = vrcp.pop %v2249
    %v2290 = vmul.f32 1.0, %v2289
    %v2291 = vrcp.pop %v2250
    %v2292 = vmul.f32 1.0, %v2291
    %v2293 = vrcp.pop %v2251
    %v2294 = vmul.f32 1.0, %v2293
    %v2295 = vrcp.pop %v2252
    %v2296 = vmul.f32 1.0, %v2295
    %v2297 = vrcp.pop %v2253
    %v2298 = vmul.f32 1.0, %v2297
    %v2299 = vrcp.pop %v2254
    %v2300 = vmul.f32 1.0, %v2299
    %v2301 = vrcp.pop %v2255
    %v2302 = vmul.f32 1.0, %v2301
    %v2303 = vrcp.pop %v2256
    %v2304 = vmul.f32 1.0, %v2303
    %v2305 = vrcp.pop %v2257
    %v2306 = vmul.f32 1.0, %v2305
    %v2307 = vrcp.pop %v2258
    %v2308 = vmul.f32 1.0, %v2307
    %v2309 = vrcp.pop %v2259
    %v2310 = vmul.f32 1.0, %v2309
    %v2311 = vrcp.pop %v2260
    %v2312 = vmul.f32 1.0, %v2311
    %v2313 = vrcp.pop %v2261
    %v2314 = vmul.f32 1.0, %v2313
    %v2315 = vrcp.pop %v2262
    %v2316 = vmul.f32 1.0, %v2315
    %v2317 = vrcp.pop %v2263
    %v2318 = vmul.f32 1.0, %v2317
    %v2319 = vrcp.pop %v2264
    %v2320 = vmul.f32 1.0, %v2319
    %v2321 = vrcp.pop %v2265
    %v2322 = vmul.f32 1.0, %v2321
    %v2323 = vrcp.pop %v2266
    %v2324 = vmul.f32 1.0, %v2323
    %v2325 = vrcp.pop %v2267
    %v2326 = vmul.f32 1.0, %v2325
    %v2327 = vrcp.pop %v2268
    %v2328 = vmul.f32 1.0, %v2327
    %v2329 = vrcp.pop %v2269
    %v2330 = vmul.f32 1.0, %v2329
    %v2331 = vrcp.pop %v2270
    %v2332 = vmul.f32 1.0, %v2331
    %v2333 = vrcp.pop %v2271
    %v2334 = vmul.f32 1.0, %v2333
    %v2335 = vrcp.pop %v2272
    %v2336 = vmul.f32 1.0, %v2335
    %s2337 = sld [smem:[#allocation2 + $0x6]]
    %v2338 = vstv %s2337
    %v2339 = vmul.f32 %v2338, %v25
    %v2340 = vmul.f32 %v2338, %v26
    %v2341 = vmul.f32 %v2338, %v27
    %v2342 = vmul.f32 %v2338, %v28
    %v2343 = vmul.f32 %v2338, %v29
    %v2344 = vmul.f32 %v2338, %v30
    %v2345 = vmul.f32 %v2338, %v31
    %v2346 = vmul.f32 %v2338, %v32
    %v2347 = vmul.f32 %v2338, %v33
    %v2348 = vmul.f32 %v2338, %v34
    %v2349 = vmul.f32 %v2338, %v35
    %v2350 = vmul.f32 %v2338, %v36
    %v2351 = vmul.f32 %v2338, %v37
    %v2352 = vmul.f32 %v2338, %v38
    %v2353 = vmul.f32 %v2338, %v39
    %v2354 = vmul.f32 %v2338, %v40
    %v2355 = vmul.f32 %v2338, %v41
    %v2356 = vmul.f32 %v2338, %v42
    %v2357 = vmul.f32 %v2338, %v43
    %v2358 = vmul.f32 %v2338, %v44
    %v2359 = vmul.f32 %v2338, %v45
    %v2360 = vmul.f32 %v2338, %v46
    %v2361 = vmul.f32 %v2338, %v47
    %v2362 = vmul.f32 %v2338, %v48
    %v2363 = vmul.f32 %v2338, %v49
    %v2364 = vmul.f32 %v2338, %v50
    %v2365 = vmul.f32 %v2338, %v51
    %v2366 = vmul.f32 %v2338, %v52
    %v2367 = vmul.f32 %v2338, %v53
    %v2368 = vmul.f32 %v2338, %v54
    %v2369 = vmul.f32 %v2338, %v55
    %v2370 = vmul.f32 %v2338, %v56
    %s2371 = sld [smem:[#allocation2 + $0x7]]
    %v2372 = vstv %s2371
    %v2373 = vmul.f32 %v2372, %v25
    %v2374 = vmul.f32 %v2372, %v26
    %v2375 = vmul.f32 %v2372, %v27
    %v2376 = vmul.f32 %v2372, %v28
    %v2377 = vmul.f32 %v2372, %v29
    %v2378 = vmul.f32 %v2372, %v30
    %v2379 = vmul.f32 %v2372, %v31
    %v2380 = vmul.f32 %v2372, %v32
    %v2381 = vmul.f32 %v2372, %v33
    %v2382 = vmul.f32 %v2372, %v34
    %v2383 = vmul.f32 %v2372, %v35
    %v2384 = vmul.f32 %v2372, %v36
    %v2385 = vmul.f32 %v2372, %v37
    %v2386 = vmul.f32 %v2372, %v38
    %v2387 = vmul.f32 %v2372, %v39
    %v2388 = vmul.f32 %v2372, %v40
    %v2389 = vmul.f32 %v2372, %v41
    %v2390 = vmul.f32 %v2372, %v42
    %v2391 = vmul.f32 %v2372, %v43
    %v2392 = vmul.f32 %v2372, %v44
    %v2393 = vmul.f32 %v2372, %v45
    %v2394 = vmul.f32 %v2372, %v46
    %v2395 = vmul.f32 %v2372, %v47
    %v2396 = vmul.f32 %v2372, %v48
    %v2397 = vmul.f32 %v2372, %v49
    %v2398 = vmul.f32 %v2372, %v50
    %v2399 = vmul.f32 %v2372, %v51
    %v2400 = vmul.f32 %v2372, %v52
    %v2401 = vmul.f32 %v2372, %v53
    %v2402 = vmul.f32 %v2372, %v54
    %v2403 = vmul.f32 %v2372, %v55
    %v2404 = vmul.f32 %v2372, %v56
    %2437 = vrot.lane.b32.xlu0 %v2373, 127
    %v2438 = vpop.permute.xlu0 %2437
    %2439 = vrot.lane.b32.xlu0 %v2374, 127
    %v2440 = vpop.permute.xlu0 %2439
    %2441 = vrot.lane.b32.xlu0 %v2375, 127
    %v2442 = vpop.permute.xlu0 %2441
    %2443 = vrot.lane.b32.xlu0 %v2376, 127
    %v2444 = vpop.permute.xlu0 %2443
    %2445 = vrot.lane.b32.xlu0 %v2377, 127
    %v2446 = vpop.permute.xlu0 %2445
    %2447 = vrot.lane.b32.xlu0 %v2378, 127
    %v2448 = vpop.permute.xlu0 %2447
    %2449 = vrot.lane.b32.xlu0 %v2379, 127
    %v2450 = vpop.permute.xlu0 %2449
    %2451 = vrot.lane.b32.xlu0 %v2380, 127
    %v2452 = vpop.permute.xlu0 %2451
    %2453 = vrot.lane.b32.xlu0 %v2381, 127
    %v2454 = vpop.permute.xlu0 %2453
    %2455 = vrot.lane.b32.xlu0 %v2382, 127
    %v2456 = vpop.permute.xlu0 %2455
    %2457 = vrot.lane.b32.xlu0 %v2383, 127
    %v2458 = vpop.permute.xlu0 %2457
    %2459 = vrot.lane.b32.xlu0 %v2384, 127
    %v2460 = vpop.permute.xlu0 %2459
    %2461 = vrot.lane.b32.xlu0 %v2385, 127
    %v2462 = vpop.permute.xlu0 %2461
    %2463 = vrot.lane.b32.xlu0 %v2386, 127
    %v2464 = vpop.permute.xlu0 %2463
    %2465 = vrot.lane.b32.xlu0 %v2387, 127
    %v2466 = vpop.permute.xlu0 %2465
    %2467 = vrot.lane.b32.xlu0 %v2388, 127
    %v2468 = vpop.permute.xlu0 %2467
    %2469 = vrot.lane.b32.xlu0 %v2389, 127
    %v2470 = vpop.permute.xlu0 %2469
    %2471 = vrot.lane.b32.xlu0 %v2390, 127
    %v2472 = vpop.permute.xlu0 %2471
    %2473 = vrot.lane.b32.xlu0 %v2391, 127
    %v2474 = vpop.permute.xlu0 %2473
    %2475 = vrot.lane.b32.xlu0 %v2392, 127
    %v2476 = vpop.permute.xlu0 %2475
    %2477 = vrot.lane.b32.xlu0 %v2393, 127
    %v2478 = vpop.permute.xlu0 %2477
    %2479 = vrot.lane.b32.xlu0 %v2394, 127
    %v2480 = vpop.permute.xlu0 %2479
    %2481 = vrot.lane.b32.xlu0 %v2395, 127
    %v2482 = vpop.permute.xlu0 %2481
    %2483 = vrot.lane.b32.xlu0 %v2396, 127
    %v2484 = vpop.permute.xlu0 %2483
    %2485 = vrot.lane.b32.xlu0 %v2397, 127
    %v2486 = vpop.permute.xlu0 %2485
    %2487 = vrot.lane.b32.xlu0 %v2398, 127
    %v2488 = vpop.permute.xlu0 %2487
    %2489 = vrot.lane.b32.xlu0 %v2399, 127
    %v2490 = vpop.permute.xlu0 %2489
    %2491 = vrot.lane.b32.xlu0 %v2400, 127
    %v2492 = vpop.permute.xlu0 %2491
    %2493 = vrot.lane.b32.xlu0 %v2401, 127
    %v2494 = vpop.permute.xlu0 %2493
    %2495 = vrot.lane.b32.xlu0 %v2402, 127
    %v2496 = vpop.permute.xlu0 %2495
    %2497 = vrot.lane.b32.xlu0 %v2403, 127
    %v2498 = vpop.permute.xlu0 %2497
    %2499 = vrot.lane.b32.xlu0 %v2404, 127
    %v2500 = vpop.permute.xlu0 %2499
    %v2533 = vadd.f32 %v2339, %v2438
    %v2534 = vadd.f32 %v2340, %v2440
    %v2535 = vadd.f32 %v2341, %v2442
    %v2536 = vadd.f32 %v2342, %v2444
    %v2537 = vadd.f32 %v2343, %v2446
    %v2538 = vadd.f32 %v2344, %v2448
    %v2539 = vadd.f32 %v2345, %v2450
    %v2540 = vadd.f32 %v2346, %v2452
    %v2541 = vadd.f32 %v2347, %v2454
    %v2542 = vadd.f32 %v2348, %v2456
    %v2543 = vadd.f32 %v2349, %v2458
    %v2544 = vadd.f32 %v2350, %v2460
    %v2545 = vadd.f32 %v2351, %v2462
    %v2546 = vadd.f32 %v2352, %v2464
    %v2547 = vadd.f32 %v2353, %v2466
    %v2548 = vadd.f32 %v2354, %v2468
    %v2549 = vadd.f32 %v2355, %v2470
    %v2550 = vadd.f32 %v2356, %v2472
    %v2551 = vadd.f32 %v2357, %v2474
    %v2552 = vadd.f32 %v2358, %v2476
    %v2553 = vadd.f32 %v2359, %v2478
    %v2554 = vadd.f32 %v2360, %v2480
    %v2555 = vadd.f32 %v2361, %v2482
    %v2556 = vadd.f32 %v2362, %v2484
    %v2557 = vadd.f32 %v2363, %v2486
    %v2558 = vadd.f32 %v2364, %v2488
    %v2559 = vadd.f32 %v2365, %v2490
    %v2560 = vadd.f32 %v2366, %v2492
    %v2561 = vadd.f32 %v2367, %v2494
    %v2562 = vadd.f32 %v2368, %v2496
    %v2563 = vadd.f32 %v2369, %v2498
    %v2564 = vadd.f32 %v2370, %v2500
    %s2565 = sld [smem:[#allocation2 + $0xb]]
    %v2566 = vstv %s2565
    %v2567 = vadd.f32 %v2533, %v2566
    %v2568 = vadd.f32 %v2534, %v2566
    %v2569 = vadd.f32 %v2535, %v2566
    %v2570 = vadd.f32 %v2536, %v2566
    %v2571 = vadd.f32 %v2537, %v2566
    %v2572 = vadd.f32 %v2538, %v2566
    %v2573 = vadd.f32 %v2539, %v2566
    %v2574 = vadd.f32 %v2540, %v2566
    %v2575 = vadd.f32 %v2541, %v2566
    %v2576 = vadd.f32 %v2542, %v2566
    %v2577 = vadd.f32 %v2543, %v2566
    %v2578 = vadd.f32 %v2544, %v2566
    %v2579 = vadd.f32 %v2545, %v2566
    %v2580 = vadd.f32 %v2546, %v2566
    %v2581 = vadd.f32 %v2547, %v2566
    %v2582 = vadd.f32 %v2548, %v2566
    %v2583 = vadd.f32 %v2549, %v2566
    %v2584 = vadd.f32 %v2550, %v2566
    %v2585 = vadd.f32 %v2551, %v2566
    %v2586 = vadd.f32 %v2552, %v2566
    %v2587 = vadd.f32 %v2553, %v2566
    %v2588 = vadd.f32 %v2554, %v2566
    %v2589 = vadd.f32 %v2555, %v2566
    %v2590 = vadd.f32 %v2556, %v2566
    %v2591 = vadd.f32 %v2557, %v2566
    %v2592 = vadd.f32 %v2558, %v2566
    %v2593 = vadd.f32 %v2559, %v2566
    %v2594 = vadd.f32 %v2560, %v2566
    %v2595 = vadd.f32 %v2561, %v2566
    %v2596 = vadd.f32 %v2562, %v2566
    %v2597 = vadd.f32 %v2563, %v2566
    %v2598 = vadd.f32 %v2564, %v2566
    %v2599 = vsel %vm318, %v2567, 0.0
    %v2600 = vsel %vm318, %v2568, 0.0
    %v2601 = vadd.f32 %v2599, %v2600
    %v2602 = vsel %vm318, %v2569, 0.0
    %v2603 = vadd.f32 %v2601, %v2602
    %v2604 = vsel %vm318, %v2570, 0.0
    %v2605 = vadd.f32 %v2603, %v2604
    %v2606 = vsel %vm318, %v2571, 0.0
    %v2607 = vadd.f32 %v2605, %v2606
    %v2608 = vsel %vm318, %v2572, 0.0
    %v2609 = vadd.f32 %v2607, %v2608
    %v2610 = vsel %vm318, %v2573, 0.0
    %v2611 = vadd.f32 %v2609, %v2610
    %v2612 = vsel %vm318, %v2574, 0.0
    %v2613 = vadd.f32 %v2611, %v2612
    %v2614 = vsel %vm318, %v2575, 0.0
    %v2615 = vadd.f32 %v2613, %v2614
    %v2616 = vsel %vm318, %v2576, 0.0
    %v2617 = vadd.f32 %v2615, %v2616
    %v2618 = vsel %vm318, %v2577, 0.0
    %v2619 = vadd.f32 %v2617, %v2618
    %v2620 = vsel %vm318, %v2578, 0.0
    %v2621 = vadd.f32 %v2619, %v2620
    %v2622 = vsel %vm318, %v2579, 0.0
    %v2623 = vadd.f32 %v2621, %v2622
    %v2624 = vsel %vm318, %v2580, 0.0
    %v2625 = vadd.f32 %v2623, %v2624
    %v2626 = vsel %vm318, %v2581, 0.0
    %v2627 = vadd.f32 %v2625, %v2626
    %v2628 = vsel %vm318, %v2582, 0.0
    %v2629 = vadd.f32 %v2627, %v2628
    %v2630 = vsel %vm318, %v2583, 0.0
    %v2631 = vadd.f32 %v2629, %v2630
    %v2632 = vsel %vm318, %v2584, 0.0
    %v2633 = vadd.f32 %v2631, %v2632
    %v2634 = vsel %vm318, %v2585, 0.0
    %v2635 = vadd.f32 %v2633, %v2634
    %v2636 = vsel %vm318, %v2586, 0.0
    %v2637 = vadd.f32 %v2635, %v2636
    %v2638 = vsel %vm318, %v2587, 0.0
    %v2639 = vadd.f32 %v2637, %v2638
    %v2640 = vsel %vm318, %v2588, 0.0
    %v2641 = vadd.f32 %v2639, %v2640
    %v2642 = vsel %vm318, %v2589, 0.0
    %v2643 = vadd.f32 %v2641, %v2642
    %v2644 = vsel %vm318, %v2590, 0.0
    %v2645 = vadd.f32 %v2643, %v2644
    %v2646 = vsel %vm318, %v2591, 0.0
    %v2647 = vadd.f32 %v2645, %v2646
    %v2648 = vsel %vm318, %v2592, 0.0
    %v2649 = vadd.f32 %v2647, %v2648
    %v2650 = vsel %vm318, %v2593, 0.0
    %v2651 = vadd.f32 %v2649, %v2650
    %v2652 = vsel %vm318, %v2594, 0.0
    %v2653 = vadd.f32 %v2651, %v2652
    %v2654 = vsel %vm318, %v2595, 0.0
    %v2655 = vadd.f32 %v2653, %v2654
    %v2656 = vsel %vm318, %v2596, 0.0
    %v2657 = vadd.f32 %v2655, %v2656
    %v2658 = vsel %vm318, %v2597, 0.0
    %v2659 = vadd.f32 %v2657, %v2658
    %v2660 = vsel %vm318, %v2598, 0.0
    %v2661 = vadd.f32 %v2659, %v2660
    %v2662 = vrot.slane %v2661, 4
    %v2663 = vadd.f32 %v2661, %v2662
    %v2664 = vrot.slane %v2663, 2
    %v2665 = vadd.f32 %v2663, %v2664
    %v2666 = vrot.slane %v2665, 1
    %v2667 = vadd.f32 %v2665, %v2666
    %v2668 = vmul.f32 %v2667, 0.00390625
    %v2669 = vsub.f32 %v2567, %v2668
    %v2670 = vsub.f32 %v2568, %v2668
    %v2671 = vsub.f32 %v2569, %v2668
    %v2672 = vsub.f32 %v2570, %v2668
    %v2673 = vsub.f32 %v2571, %v2668
    %v2674 = vsub.f32 %v2572, %v2668
    %v2675 = vsub.f32 %v2573, %v2668
    %v2676 = vsub.f32 %v2574, %v2668
    %v2677 = vsub.f32 %v2575, %v2668
    %v2678 = vsub.f32 %v2576, %v2668
    %v2679 = vsub.f32 %v2577, %v2668
    %v2680 = vsub.f32 %v2578, %v2668
    %v2681 = vsub.f32 %v2579, %v2668
    %v2682 = vsub.f32 %v2580, %v2668
    %v2683 = vsub.f32 %v2581, %v2668
    %v2684 = vsub.f32 %v2582, %v2668
    %v2685 = vsub.f32 %v2583, %v2668
    %v2686 = vsub.f32 %v2584, %v2668
    %v2687 = vsub.f32 %v2585, %v2668
    %v2688 = vsub.f32 %v2586, %v2668
    %v2689 = vsub.f32 %v2587, %v2668
    %v2690 = vsub.f32 %v2588, %v2668
    %v2691 = vsub.f32 %v2589, %v2668
    %v2692 = vsub.f32 %v2590, %v2668
    %v2693 = vsub.f32 %v2591, %v2668
    %v2694 = vsub.f32 %v2592, %v2668
    %v2695 = vsub.f32 %v2593, %v2668
    %v2696 = vsub.f32 %v2594, %v2668
    %v2697 = vsub.f32 %v2595, %v2668
    %v2698 = vsub.f32 %v2596, %v2668
    %v2699 = vsub.f32 %v2597, %v2668
    %v2700 = vsub.f32 %v2598, %v2668
    %v2701 = vmul.f32 %v2669, %v2669
    %v2702 = vmul.f32 %v2670, %v2670
    %v2703 = vmul.f32 %v2671, %v2671
    %v2704 = vmul.f32 %v2672, %v2672
    %v2705 = vmul.f32 %v2673, %v2673
    %v2706 = vmul.f32 %v2674, %v2674
    %v2707 = vmul.f32 %v2675, %v2675
    %v2708 = vmul.f32 %v2676, %v2676
    %v2709 = vmul.f32 %v2677, %v2677
    %v2710 = vmul.f32 %v2678, %v2678
    %v2711 = vmul.f32 %v2679, %v2679
    %v2712 = vmul.f32 %v2680, %v2680
    %v2713 = vmul.f32 %v2681, %v2681
    %v2714 = vmul.f32 %v2682, %v2682
    %v2715 = vmul.f32 %v2683, %v2683
    %v2716 = vmul.f32 %v2684, %v2684
    %v2717 = vmul.f32 %v2685, %v2685
    %v2718 = vmul.f32 %v2686, %v2686
    %v2719 = vmul.f32 %v2687, %v2687
    %v2720 = vmul.f32 %v2688, %v2688
    %v2721 = vmul.f32 %v2689, %v2689
    %v2722 = vmul.f32 %v2690, %v2690
    %v2723 = vmul.f32 %v2691, %v2691
    %v2724 = vmul.f32 %v2692, %v2692
    %v2725 = vmul.f32 %v2693, %v2693
    %v2726 = vmul.f32 %v2694, %v2694
    %v2727 = vmul.f32 %v2695, %v2695
    %v2728 = vmul.f32 %v2696, %v2696
    %v2729 = vmul.f32 %v2697, %v2697
    %v2730 = vmul.f32 %v2698, %v2698
    %v2731 = vmul.f32 %v2699, %v2699
    %v2732 = vmul.f32 %v2700, %v2700
    %v2733 = vsel %vm318, %v2701, 0.0
    %v2734 = vsel %vm318, %v2702, 0.0
    %v2735 = vadd.f32 %v2733, %v2734
    %v2736 = vsel %vm318, %v2703, 0.0
    %v2737 = vadd.f32 %v2735, %v2736
    %v2738 = vsel %vm318, %v2704, 0.0
    %v2739 = vadd.f32 %v2737, %v2738
    %v2740 = vsel %vm318, %v2705, 0.0
    %v2741 = vadd.f32 %v2739, %v2740
    %v2742 = vsel %vm318, %v2706, 0.0
    %v2743 = vadd.f32 %v2741, %v2742
    %v2744 = vsel %vm318, %v2707, 0.0
    %v2745 = vadd.f32 %v2743, %v2744
    %v2746 = vsel %vm318, %v2708, 0.0
    %v2747 = vadd.f32 %v2745, %v2746
    %v2748 = vsel %vm318, %v2709, 0.0
    %v2749 = vadd.f32 %v2747, %v2748
    %v2750 = vsel %vm318, %v2710, 0.0
    %v2751 = vadd.f32 %v2749, %v2750
    %v2752 = vsel %vm318, %v2711, 0.0
    %v2753 = vadd.f32 %v2751, %v2752
    %v2754 = vsel %vm318, %v2712, 0.0
    %v2755 = vadd.f32 %v2753, %v2754
    %v2756 = vsel %vm318, %v2713, 0.0
    %v2757 = vadd.f32 %v2755, %v2756
    %v2758 = vsel %vm318, %v2714, 0.0
    %v2759 = vadd.f32 %v2757, %v2758
    %v2760 = vsel %vm318, %v2715, 0.0
    %v2761 = vadd.f32 %v2759, %v2760
    %v2762 = vsel %vm318, %v2716, 0.0
    %v2763 = vadd.f32 %v2761, %v2762
    %v2764 = vsel %vm318, %v2717, 0.0
    %v2765 = vadd.f32 %v2763, %v2764
    %v2766 = vsel %vm318, %v2718, 0.0
    %v2767 = vadd.f32 %v2765, %v2766
    %v2768 = vsel %vm318, %v2719, 0.0
    %v2769 = vadd.f32 %v2767, %v2768
    %v2770 = vsel %vm318, %v2720, 0.0
    %v2771 = vadd.f32 %v2769, %v2770
    %v2772 = vsel %vm318, %v2721, 0.0
    %v2773 = vadd.f32 %v2771, %v2772
    %v2774 = vsel %vm318, %v2722, 0.0
    %v2775 = vadd.f32 %v2773, %v2774
    %v2776 = vsel %vm318, %v2723, 0.0
    %v2777 = vadd.f32 %v2775, %v2776
    %v2778 = vsel %vm318, %v2724, 0.0
    %v2779 = vadd.f32 %v2777, %v2778
    %v2780 = vsel %vm318, %v2725, 0.0
    %v2781 = vadd.f32 %v2779, %v2780
    %v2782 = vsel %vm318, %v2726, 0.0
    %v2783 = vadd.f32 %v2781, %v2782
    %v2784 = vsel %vm318, %v2727, 0.0
    %v2785 = vadd.f32 %v2783, %v2784
    %v2786 = vsel %vm318, %v2728, 0.0
    %v2787 = vadd.f32 %v2785, %v2786
    %v2788 = vsel %vm318, %v2729, 0.0
    %v2789 = vadd.f32 %v2787, %v2788
    %v2790 = vsel %vm318, %v2730, 0.0
    %v2791 = vadd.f32 %v2789, %v2790
    %v2792 = vsel %vm318, %v2731, 0.0
    %v2793 = vadd.f32 %v2791, %v2792
    %v2794 = vsel %vm318, %v2732, 0.0
    %v2795 = vadd.f32 %v2793, %v2794
    %v2796 = vrot.slane %v2795, 4
    %v2797 = vadd.f32 %v2795, %v2796
    %v2798 = vrot.slane %v2797, 2
    %v2799 = vadd.f32 %v2797, %v2798
    %v2800 = vrot.slane %v2799, 1
    %v2801 = vadd.f32 %v2799, %v2800
    %v2802 = vmul.f32 %v2801, 0.00390625
    %s2803 = sld [smem:[#allocation2 + $0xf]]
    %v2804 = vadd.f32 %v2802, 1e-05
    %v2805 = vrsqrt.pop %v2804
    %v2806 = vmul.f32 %v2669, %v2805
    %v2807 = vmul.f32 %v2670, %v2805
    %v2808 = vmul.f32 %v2671, %v2805
    %v2809 = vmul.f32 %v2672, %v2805
    %v2810 = vmul.f32 %v2673, %v2805
    %v2811 = vmul.f32 %v2674, %v2805
    %v2812 = vmul.f32 %v2675, %v2805
    %v2813 = vmul.f32 %v2676, %v2805
    %v2814 = vmul.f32 %v2677, %v2805
    %v2815 = vmul.f32 %v2678, %v2805
    %v2816 = vmul.f32 %v2679, %v2805
    %v2817 = vmul.f32 %v2680, %v2805
    %v2818 = vmul.f32 %v2681, %v2805
    %v2819 = vmul.f32 %v2682, %v2805
    %v2820 = vmul.f32 %v2683, %v2805
    %v2821 = vmul.f32 %v2684, %v2805
    %v2822 = vmul.f32 %v2685, %v2805
    %v2823 = vmul.f32 %v2686, %v2805
    %v2824 = vmul.f32 %v2687, %v2805
    %v2825 = vmul.f32 %v2688, %v2805
    %v2826 = vmul.f32 %v2689, %v2805
    %v2827 = vmul.f32 %v2690, %v2805
    %v2828 = vmul.f32 %v2691, %v2805
    %v2829 = vmul.f32 %v2692, %v2805
    %v2830 = vmul.f32 %v2693, %v2805
    %v2831 = vmul.f32 %v2694, %v2805
    %v2832 = vmul.f32 %v2695, %v2805
    %v2833 = vmul.f32 %v2696, %v2805
    %v2834 = vmul.f32 %v2697, %v2805
    %v2835 = vmul.f32 %v2698, %v2805
    %v2836 = vmul.f32 %v2699, %v2805
    %v2837 = vmul.f32 %v2700, %v2805
    %v2838 = vstv %s2803
    %v2839 = vmul.f32 %v2838, %v2806
    %v2840 = vmul.f32 %v2838, %v2807
    %v2841 = vmul.f32 %v2838, %v2808
    %v2842 = vmul.f32 %v2838, %v2809
    %v2843 = vmul.f32 %v2838, %v2810
    %v2844 = vmul.f32 %v2838, %v2811
    %v2845 = vmul.f32 %v2838, %v2812
    %v2846 = vmul.f32 %v2838, %v2813
    %v2847 = vmul.f32 %v2838, %v2814
    %v2848 = vmul.f32 %v2838, %v2815
    %v2849 = vmul.f32 %v2838, %v2816
    %v2850 = vmul.f32 %v2838, %v2817
    %v2851 = vmul.f32 %v2838, %v2818
    %v2852 = vmul.f32 %v2838, %v2819
    %v2853 = vmul.f32 %v2838, %v2820
    %v2854 = vmul.f32 %v2838, %v2821
    %v2855 = vmul.f32 %v2838, %v2822
    %v2856 = vmul.f32 %v2838, %v2823
    %v2857 = vmul.f32 %v2838, %v2824
    %v2858 = vmul.f32 %v2838, %v2825
    %v2859 = vmul.f32 %v2838, %v2826
    %v2860 = vmul.f32 %v2838, %v2827
    %v2861 = vmul.f32 %v2838, %v2828
    %v2862 = vmul.f32 %v2838, %v2829
    %v2863 = vmul.f32 %v2838, %v2830
    %v2864 = vmul.f32 %v2838, %v2831
    %v2865 = vmul.f32 %v2838, %v2832
    %v2866 = vmul.f32 %v2838, %v2833
    %v2867 = vmul.f32 %v2838, %v2834
    %v2868 = vmul.f32 %v2838, %v2835
    %v2869 = vmul.f32 %v2838, %v2836
    %v2870 = vmul.f32 %v2838, %v2837
    %s2871 = sld [smem:[#allocation2 + $0x13]]
    %v2872 = vstv %s2871
    %v2873 = vadd.f32 %v2839, %v2872
    %v2874 = vadd.f32 %v2840, %v2872
    %v2875 = vadd.f32 %v2841, %v2872
    %v2876 = vadd.f32 %v2842, %v2872
    %v2877 = vadd.f32 %v2843, %v2872
    %v2878 = vadd.f32 %v2844, %v2872
    %v2879 = vadd.f32 %v2845, %v2872
    %v2880 = vadd.f32 %v2846, %v2872
    %v2881 = vadd.f32 %v2847, %v2872
    %v2882 = vadd.f32 %v2848, %v2872
    %v2883 = vadd.f32 %v2849, %v2872
    %v2884 = vadd.f32 %v2850, %v2872
    %v2885 = vadd.f32 %v2851, %v2872
    %v2886 = vadd.f32 %v2852, %v2872
    %v2887 = vadd.f32 %v2853, %v2872
    %v2888 = vadd.f32 %v2854, %v2872
    %v2889 = vadd.f32 %v2855, %v2872
    %v2890 = vadd.f32 %v2856, %v2872
    %v2891 = vadd.f32 %v2857, %v2872
    %v2892 = vadd.f32 %v2858, %v2872
    %v2893 = vadd.f32 %v2859, %v2872
    %v2894 = vadd.f32 %v2860, %v2872
    %v2895 = vadd.f32 %v2861, %v2872
    %v2896 = vadd.f32 %v2862, %v2872
    %v2897 = vadd.f32 %v2863, %v2872
    %v2898 = vadd.f32 %v2864, %v2872
    %v2899 = vadd.f32 %v2865, %v2872
    %v2900 = vadd.f32 %v2866, %v2872
    %v2901 = vadd.f32 %v2867, %v2872
    %v2902 = vadd.f32 %v2868, %v2872
    %v2903 = vadd.f32 %v2869, %v2872
    %v2904 = vadd.f32 %v2870, %v2872
    %v2905 = vxor.u32 %v2873, 2147483648
    %v2906 = vxor.u32 %v2874, 2147483648
    %v2907 = vxor.u32 %v2875, 2147483648
    %v2908 = vxor.u32 %v2876, 2147483648
    %v2909 = vxor.u32 %v2877, 2147483648
    %v2910 = vxor.u32 %v2878, 2147483648
    %v2911 = vxor.u32 %v2879, 2147483648
    %v2912 = vxor.u32 %v2880, 2147483648
    %v2913 = vxor.u32 %v2881, 2147483648
    %v2914 = vxor.u32 %v2882, 2147483648
    %v2915 = vxor.u32 %v2883, 2147483648
    %v2916 = vxor.u32 %v2884, 2147483648
    %v2917 = vxor.u32 %v2885, 2147483648
    %v2918 = vxor.u32 %v2886, 2147483648
    %v2919 = vxor.u32 %v2887, 2147483648
    %v2920 = vxor.u32 %v2888, 2147483648
    %v2921 = vxor.u32 %v2889, 2147483648
    %v2922 = vxor.u32 %v2890, 2147483648
    %v2923 = vxor.u32 %v2891, 2147483648
    %v2924 = vxor.u32 %v2892, 2147483648
    %v2925 = vxor.u32 %v2893, 2147483648
    %v2926 = vxor.u32 %v2894, 2147483648
    %v2927 = vxor.u32 %v2895, 2147483648
    %v2928 = vxor.u32 %v2896, 2147483648
    %v2929 = vxor.u32 %v2897, 2147483648
    %v2930 = vxor.u32 %v2898, 2147483648
    %v2931 = vxor.u32 %v2899, 2147483648
    %v2932 = vxor.u32 %v2900, 2147483648
    %v2933 = vxor.u32 %v2901, 2147483648
    %v2934 = vxor.u32 %v2902, 2147483648
    %v2935 = vxor.u32 %v2903, 2147483648
    %v2936 = vxor.u32 %v2904, 2147483648
    %v2937 = vmul.f32 %v2905, 1.442695
    %v2938 = vpow.pop %v2937
    %v2939 = vmul.f32 %v2906, 1.442695
    %v2940 = vpow.pop %v2939
    %v2941 = vmul.f32 %v2907, 1.442695
    %v2942 = vpow.pop %v2941
    %v2943 = vmul.f32 %v2908, 1.442695
    %v2944 = vpow.pop %v2943
    %v2945 = vmul.f32 %v2909, 1.442695
    %v2946 = vpow.pop %v2945
    %v2947 = vmul.f32 %v2910, 1.442695
    %v2948 = vpow.pop %v2947
    %v2949 = vmul.f32 %v2911, 1.442695
    %v2950 = vpow.pop %v2949
    %v2951 = vmul.f32 %v2912, 1.442695
    %v2952 = vpow.pop %v2951
    %v2953 = vmul.f32 %v2913, 1.442695
    %v2954 = vpow.pop %v2953
    %v2955 = vmul.f32 %v2914, 1.442695
    %v2956 = vpow.pop %v2955
    %v2957 = vmul.f32 %v2915, 1.442695
    %v2958 = vpow.pop %v2957
    %v2959 = vmul.f32 %v2916, 1.442695
    %v2960 = vpow.pop %v2959
    %v2961 = vmul.f32 %v2917, 1.442695
    %v2962 = vpow.pop %v2961
    %v2963 = vmul.f32 %v2918, 1.442695
    %v2964 = vpow.pop %v2963
    %v2965 = vmul.f32 %v2919, 1.442695
    %v2966 = vpow.pop %v2965
    %v2967 = vmul.f32 %v2920, 1.442695
    %v2968 = vpow.pop %v2967
    %v2969 = vmul.f32 %v2921, 1.442695
    %v2970 = vpow.pop %v2969
    %v2971 = vmul.f32 %v2922, 1.442695
    %v2972 = vpow.pop %v2971
    %v2973 = vmul.f32 %v2923, 1.442695
    %v2974 = vpow.pop %v2973
    %v2975 = vmul.f32 %v2924, 1.442695
    %v2976 = vpow.pop %v2975
    %v2977 = vmul.f32 %v2925, 1.442695
    %v2978 = vpow.pop %v2977
    %v2979 = vmul.f32 %v2926, 1.442695
    %v2980 = vpow.pop %v2979
    %v2981 = vmul.f32 %v2927, 1.442695
    %v2982 = vpow.pop %v2981
    %v2983 = vmul.f32 %v2928, 1.442695
    %v2984 = vpow.pop %v2983
    %v2985 = vmul.f32 %v2929, 1.442695
    %v2986 = vpow.pop %v2985
    %v2987 = vmul.f32 %v2930, 1.442695
    %v2988 = vpow.pop %v2987
    %v2989 = vmul.f32 %v2931, 1.442695
    %v2990 = vpow.pop %v2989
    %v2991 = vmul.f32 %v2932, 1.442695
    %v2992 = vpow.pop %v2991
    %v2993 = vmul.f32 %v2933, 1.442695
    %v2994 = vpow.pop %v2993
    %v2995 = vmul.f32 %v2934, 1.442695
    %v2996 = vpow.pop %v2995
    %v2997 = vmul.f32 %v2935, 1.442695
    %v2998 = vpow.pop %v2997
    %v2999 = vmul.f32 %v2936, 1.442695
    %v3000 = vpow.pop %v2999
    %v3001 = vadd.f32 %v2938, 1.0
    %v3002 = vadd.f32 %v2940, 1.0
    %v3003 = vadd.f32 %v2942, 1.0
    %v3004 = vadd.f32 %v2944, 1.0
    %v3005 = vadd.f32 %v2946, 1.0
    %v3006 = vadd.f32 %v2948, 1.0
    %v3007 = vadd.f32 %v2950, 1.0
    %v3008 = vadd.f32 %v2952, 1.0
    %v3009 = vadd.f32 %v2954, 1.0
    %v3010 = vadd.f32 %v2956, 1.0
    %v3011 = vadd.f32 %v2958, 1.0
    %v3012 = vadd.f32 %v2960, 1.0
    %v3013 = vadd.f32 %v2962, 1.0
    %v3014 = vadd.f32 %v2964, 1.0
    %v3015 = vadd.f32 %v2966, 1.0
    %v3016 = vadd.f32 %v2968, 1.0
    %v3017 = vadd.f32 %v2970, 1.0
    %v3018 = vadd.f32 %v2972, 1.0
    %v3019 = vadd.f32 %v2974, 1.0
    %v3020 = vadd.f32 %v2976, 1.0
    %v3021 = vadd.f32 %v2978, 1.0
    %v3022 = vadd.f32 %v2980, 1.0
    %v3023 = vadd.f32 %v2982, 1.0
    %v3024 = vadd.f32 %v2984, 1.0
    %v3025 = vadd.f32 %v2986, 1.0
    %v3026 = vadd.f32 %v2988, 1.0
    %v3027 = vadd.f32 %v2990, 1.0
    %v3028 = vadd.f32 %v2992, 1.0
    %v3029 = vadd.f32 %v2994, 1.0
    %v3030 = vadd.f32 %v2996, 1.0
    %v3031 = vadd.f32 %v2998, 1.0
    %v3032 = vadd.f32 %v3000, 1.0
    %v3033 = vrcp.pop %v3001
    %v3034 = vmul.f32 1.0, %v3033
    %v3035 = vrcp.pop %v3002
    %v3036 = vmul.f32 1.0, %v3035
    %v3037 = vrcp.pop %v3003
    %v3038 = vmul.f32 1.0, %v3037
    %v3039 = vrcp.pop %v3004
    %v3040 = vmul.f32 1.0, %v3039
    %v3041 = vrcp.pop %v3005
    %v3042 = vmul.f32 1.0, %v3041
    %v3043 = vrcp.pop %v3006
    %v3044 = vmul.f32 1.0, %v3043
    %v3045 = vrcp.pop %v3007
    %v3046 = vmul.f32 1.0, %v3045
    %v3047 = vrcp.pop %v3008
    %v3048 = vmul.f32 1.0, %v3047
    %v3049 = vrcp.pop %v3009
    %v3050 = vmul.f32 1.0, %v3049
    %v3051 = vrcp.pop %v3010
    %v3052 = vmul.f32 1.0, %v3051
    %v3053 = vrcp.pop %v3011
    %v3054 = vmul.f32 1.0, %v3053
    %v3055 = vrcp.pop %v3012
    %v3056 = vmul.f32 1.0, %v3055
    %v3057 = vrcp.pop %v3013
    %v3058 = vmul.f32 1.0, %v3057
    %v3059 = vrcp.pop %v3014
    %v3060 = vmul.f32 1.0, %v3059
    %v3061 = vrcp.pop %v3015
    %v3062 = vmul.f32 1.0, %v3061
    %v3063 = vrcp.pop %v3016
    %v3064 = vmul.f32 1.0, %v3063
    %v3065 = vrcp.pop %v3017
    %v3066 = vmul.f32 1.0, %v3065
    %v3067 = vrcp.pop %v3018
    %v3068 = vmul.f32 1.0, %v3067
    %v3069 = vrcp.pop %v3019
    %v3070 = vmul.f32 1.0, %v3069
    %v3071 = vrcp.pop %v3020
    %v3072 = vmul.f32 1.0, %v3071
    %v3073 = vrcp.pop %v3021
    %v3074 = vmul.f32 1.0, %v3073
    %v3075 = vrcp.pop %v3022
    %v3076 = vmul.f32 1.0, %v3075
    %v3077 = vrcp.pop %v3023
    %v3078 = vmul.f32 1.0, %v3077
    %v3079 = vrcp.pop %v3024
    %v3080 = vmul.f32 1.0, %v3079
    %v3081 = vrcp.pop %v3025
    %v3082 = vmul.f32 1.0, %v3081
    %v3083 = vrcp.pop %v3026
    %v3084 = vmul.f32 1.0, %v3083
    %v3085 = vrcp.pop %v3027
    %v3086 = vmul.f32 1.0, %v3085
    %v3087 = vrcp.pop %v3028
    %v3088 = vmul.f32 1.0, %v3087
    %v3089 = vrcp.pop %v3029
    %v3090 = vmul.f32 1.0, %v3089
    %v3091 = vrcp.pop %v3030
    %v3092 = vmul.f32 1.0, %v3091
    %v3093 = vrcp.pop %v3031
    %v3094 = vmul.f32 1.0, %v3093
    %v3095 = vrcp.pop %v3032
    %v3096 = vmul.f32 1.0, %v3095
    %s3097 = sld [smem:[#allocation2 + $0x14]]
    %v3098 = vstv %s3097
    %v3099 = vmul.f32 %v3098, %v754
    %v3100 = vmul.f32 %v3098, %v756
    %v3101 = vmul.f32 %v3098, %v758
    %v3102 = vmul.f32 %v3098, %v760
    %v3103 = vmul.f32 %v3098, %v762
    %v3104 = vmul.f32 %v3098, %v764
    %v3105 = vmul.f32 %v3098, %v766
    %v3106 = vmul.f32 %v3098, %v768
    %v3107 = vmul.f32 %v3098, %v770
    %v3108 = vmul.f32 %v3098, %v772
    %v3109 = vmul.f32 %v3098, %v774
    %v3110 = vmul.f32 %v3098, %v776
    %v3111 = vmul.f32 %v3098, %v778
    %v3112 = vmul.f32 %v3098, %v780
    %v3113 = vmul.f32 %v3098, %v782
    %v3114 = vmul.f32 %v3098, %v784
    %v3115 = vmul.f32 %v3098, %v786
    %v3116 = vmul.f32 %v3098, %v788
    %v3117 = vmul.f32 %v3098, %v790
    %v3118 = vmul.f32 %v3098, %v792
    %v3119 = vmul.f32 %v3098, %v794
    %v3120 = vmul.f32 %v3098, %v796
    %v3121 = vmul.f32 %v3098, %v798
    %v3122 = vmul.f32 %v3098, %v800
    %v3123 = vmul.f32 %v3098, %v802
    %v3124 = vmul.f32 %v3098, %v804
    %v3125 = vmul.f32 %v3098, %v806
    %v3126 = vmul.f32 %v3098, %v808
    %v3127 = vmul.f32 %v3098, %v810
    %v3128 = vmul.f32 %v3098, %v812
    %v3129 = vmul.f32 %v3098, %v814
    %v3130 = vmul.f32 %v3098, %v816
    %s3131 = sld [smem:[#allocation2 + $0x15]]
    %v3132 = vstv %s3131
    %v3133 = vmul.f32 %v3132, %v1514
    %v3134 = vmul.f32 %v3132, %v1516
    %v3135 = vmul.f32 %v3132, %v1518
    %v3136 = vmul.f32 %v3132, %v1520
    %v3137 = vmul.f32 %v3132, %v1522
    %v3138 = vmul.f32 %v3132, %v1524
    %v3139 = vmul.f32 %v3132, %v1526
    %v3140 = vmul.f32 %v3132, %v1528
    %v3141 = vmul.f32 %v3132, %v1530
    %v3142 = vmul.f32 %v3132, %v1532
    %v3143 = vmul.f32 %v3132, %v1534
    %v3144 = vmul.f32 %v3132, %v1536
    %v3145 = vmul.f32 %v3132, %v1538
    %v3146 = vmul.f32 %v3132, %v1540
    %v3147 = vmul.f32 %v3132, %v1542
    %v3148 = vmul.f32 %v3132, %v1544
    %v3149 = vmul.f32 %v3132, %v1546
    %v3150 = vmul.f32 %v3132, %v1548
    %v3151 = vmul.f32 %v3132, %v1550
    %v3152 = vmul.f32 %v3132, %v1552
    %v3153 = vmul.f32 %v3132, %v1554
    %v3154 = vmul.f32 %v3132, %v1556
    %v3155 = vmul.f32 %v3132, %v1558
    %v3156 = vmul.f32 %v3132, %v1560
    %v3157 = vmul.f32 %v3132, %v1562
    %v3158 = vmul.f32 %v3132, %v1564
    %v3159 = vmul.f32 %v3132, %v1566
    %v3160 = vmul.f32 %v3132, %v1568
    %v3161 = vmul.f32 %v3132, %v1570
    %v3162 = vmul.f32 %v3132, %v1572
    %v3163 = vmul.f32 %v3132, %v1574
    %v3164 = vmul.f32 %v3132, %v1576
    %v3165 = vadd.f32 %v3099, %v3133
    %v3166 = vadd.f32 %v3100, %v3134
    %v3167 = vadd.f32 %v3101, %v3135
    %v3168 = vadd.f32 %v3102, %v3136
    %v3169 = vadd.f32 %v3103, %v3137
    %v3170 = vadd.f32 %v3104, %v3138
    %v3171 = vadd.f32 %v3105, %v3139
    %v3172 = vadd.f32 %v3106, %v3140
    %v3173 = vadd.f32 %v3107, %v3141
    %v3174 = vadd.f32 %v3108, %v3142
    %v3175 = vadd.f32 %v3109, %v3143
    %v3176 = vadd.f32 %v3110, %v3144
    %v3177 = vadd.f32 %v3111, %v3145
    %v3178 = vadd.f32 %v3112, %v3146
    %v3179 = vadd.f32 %v3113, %v3147
    %v3180 = vadd.f32 %v3114, %v3148
    %v3181 = vadd.f32 %v3115, %v3149
    %v3182 = vadd.f32 %v3116, %v3150
    %v3183 = vadd.f32 %v3117, %v3151
    %v3184 = vadd.f32 %v3118, %v3152
    %v3185 = vadd.f32 %v3119, %v3153
    %v3186 = vadd.f32 %v3120, %v3154
    %v3187 = vadd.f32 %v3121, %v3155
    %v3188 = vadd.f32 %v3122, %v3156
    %v3189 = vadd.f32 %v3123, %v3157
    %v3190 = vadd.f32 %v3124, %v3158
    %v3191 = vadd.f32 %v3125, %v3159
    %v3192 = vadd.f32 %v3126, %v3160
    %v3193 = vadd.f32 %v3127, %v3161
    %v3194 = vadd.f32 %v3128, %v3162
    %v3195 = vadd.f32 %v3129, %v3163
    %v3196 = vadd.f32 %v3130, %v3164
    %s3197 = sld [smem:[#allocation2 + $0x16]]
    %v3198 = vstv %s3197
    %v3199 = vmul.f32 %v3198, %v2274
    %v3200 = vmul.f32 %v3198, %v2276
    %v3201 = vmul.f32 %v3198, %v2278
    %v3202 = vmul.f32 %v3198, %v2280
    %v3203 = vmul.f32 %v3198, %v2282
    %v3204 = vmul.f32 %v3198, %v2284
    %v3205 = vmul.f32 %v3198, %v2286
    %v3206 = vmul.f32 %v3198, %v2288
    %v3207 = vmul.f32 %v3198, %v2290
    %v3208 = vmul.f32 %v3198, %v2292
    %v3209 = vmul.f32 %v3198, %v2294
    %v3210 = vmul.f32 %v3198, %v2296
    %v3211 = vmul.f32 %v3198, %v2298
    %v3212 = vmul.f32 %v3198, %v2300
    %v3213 = vmul.f32 %v3198, %v2302
    %v3214 = vmul.f32 %v3198, %v2304
    %v3215 = vmul.f32 %v3198, %v2306
    %v3216 = vmul.f32 %v3198, %v2308
    %v3217 = vmul.f32 %v3198, %v2310
    %v3218 = vmul.f32 %v3198, %v2312
    %v3219 = vmul.f32 %v3198, %v2314
    %v3220 = vmul.f32 %v3198, %v2316
    %v3221 = vmul.f32 %v3198, %v2318
    %v3222 = vmul.f32 %v3198, %v2320
    %v3223 = vmul.f32 %v3198, %v2322
    %v3224 = vmul.f32 %v3198, %v2324
    %v3225 = vmul.f32 %v3198, %v2326
    %v3226 = vmul.f32 %v3198, %v2328
    %v3227 = vmul.f32 %v3198, %v2330
    %v3228 = vmul.f32 %v3198, %v2332
    %v3229 = vmul.f32 %v3198, %v2334
    %v3230 = vmul.f32 %v3198, %v2336
    %v3231 = vadd.f32 %v3165, %v3199
    %v3232 = vadd.f32 %v3166, %v3200
    %v3233 = vadd.f32 %v3167, %v3201
    %v3234 = vadd.f32 %v3168, %v3202
    %v3235 = vadd.f32 %v3169, %v3203
    %v3236 = vadd.f32 %v3170, %v3204
    %v3237 = vadd.f32 %v3171, %v3205
    %v3238 = vadd.f32 %v3172, %v3206
    %v3239 = vadd.f32 %v3173, %v3207
    %v3240 = vadd.f32 %v3174, %v3208
    %v3241 = vadd.f32 %v3175, %v3209
    %v3242 = vadd.f32 %v3176, %v3210
    %v3243 = vadd.f32 %v3177, %v3211
    %v3244 = vadd.f32 %v3178, %v3212
    %v3245 = vadd.f32 %v3179, %v3213
    %v3246 = vadd.f32 %v3180, %v3214
    %v3247 = vadd.f32 %v3181, %v3215
    %v3248 = vadd.f32 %v3182, %v3216
    %v3249 = vadd.f32 %v3183, %v3217
    %v3250 = vadd.f32 %v3184, %v3218
    %v3251 = vadd.f32 %v3185, %v3219
    %v3252 = vadd.f32 %v3186, %v3220
    %v3253 = vadd.f32 %v3187, %v3221
    %v3254 = vadd.f32 %v3188, %v3222
    %v3255 = vadd.f32 %v3189, %v3223
    %v3256 = vadd.f32 %v3190, %v3224
    %v3257 = vadd.f32 %v3191, %v3225
    %v3258 = vadd.f32 %v3192, %v3226
    %v3259 = vadd.f32 %v3193, %v3227
    %v3260 = vadd.f32 %v3194, %v3228
    %v3261 = vadd.f32 %v3195, %v3229
    %v3262 = vadd.f32 %v3196, %v3230
    %s3263 = sld [smem:[#allocation2 + $0x17]]
    %v3264 = vstv %s3263
    %v3265 = vmul.f32 %v3264, %v3034
    %v3266 = vmul.f32 %v3264, %v3036
    %v3267 = vmul.f32 %v3264, %v3038
    %v3268 = vmul.f32 %v3264, %v3040
    %v3269 = vmul.f32 %v3264, %v3042
    %v3270 = vmul.f32 %v3264, %v3044
    %v3271 = vmul.f32 %v3264, %v3046
    %v3272 = vmul.f32 %v3264, %v3048
    %v3273 = vmul.f32 %v3264, %v3050
    %v3274 = vmul.f32 %v3264, %v3052
    %v3275 = vmul.f32 %v3264, %v3054
    %v3276 = vmul.f32 %v3264, %v3056
    %v3277 = vmul.f32 %v3264, %v3058
    %v3278 = vmul.f32 %v3264, %v3060
    %v3279 = vmul.f32 %v3264, %v3062
    %v3280 = vmul.f32 %v3264, %v3064
    %v3281 = vmul.f32 %v3264, %v3066
    %v3282 = vmul.f32 %v3264, %v3068
    %v3283 = vmul.f32 %v3264, %v3070
    %v3284 = vmul.f32 %v3264, %v3072
    %v3285 = vmul.f32 %v3264, %v3074
    %v3286 = vmul.f32 %v3264, %v3076
    %v3287 = vmul.f32 %v3264, %v3078
    %v3288 = vmul.f32 %v3264, %v3080
    %v3289 = vmul.f32 %v3264, %v3082
    %v3290 = vmul.f32 %v3264, %v3084
    %v3291 = vmul.f32 %v3264, %v3086
    %v3292 = vmul.f32 %v3264, %v3088
    %v3293 = vmul.f32 %v3264, %v3090
    %v3294 = vmul.f32 %v3264, %v3092
    %v3295 = vmul.f32 %v3264, %v3094
    %v3296 = vmul.f32 %v3264, %v3096
    %v3297 = vadd.f32 %v3231, %v3265
    %v3298 = vadd.f32 %v3232, %v3266
    %v3299 = vadd.f32 %v3233, %v3267
    %v3300 = vadd.f32 %v3234, %v3268
    %v3301 = vadd.f32 %v3235, %v3269
    %v3302 = vadd.f32 %v3236, %v3270
    %v3303 = vadd.f32 %v3237, %v3271
    %v3304 = vadd.f32 %v3238, %v3272
    %v3305 = vadd.f32 %v3239, %v3273
    %v3306 = vadd.f32 %v3240, %v3274
    %v3307 = vadd.f32 %v3241, %v3275
    %v3308 = vadd.f32 %v3242, %v3276
    %v3309 = vadd.f32 %v3243, %v3277
    %v3310 = vadd.f32 %v3244, %v3278
    %v3311 = vadd.f32 %v3245, %v3279
    %v3312 = vadd.f32 %v3246, %v3280
    %v3313 = vadd.f32 %v3247, %v3281
    %v3314 = vadd.f32 %v3248, %v3282
    %v3315 = vadd.f32 %v3249, %v3283
    %v3316 = vadd.f32 %v3250, %v3284
    %v3317 = vadd.f32 %v3251, %v3285
    %v3318 = vadd.f32 %v3252, %v3286
    %v3319 = vadd.f32 %v3253, %v3287
    %v3320 = vadd.f32 %v3254, %v3288
    %v3321 = vadd.f32 %v3255, %v3289
    %v3322 = vadd.f32 %v3256, %v3290
    %v3323 = vadd.f32 %v3257, %v3291
    %v3324 = vadd.f32 %v3258, %v3292
    %v3325 = vadd.f32 %v3259, %v3293
    %v3326 = vadd.f32 %v3260, %v3294
    %v3327 = vadd.f32 %v3261, %v3295
    %v3328 = vadd.f32 %v3262, %v3296
    %s3329 = sld [smem:[#allocation2 + $0x18]]
    %v3330 = vstv %s3329
    %v3331 = vadd.f32 %v3297, %v3330
    %v3332 = vadd.f32 %v3298, %v3330
    %v3333 = vadd.f32 %v3299, %v3330
    %v3334 = vadd.f32 %v3300, %v3330
    %v3335 = vadd.f32 %v3301, %v3330
    %v3336 = vadd.f32 %v3302, %v3330
    %v3337 = vadd.f32 %v3303, %v3330
    %v3338 = vadd.f32 %v3304, %v3330
    %v3339 = vadd.f32 %v3305, %v3330
    %v3340 = vadd.f32 %v3306, %v3330
    %v3341 = vadd.f32 %v3307, %v3330
    %v3342 = vadd.f32 %v3308, %v3330
    %v3343 = vadd.f32 %v3309, %v3330
    %v3344 = vadd.f32 %v3310, %v3330
    %v3345 = vadd.f32 %v3311, %v3330
    %v3346 = vadd.f32 %v3312, %v3330
    %v3347 = vadd.f32 %v3313, %v3330
    %v3348 = vadd.f32 %v3314, %v3330
    %v3349 = vadd.f32 %v3315, %v3330
    %v3350 = vadd.f32 %v3316, %v3330
    %v3351 = vadd.f32 %v3317, %v3330
    %v3352 = vadd.f32 %v3318, %v3330
    %v3353 = vadd.f32 %v3319, %v3330
    %v3354 = vadd.f32 %v3320, %v3330
    %v3355 = vadd.f32 %v3321, %v3330
    %v3356 = vadd.f32 %v3322, %v3330
    %v3357 = vadd.f32 %v3323, %v3330
    %v3358 = vadd.f32 %v3324, %v3330
    %v3359 = vadd.f32 %v3325, %v3330
    %v3360 = vadd.f32 %v3326, %v3330
    %v3361 = vadd.f32 %v3327, %v3330
    %v3362 = vadd.f32 %v3328, %v3330
    %3363 = vst.msk [vmem:[%s2] sm:$0xff] %vm318, %v3331
    %3364 = vst.msk [vmem:[%s2 + $0x8] sm:$0xff] %vm318, %v3332
    %3365 = vst.msk [vmem:[%s2 + $0x10] sm:$0xff] %vm318, %v3333
    %3366 = vst.msk [vmem:[%s2 + $0x18] sm:$0xff] %vm318, %v3334
    %3367 = vst.msk [vmem:[%s2 + $0x20] sm:$0xff] %vm318, %v3335
    %3368 = vst.msk [vmem:[%s2 + $0x28] sm:$0xff] %vm318, %v3336
    %3369 = vst.msk [vmem:[%s2 + $0x30] sm:$0xff] %vm318, %v3337
    %3370 = vst.msk [vmem:[%s2 + $0x38] sm:$0xff] %vm318, %v3338
    %3371 = vst.msk [vmem:[%s2 + $0x40] sm:$0xff] %vm318, %v3339
    %3372 = vst.msk [vmem:[%s2 + $0x48] sm:$0xff] %vm318, %v3340
    %3373 = vst.msk [vmem:[%s2 + $0x50] sm:$0xff] %vm318, %v3341
    %3374 = vst.msk [vmem:[%s2 + $0x58] sm:$0xff] %vm318, %v3342
    %3375 = vst.msk [vmem:[%s2 + $0x60] sm:$0xff] %vm318, %v3343
    %3376 = vst.msk [vmem:[%s2 + $0x68] sm:$0xff] %vm318, %v3344
    %3377 = vst.msk [vmem:[%s2 + $0x70] sm:$0xff] %vm318, %v3345
    %3378 = vst.msk [vmem:[%s2 + $0x78] sm:$0xff] %vm318, %v3346
    %3379 = vst.msk [vmem:[%s2 + $0x80] sm:$0xff] %vm318, %v3347
    %3380 = vst.msk [vmem:[%s2 + $0x88] sm:$0xff] %vm318, %v3348
    %3381 = vst.msk [vmem:[%s2 + $0x90] sm:$0xff] %vm318, %v3349
    %3382 = vst.msk [vmem:[%s2 + $0x98] sm:$0xff] %vm318, %v3350
    %3383 = vst.msk [vmem:[%s2 + $0xa0] sm:$0xff] %vm318, %v3351
    %3384 = vst.msk [vmem:[%s2 + $0xa8] sm:$0xff] %vm318, %v3352
    %3385 = vst.msk [vmem:[%s2 + $0xb0] sm:$0xff] %vm318, %v3353
    %3386 = vst.msk [vmem:[%s2 + $0xb8] sm:$0xff] %vm318, %v3354
    %3387 = vst.msk [vmem:[%s2 + $0xc0] sm:$0xff] %vm318, %v3355
    %3388 = vst.msk [vmem:[%s2 + $0xc8] sm:$0xff] %vm318, %v3356
    %3389 = vst.msk [vmem:[%s2 + $0xd0] sm:$0xff] %vm318, %v3357
    %3390 = vst.msk [vmem:[%s2 + $0xd8] sm:$0xff] %vm318, %v3358
    %3391 = vst.msk [vmem:[%s2 + $0xe0] sm:$0xff] %vm318, %v3359
    %3392 = vst.msk [vmem:[%s2 + $0xe8] sm:$0xff] %vm318, %v3360
    %3393 = vst.msk [vmem:[%s2 + $0xf0] sm:$0xff] %vm318, %v3361
    %3394 = vst.msk [vmem:[%s2 + $0xf8] sm:$0xff] %vm318, %v3362
    // Predicated region
    $region14: #{sigmoid_class1_norm1_forward.1} parent=1 // pred_check
      _
    $region15: #{sigmoid_class1_norm1_forward.1} parent=1 // pred_check_branch
      %3396 = sbr.rel (0) target = $region17
    $region16: #{sigmoid_class1_norm1_forward.1} parent=1 // pred_region
      _
    $region17: #{sigmoid_class1_norm1_forward.1} parent=1 // pred_fallthru
      _
    // Predicated region
    $region18: #{sigmoid_class1_norm1_forward.1} parent=1 // pred_check
      _
    $region19: #{sigmoid_class1_norm1_forward.1} parent=1 // pred_check_branch
      %3398 = sbr.rel (0) target = $region21
    $region20: #{sigmoid_class1_norm1_forward.1} parent=1 // pred_region
      _
    $region21: #{sigmoid_class1_norm1_forward.1} parent=1 // pred_fallthru
      _
    %3399 = vsyncpa [#allocation3], 1

</llo_original>
